<compile_context>
chip_gen: v6e
topology: v6e:2x2x1
jax: 0.10.0
libtpu: 0.0.40
codegen_flags: <defaults>
</compile_context>

<pallas_src>
from functools import partial

import jax
import jax.numpy as jnp
from jax.experimental import pallas as pl
from jax.experimental.pallas import tpu as pltpu


# --------------------------------------------------------------------------
# Kernel
# --------------------------------------------------------------------------
def baseline_attn_kernel(x_ref, wqkv_ref, bqkv_ref, woc_ref, boc_ref, out_ref,
                         *, nheads, use_bf16):
    bb, S, C = x_ref.shape
    D = wqkv_ref.shape[1] // 3
    hd = D // nheads
    mm_dtype = jnp.bfloat16 if use_bf16 else jnp.float32

    # Fused extractor + QKV projection over all bb*S tokens at once.
    x = x_ref[...].reshape(bb * S, C)                                  # (bb*S, C)
    qkv = jnp.dot(x, wqkv_ref[...],
                  preferred_element_type=jnp.float32) + bqkv_ref[...]  # (bb*S, 3D)

    for b in range(bb):                                                # static unroll
        qkv_b = qkv[b * S:(b + 1) * S]                                 # (S, 3D)
        cls = boc_ref[...]                                             # (1, ncls)
        for h in range(nheads):                                        # static unroll
            lo = h * hd
            qh = qkv_b[:, lo:lo + hd]            # 1/sqrt(hd) folded into Wqkv
            kh = qkv_b[:, D + lo:D + lo + hd]
            vh = qkv_b[:, 2 * D + lo:2 * D + lo + hd]

            # Transpose-free (S, S) score matmul: contract last dims of both.
            s = jax.lax.dot_general(
                qh.astype(mm_dtype), kh.astype(mm_dtype),
                (((1,), (1,)), ((), ())),
                preferred_element_type=jnp.float32)                    # (S, S)

            s = s - jnp.max(s, axis=-1, keepdims=True)                 # f32 max-sub
            if use_bf16:
                p = jnp.exp(s.astype(jnp.bfloat16)).astype(jnp.float32)
            else:
                p = jnp.exp(s)
            p = p * pl.reciprocal(jnp.sum(p, axis=-1, keepdims=True),
                                  approx=True)

            # mean over queries is linear => mean_S(p @ v) == mean_S(p) @ v
            p_mean = jnp.mean(p, axis=0, keepdims=True)                # (1, S)
            ctx_mean = jnp.dot(p_mean, vh,
                               preferred_element_type=jnp.float32)     # (1, hd)
            # out-projection + classifier pre-folded: woc = Wo @ Wcls
            cls = cls + jnp.dot(ctx_mean, woc_ref[lo:lo + hd, :],
                                preferred_element_type=jnp.float32)    # (1, ncls)
        out_ref[b, :, :] = cls


# --------------------------------------------------------------------------
# Wrapper-side weight fusion (exact algebra)
# --------------------------------------------------------------------------
def _fuse_params(params, nheads):
    D = params["wq"].shape[0]
    hd = D // nheads
    scale = jnp.float32(1.0 / (hd ** 0.5))
    w_in = jnp.concatenate(
        [params["wq"] * scale, params["wk"], params["wv"]], axis=1)    # (D, 3D)
    b_in = jnp.concatenate(
        [params["bq"] * scale, params["bk"], params["bv"]], axis=1)    # (1, 3D)
    wqkv = params["cw"] @ w_in                                         # (C, 3D)
    bqkv = params["cb"] @ w_in + b_in                                  # (1, 3D)
    woc = params["wo"] @ params["wc"]                                  # (D, ncls)
    boc = params["bo"] @ params["wc"] + params["bc"]                   # (1, ncls)
    return wqkv, bqkv, woc, boc


def _device_kind():
    try:
        return jax.devices()[0].device_kind.lower()
    except Exception:
        return ""


def _supports_bf16_vector(kind):
    # v6e and newer have bf16 VPU/EUP paths; v5e and older stay f32.
    if not kind:
        return False
    return not any(t in kind for t in ("v2", "v3", "v4", "v5"))


def _single_tensorcore(kind):
    # v5e / v6e expose one TensorCore per device: collapse the batch grid.
    return any(t in kind for t in ("v5e", "v5 lite", "v5lite", "v6"))


# --------------------------------------------------------------------------
# Public wrapper
# --------------------------------------------------------------------------
def baseline_with_attention(x_nchw, params, nheads):
    B, C, H, W = x_nchw.shape
    S = H * W
    D = params["wq"].shape[0]
    hd = D // nheads
    nclasses = params["wc"].shape[1]

    # NCHW -> (B, S, C) token matrices.
    x_tok = jnp.transpose(x_nchw.reshape(B, C, S), (0, 2, 1))

    wqkv, bqkv, woc, boc = _fuse_params(params, nheads)

    kind = _device_kind()
    use_bf16 = _supports_bf16_vector(kind)
    bb = B if _single_tensorcore(kind) else 1      # batch elements per grid step
    grid = (B // bb,)

    def full(shape):
        return pl.BlockSpec(shape, lambda i, _n=len(shape): (0,) * _n)

    flops = (2 * B * S * C * 3 * D                 # fused QKV projection
             + 2 * B * nheads * S * S * hd         # scores
             + 2 * B * nheads * S * hd             # mean(p) @ v
             + 2 * B * D * nclasses)               # folded out-proj + classifier
    bytes_accessed = 4 * (x_tok.size + wqkv.size + bqkv.size
                          + woc.size + boc.size + B * nclasses)
    cost = pl.CostEstimate(flops=int(flops),
                           transcendentals=int(B * nheads * S * S),
                           bytes_accessed=int(bytes_accessed))

    kernel = partial(baseline_attn_kernel, nheads=nheads, use_bf16=use_bf16)
    out = pl.pallas_call(
        kernel,
        out_shape=jax.ShapeDtypeStruct((B, 1, nclasses), jnp.float32),
        grid=grid,
        in_specs=[
            pl.BlockSpec((bb, S, C), lambda i: (i, 0, 0)),
            full((C, 3 * D)), full((1, 3 * D)),
            full((D, nclasses)), full((1, nclasses)),
        ],
        out_specs=pl.BlockSpec((bb, 1, nclasses), lambda i: (i, 0, 0)),
        compiler_params=pltpu.CompilerParams(
            dimension_semantics=("parallel",)),
        cost_estimate=cost,
    )(x_tok, wqkv, bqkv, woc, boc)
    return out[:, 0, :]                                                # (B, ncls)


# --------------------------------------------------------------------------
# Pure-JAX reference (unfused) and deterministic params
# --------------------------------------------------------------------------
def reference(x_nchw, params, nheads):
    B, C, H, W = x_nchw.shape
    S = H * W
    x_tok = jnp.transpose(x_nchw.reshape(B, C, S), (0, 2, 1))          # (B, S, C)
    f = x_tok @ params["cw"] + params["cb"]                            # (B, S, D)
    D = f.shape[-1]
    hd = D // nheads
    q = (f @ params["wq"] + params["bq"]).reshape(B, S, nheads, hd)
    k = (f @ params["wk"] + params["bk"]).reshape(B, S, nheads, hd)
    v = (f @ params["wv"] + params["bv"]).reshape(B, S, nheads, hd)
    s = jnp.einsum("bqhd,bkhd->bhqk", q * (hd ** -0.5), k)
    p = jax.nn.softmax(s, axis=-1)
    ctx = jnp.einsum("bhqk,bkhd->bqhd", p, v).reshape(B, S, D)
    o = ctx @ params["wo"] + params["bo"]                              # (B, S, D)
    m = jnp.mean(o, axis=1)                                            # (B, D)
    return m @ params["wc"] + params["bc"]                             # (B, ncls)


def make_params(key, C, D, nclasses):
    ks = jax.random.split(key, 13)
    s = 0.1
    return {
        "cw": s * jax.random.normal(ks[0], (C, D), jnp.float32),
        "cb": s * jax.random.normal(ks[1], (1, D), jnp.float32),
        "wq": s * jax.random.normal(ks[2], (D, D), jnp.float32),
        "bq": s * jax.random.normal(ks[3], (1, D), jnp.float32),
        "wk": s * jax.random.normal(ks[4], (D, D), jnp.float32),
        "bk": s * jax.random.normal(ks[5], (1, D), jnp.float32),
        "wv": s * jax.random.normal(ks[6], (D, D), jnp.float32),
        "bv": s * jax.random.normal(ks[7], (1, D), jnp.float32),
        "wo": s * jax.random.normal(ks[8], (D, D), jnp.float32),
        "bo": s * jax.random.normal(ks[9], (1, D), jnp.float32),
        "wc": s * jax.random.normal(ks[10], (D, nclasses), jnp.float32),
        "bc": s * jax.random.normal(ks[11], (1, nclasses), jnp.float32),
    }


if __name__ == "__main__":
    B, C, H, W = 2, 4, 16, 16          # input NCHW (extractor input)
    D = 32                             # feature_dim
    nheads = 4
    nclasses = 10

    key = jax.random.PRNGKey(0)
    kx, kp = jax.random.split(key)
    x = jax.random.normal(kx, (B, C, H, W), jnp.float32)
    params = make_params(kp, C, D, nclasses)

    out = jax.block_until_ready(baseline_with_attention(x, params, nheads))
    ref = jax.block_until_ready(reference(x, params, nheads))

    assert out.shape == (B, nclasses)
    max_err = float(jnp.max(jnp.abs(out - ref)))
    assert max_err < 5e-2, f"mismatch vs reference: {max_err}"

    print("KERNEL_OK")
</pallas_src>

<mosaic_0001>
module attributes {stable_mosaic.version = 11 : i64} {
  func.func @baseline_attn_kernel(%arg0: i32, %arg1: memref<1x256x4xf32, #tpu.memory_space<vmem>>, %arg2: memref<4x96xf32, #tpu.memory_space<vmem>>, %arg3: memref<1x96xf32, #tpu.memory_space<vmem>>, %arg4: memref<32x10xf32, #tpu.memory_space<vmem>>, %arg5: memref<1x10xf32, #tpu.memory_space<vmem>>, %arg6: memref<1x1x10xf32, #tpu.memory_space<vmem>>) attributes {dimension_semantics = [#tpu.dimension_semantics<parallel>], iteration_bounds = array<i64: 2>, scalar_prefetch = 0 : i64, scratch_operands = 0 : i64, tpu.core_type = #tpu.core_type<tc>, window_params = [{transform_indices = @transform_0, window_bounds = array<i64: 1, 256, 4>}, {pipeline_mode = #tpu.pipeline_mode<synchronous>, transform_indices = @transform_1, window_bounds = array<i64: 4, 96>}, {pipeline_mode = #tpu.pipeline_mode<synchronous>, transform_indices = @transform_2, window_bounds = array<i64: 1, 96>}, {pipeline_mode = #tpu.pipeline_mode<synchronous>, transform_indices = @transform_3, window_bounds = array<i64: 32, 10>}, {pipeline_mode = #tpu.pipeline_mode<synchronous>, transform_indices = @transform_4, window_bounds = array<i64: 1, 10>}, {transform_indices = @transform_5, window_bounds = array<i64: 1, 1, 10>}]} {
    %c0 = arith.constant 0 : index
    %c0_0 = arith.constant 0 : index
    %c0_1 = arith.constant 0 : index
    %0 = vector.load %arg1[%c0, %c0_0, %c0_1] : memref<1x256x4xf32, #tpu.memory_space<vmem>>, vector<1x256x4xf32>
    %1 = vector.shape_cast %0 : vector<1x256x4xf32> to vector<256x4xf32>
    %c0_2 = arith.constant 0 : index
    %c0_3 = arith.constant 0 : index
    %2 = vector.load %arg2[%c0_2, %c0_3] : memref<4x96xf32, #tpu.memory_space<vmem>>, vector<4x96xf32>
    %cst = arith.constant dense<0.000000e+00> : vector<256x96xf32>
    %3 = tpu.matmul %1, %2, %cst {dimension_numbers = #tpu.dot_dimension_numbers<[1], [0], [0], [1], [0, 0, 1, 1], [], []>} : vector<256x4xf32>, vector<4x96xf32>, vector<256x96xf32> -> vector<256x96xf32>
    %c0_4 = arith.constant 0 : index
    %c0_5 = arith.constant 0 : index
    %4 = vector.load %arg3[%c0_4, %c0_5] : memref<1x96xf32, #tpu.memory_space<vmem>>, vector<1x96xf32>
    %5 = vector.broadcast %4 : vector<1x96xf32> to vector<256x96xf32>
    %6 = arith.addf %3, %5 : vector<256x96xf32>
    %c0_6 = arith.constant 0 : index
    %c0_7 = arith.constant 0 : index
    %7 = vector.load %arg5[%c0_6, %c0_7] : memref<1x10xf32, #tpu.memory_space<vmem>>, vector<1x10xf32>
    %8 = vector.extract_strided_slice %6 {offsets = [0, 0], sizes = [256, 8], strides = [1, 1]} : vector<256x96xf32> to vector<256x8xf32>
    %9 = vector.extract_strided_slice %6 {offsets = [0, 32], sizes = [256, 8], strides = [1, 1]} : vector<256x96xf32> to vector<256x8xf32>
    %10 = vector.extract_strided_slice %6 {offsets = [0, 64], sizes = [256, 8], strides = [1, 1]} : vector<256x96xf32> to vector<256x8xf32>
    %11 = arith.truncf %8 : vector<256x8xf32> to vector<256x8xbf16>
    %12 = arith.truncf %9 : vector<256x8xf32> to vector<256x8xbf16>
    %cst_8 = arith.constant dense<0.000000e+00> : vector<256x256xf32>
    %13 = tpu.matmul %11, %12, %cst_8 {dimension_numbers = #tpu.dot_dimension_numbers<[1], [1], [0], [0], [0, 0, 1, 0], [], []>} : vector<256x8xbf16>, vector<256x8xbf16>, vector<256x256xf32> -> vector<256x256xf32>
    %cst_9 = arith.constant dense<0xFF800000> : vector<256xf32>
    %14 = vector.multi_reduction <maximumf>, %13, %cst_9 [1] : vector<256x256xf32> to vector<256xf32>
    %15 = vector.shape_cast %14 : vector<256xf32> to vector<256x1xf32>
    %16 = vector.broadcast %15 : vector<256x1xf32> to vector<256x256xf32>
    %17 = arith.subf %13, %16 : vector<256x256xf32>
    %18 = arith.truncf %17 : vector<256x256xf32> to vector<256x256xbf16>
    %19 = math.exp %18 : vector<256x256xbf16>
    %20 = arith.extf %19 : vector<256x256xbf16> to vector<256x256xf32>
    %cst_10 = arith.constant dense<0.000000e+00> : vector<256xf32>
    %21 = vector.multi_reduction <add>, %20, %cst_10 [1] : vector<256x256xf32> to vector<256xf32>
    %22 = vector.shape_cast %21 : vector<256xf32> to vector<256x1xf32>
    %23 = tpu.reciprocal %22 {approx = true} : vector<256x1xf32> -> vector<256x1xf32>
    %24 = vector.broadcast %23 : vector<256x1xf32> to vector<256x256xf32>
    %25 = arith.mulf %20, %24 : vector<256x256xf32>
    %cst_11 = arith.constant dense<0.000000e+00> : vector<256xf32>
    %26 = vector.multi_reduction <add>, %25, %cst_11 [0] : vector<256x256xf32> to vector<256xf32>
    %27 = vector.shape_cast %26 : vector<256xf32> to vector<1x256xf32>
    %cst_12 = arith.constant 2.560000e+02 : f32
    %28 = vector.broadcast %cst_12 : f32 to vector<1x256xf32>
    %29 = arith.divf %27, %28 : vector<1x256xf32>
    %cst_13 = arith.constant dense<0.000000e+00> : vector<1x8xf32>
    %30 = tpu.matmul %29, %10, %cst_13 {dimension_numbers = #tpu.dot_dimension_numbers<[1], [0], [0], [1], [0, 0, 1, 1], [], []>} : vector<1x256xf32>, vector<256x8xf32>, vector<1x8xf32> -> vector<1x8xf32>
    %c0_14 = arith.constant 0 : index
    %c0_15 = arith.constant 0 : index
    %31 = vector.load %arg4[%c0_14, %c0_15] : memref<32x10xf32, #tpu.memory_space<vmem>>, vector<8x10xf32>
    %cst_16 = arith.constant dense<0.000000e+00> : vector<1x10xf32>
    %32 = tpu.matmul %30, %31, %cst_16 {dimension_numbers = #tpu.dot_dimension_numbers<[1], [0], [0], [1], [0, 0, 1, 1], [], []>} : vector<1x8xf32>, vector<8x10xf32>, vector<1x10xf32> -> vector<1x10xf32>
    %33 = arith.addf %7, %32 : vector<1x10xf32>
    %34 = vector.extract_strided_slice %6 {offsets = [0, 8], sizes = [256, 8], strides = [1, 1]} : vector<256x96xf32> to vector<256x8xf32>
    %35 = vector.extract_strided_slice %6 {offsets = [0, 40], sizes = [256, 8], strides = [1, 1]} : vector<256x96xf32> to vector<256x8xf32>
    %36 = vector.extract_strided_slice %6 {offsets = [0, 72], sizes = [256, 8], strides = [1, 1]} : vector<256x96xf32> to vector<256x8xf32>
    %37 = arith.truncf %34 : vector<256x8xf32> to vector<256x8xbf16>
    %38 = arith.truncf %35 : vector<256x8xf32> to vector<256x8xbf16>
    %cst_17 = arith.constant dense<0.000000e+00> : vector<256x256xf32>
    %39 = tpu.matmul %37, %38, %cst_17 {dimension_numbers = #tpu.dot_dimension_numbers<[1], [1], [0], [0], [0, 0, 1, 0], [], []>} : vector<256x8xbf16>, vector<256x8xbf16>, vector<256x256xf32> -> vector<256x256xf32>
    %cst_18 = arith.constant dense<0xFF800000> : vector<256xf32>
    %40 = vector.multi_reduction <maximumf>, %39, %cst_18 [1] : vector<256x256xf32> to vector<256xf32>
    %41 = vector.shape_cast %40 : vector<256xf32> to vector<256x1xf32>
    %42 = vector.broadcast %41 : vector<256x1xf32> to vector<256x256xf32>
    %43 = arith.subf %39, %42 : vector<256x256xf32>
    %44 = arith.truncf %43 : vector<256x256xf32> to vector<256x256xbf16>
    %45 = math.exp %44 : vector<256x256xbf16>
    %46 = arith.extf %45 : vector<256x256xbf16> to vector<256x256xf32>
    %cst_19 = arith.constant dense<0.000000e+00> : vector<256xf32>
    %47 = vector.multi_reduction <add>, %46, %cst_19 [1] : vector<256x256xf32> to vector<256xf32>
    %48 = vector.shape_cast %47 : vector<256xf32> to vector<256x1xf32>
    %49 = tpu.reciprocal %48 {approx = true} : vector<256x1xf32> -> vector<256x1xf32>
    %50 = vector.broadcast %49 : vector<256x1xf32> to vector<256x256xf32>
    %51 = arith.mulf %46, %50 : vector<256x256xf32>
    %cst_20 = arith.constant dense<0.000000e+00> : vector<256xf32>
    %52 = vector.multi_reduction <add>, %51, %cst_20 [0] : vector<256x256xf32> to vector<256xf32>
    %53 = vector.shape_cast %52 : vector<256xf32> to vector<1x256xf32>
    %cst_21 = arith.constant 2.560000e+02 : f32
    %54 = vector.broadcast %cst_21 : f32 to vector<1x256xf32>
    %55 = arith.divf %53, %54 : vector<1x256xf32>
    %cst_22 = arith.constant dense<0.000000e+00> : vector<1x8xf32>
    %56 = tpu.matmul %55, %36, %cst_22 {dimension_numbers = #tpu.dot_dimension_numbers<[1], [0], [0], [1], [0, 0, 1, 1], [], []>} : vector<1x256xf32>, vector<256x8xf32>, vector<1x8xf32> -> vector<1x8xf32>
    %c8 = arith.constant 8 : index
    %c0_23 = arith.constant 0 : index
    %57 = vector.load %arg4[%c8, %c0_23] : memref<32x10xf32, #tpu.memory_space<vmem>>, vector<8x10xf32>
    %cst_24 = arith.constant dense<0.000000e+00> : vector<1x10xf32>
    %58 = tpu.matmul %56, %57, %cst_24 {dimension_numbers = #tpu.dot_dimension_numbers<[1], [0], [0], [1], [0, 0, 1, 1], [], []>} : vector<1x8xf32>, vector<8x10xf32>, vector<1x10xf32> -> vector<1x10xf32>
    %59 = arith.addf %33, %58 : vector<1x10xf32>
    %60 = vector.extract_strided_slice %6 {offsets = [0, 16], sizes = [256, 8], strides = [1, 1]} : vector<256x96xf32> to vector<256x8xf32>
    %61 = vector.extract_strided_slice %6 {offsets = [0, 48], sizes = [256, 8], strides = [1, 1]} : vector<256x96xf32> to vector<256x8xf32>
    %62 = vector.extract_strided_slice %6 {offsets = [0, 80], sizes = [256, 8], strides = [1, 1]} : vector<256x96xf32> to vector<256x8xf32>
    %63 = arith.truncf %60 : vector<256x8xf32> to vector<256x8xbf16>
    %64 = arith.truncf %61 : vector<256x8xf32> to vector<256x8xbf16>
    %cst_25 = arith.constant dense<0.000000e+00> : vector<256x256xf32>
    %65 = tpu.matmul %63, %64, %cst_25 {dimension_numbers = #tpu.dot_dimension_numbers<[1], [1], [0], [0], [0, 0, 1, 0], [], []>} : vector<256x8xbf16>, vector<256x8xbf16>, vector<256x256xf32> -> vector<256x256xf32>
    %cst_26 = arith.constant dense<0xFF800000> : vector<256xf32>
    %66 = vector.multi_reduction <maximumf>, %65, %cst_26 [1] : vector<256x256xf32> to vector<256xf32>
    %67 = vector.shape_cast %66 : vector<256xf32> to vector<256x1xf32>
    %68 = vector.broadcast %67 : vector<256x1xf32> to vector<256x256xf32>
    %69 = arith.subf %65, %68 : vector<256x256xf32>
    %70 = arith.truncf %69 : vector<256x256xf32> to vector<256x256xbf16>
    %71 = math.exp %70 : vector<256x256xbf16>
    %72 = arith.extf %71 : vector<256x256xbf16> to vector<256x256xf32>
    %cst_27 = arith.constant dense<0.000000e+00> : vector<256xf32>
    %73 = vector.multi_reduction <add>, %72, %cst_27 [1] : vector<256x256xf32> to vector<256xf32>
    %74 = vector.shape_cast %73 : vector<256xf32> to vector<256x1xf32>
    %75 = tpu.reciprocal %74 {approx = true} : vector<256x1xf32> -> vector<256x1xf32>
    %76 = vector.broadcast %75 : vector<256x1xf32> to vector<256x256xf32>
    %77 = arith.mulf %72, %76 : vector<256x256xf32>
    %cst_28 = arith.constant dense<0.000000e+00> : vector<256xf32>
    %78 = vector.multi_reduction <add>, %77, %cst_28 [0] : vector<256x256xf32> to vector<256xf32>
    %79 = vector.shape_cast %78 : vector<256xf32> to vector<1x256xf32>
    %cst_29 = arith.constant 2.560000e+02 : f32
    %80 = vector.broadcast %cst_29 : f32 to vector<1x256xf32>
    %81 = arith.divf %79, %80 : vector<1x256xf32>
    %cst_30 = arith.constant dense<0.000000e+00> : vector<1x8xf32>
    %82 = tpu.matmul %81, %62, %cst_30 {dimension_numbers = #tpu.dot_dimension_numbers<[1], [0], [0], [1], [0, 0, 1, 1], [], []>} : vector<1x256xf32>, vector<256x8xf32>, vector<1x8xf32> -> vector<1x8xf32>
    %c16 = arith.constant 16 : index
    %c0_31 = arith.constant 0 : index
    %83 = vector.load %arg4[%c16, %c0_31] : memref<32x10xf32, #tpu.memory_space<vmem>>, vector<8x10xf32>
    %cst_32 = arith.constant dense<0.000000e+00> : vector<1x10xf32>
    %84 = tpu.matmul %82, %83, %cst_32 {dimension_numbers = #tpu.dot_dimension_numbers<[1], [0], [0], [1], [0, 0, 1, 1], [], []>} : vector<1x8xf32>, vector<8x10xf32>, vector<1x10xf32> -> vector<1x10xf32>
    %85 = arith.addf %59, %84 : vector<1x10xf32>
    %86 = vector.extract_strided_slice %6 {offsets = [0, 24], sizes = [256, 8], strides = [1, 1]} : vector<256x96xf32> to vector<256x8xf32>
    %87 = vector.extract_strided_slice %6 {offsets = [0, 56], sizes = [256, 8], strides = [1, 1]} : vector<256x96xf32> to vector<256x8xf32>
    %88 = vector.extract_strided_slice %6 {offsets = [0, 88], sizes = [256, 8], strides = [1, 1]} : vector<256x96xf32> to vector<256x8xf32>
    %89 = arith.truncf %86 : vector<256x8xf32> to vector<256x8xbf16>
    %90 = arith.truncf %87 : vector<256x8xf32> to vector<256x8xbf16>
    %cst_33 = arith.constant dense<0.000000e+00> : vector<256x256xf32>
    %91 = tpu.matmul %89, %90, %cst_33 {dimension_numbers = #tpu.dot_dimension_numbers<[1], [1], [0], [0], [0, 0, 1, 0], [], []>} : vector<256x8xbf16>, vector<256x8xbf16>, vector<256x256xf32> -> vector<256x256xf32>
    %cst_34 = arith.constant dense<0xFF800000> : vector<256xf32>
    %92 = vector.multi_reduction <maximumf>, %91, %cst_34 [1] : vector<256x256xf32> to vector<256xf32>
    %93 = vector.shape_cast %92 : vector<256xf32> to vector<256x1xf32>
    %94 = vector.broadcast %93 : vector<256x1xf32> to vector<256x256xf32>
    %95 = arith.subf %91, %94 : vector<256x256xf32>
    %96 = arith.truncf %95 : vector<256x256xf32> to vector<256x256xbf16>
    %97 = math.exp %96 : vector<256x256xbf16>
    %98 = arith.extf %97 : vector<256x256xbf16> to vector<256x256xf32>
    %cst_35 = arith.constant dense<0.000000e+00> : vector<256xf32>
    %99 = vector.multi_reduction <add>, %98, %cst_35 [1] : vector<256x256xf32> to vector<256xf32>
    %100 = vector.shape_cast %99 : vector<256xf32> to vector<256x1xf32>
    %101 = tpu.reciprocal %100 {approx = true} : vector<256x1xf32> -> vector<256x1xf32>
    %102 = vector.broadcast %101 : vector<256x1xf32> to vector<256x256xf32>
    %103 = arith.mulf %98, %102 : vector<256x256xf32>
    %cst_36 = arith.constant dense<0.000000e+00> : vector<256xf32>
    %104 = vector.multi_reduction <add>, %103, %cst_36 [0] : vector<256x256xf32> to vector<256xf32>
    %105 = vector.shape_cast %104 : vector<256xf32> to vector<1x256xf32>
    %cst_37 = arith.constant 2.560000e+02 : f32
    %106 = vector.broadcast %cst_37 : f32 to vector<1x256xf32>
    %107 = arith.divf %105, %106 : vector<1x256xf32>
    %cst_38 = arith.constant dense<0.000000e+00> : vector<1x8xf32>
    %108 = tpu.matmul %107, %88, %cst_38 {dimension_numbers = #tpu.dot_dimension_numbers<[1], [0], [0], [1], [0, 0, 1, 1], [], []>} : vector<1x256xf32>, vector<256x8xf32>, vector<1x8xf32> -> vector<1x8xf32>
    %c24 = arith.constant 24 : index
    %c0_39 = arith.constant 0 : index
    %109 = vector.load %arg4[%c24, %c0_39] : memref<32x10xf32, #tpu.memory_space<vmem>>, vector<8x10xf32>
    %cst_40 = arith.constant dense<0.000000e+00> : vector<1x10xf32>
    %110 = tpu.matmul %108, %109, %cst_40 {dimension_numbers = #tpu.dot_dimension_numbers<[1], [0], [0], [1], [0, 0, 1, 1], [], []>} : vector<1x8xf32>, vector<8x10xf32>, vector<1x10xf32> -> vector<1x10xf32>
    %111 = arith.addf %85, %110 : vector<1x10xf32>
    %c0_41 = arith.constant 0 : index
    %c0_42 = arith.constant 0 : index
    %c0_43 = arith.constant 0 : index
    %112 = vector.load %arg6[%c0_41, %c0_42, %c0_43] : memref<1x1x10xf32, #tpu.memory_space<vmem>>, vector<1x1x10xf32>
    %113 = vector.shape_cast %112 : vector<1x1x10xf32> to vector<1x10xf32>
    %114 = vector.shape_cast %111 : vector<1x10xf32> to vector<1x1x10xf32>
    tpu.vector_store %arg6[%c0_41, %c0_42, %c0_43], %114 {strides = array<i32>} : memref<1x1x10xf32, #tpu.memory_space<vmem>>, vector<1x1x10xf32>,
    return
  }
  func.func @transform_0(%arg0: i32) -> (i32, i32, i32) {
    %c0_i32 = arith.constant 0 : i32
    %c0_i32_0 = arith.constant 0 : i32
    %c0_i32_1 = arith.constant 0 : i32
    return %arg0, %c0_i32, %c0_i32_0 : i32, i32, i32
  }
  func.func @transform_1(%arg0: i32) -> (i32, i32) {
    %c0_i32 = arith.constant 0 : i32
    %c0_i32_0 = arith.constant 0 : i32
    %c0_i32_1 = arith.constant 0 : i32
    return %c0_i32, %c0_i32_0 : i32, i32
  }
  func.func @transform_2(%arg0: i32) -> (i32, i32) {
    %c0_i32 = arith.constant 0 : i32
    %c0_i32_0 = arith.constant 0 : i32
    %c0_i32_1 = arith.constant 0 : i32
    return %c0_i32, %c0_i32_0 : i32, i32
  }
  func.func @transform_3(%arg0: i32) -> (i32, i32) {
    %c0_i32 = arith.constant 0 : i32
    %c0_i32_0 = arith.constant 0 : i32
    %c0_i32_1 = arith.constant 0 : i32
    return %c0_i32, %c0_i32_0 : i32, i32
  }
  func.func @transform_4(%arg0: i32) -> (i32, i32) {
    %c0_i32 = arith.constant 0 : i32
    %c0_i32_0 = arith.constant 0 : i32
    %c0_i32_1 = arith.constant 0 : i32
    return %c0_i32, %c0_i32_0 : i32, i32
  }
  func.func @transform_5(%arg0: i32) -> (i32, i32, i32) {
    %c0_i32 = arith.constant 0 : i32
    %c0_i32_0 = arith.constant 0 : i32
    %c0_i32_1 = arith.constant 0 : i32
    return %arg0, %c0_i32, %c0_i32_0 : i32, i32, i32
  }
}

</mosaic_0001>

<llo_original>
// kernel: tpu_custom_call.1
$region0: #{tpu_custom_call.1}
  #allocation0 [shape = 'u32[]', space=smem, size = 0x4, offset = 0x4, fixed_abs, tag = 'smem constant byte address 0x4 - core index']
  #allocation1 [shape = 'u32[144,128]{1,0:T(1,128)}', space=vmem, size = 0x12000, scoped, tag = 'internal scratch']
  %s0 = inlined_call_operand.vmem [shape: f32[2,256,4], index: 0, kind: input, shape index: {}]
  %s1 = inlined_call_operand.vmem [shape: f32[4,96], index: 1, kind: input, shape index: {}]
  %s2 = inlined_call_operand.vmem [shape: f32[1,96], index: 2, kind: input, shape index: {}]
  %s3 = inlined_call_operand.vmem [shape: f32[32,10], index: 3, kind: input, shape index: {}]
  %s4 = inlined_call_operand.vmem [shape: f32[1,10], index: 4, kind: input, shape index: {}]
  %s5 = inlined_call_operand.hbm [shape: f32[2,1,10], index: 5, kind: output, shape index: {}]
  %s6 = sld [smem:[#allocation0]]
  $region53: #{tpu_custom_call.1} parent=0
    _
  %s8 = ssub.s32 1, %s6
  %s9 = scalar_select 0, %s8, %s6
  $region1: #{tpu_custom_call.1} parent=0
    #allocation2 [shape = 'u8[1024]{0}', space=vmem, size = 0x400, scoped, tag = 'output window, operand 0']
    #allocation3 [shape = 's32[2]{0}', space=sflag, size = 0x8, scoped, tag = 'scoped memory for tpu_custom_call.1']
    %10 = vsyncpa [#allocation3], 0
    %s11 = scalar_lea.sflag [#allocation3], 1
    %12 = vsyncpa %s11, 0
    loop: start=0, step=1, limit=4
    $region2: #{tpu_custom_call.1} parent=1 // loop_pre_header
      _
    $region3: #{tpu_custom_call.1} parent=1 // loop_header
      %s14 = sphi 0, %s18
      %p15 = scmp.ge.s32.totalorder %s14, 4
      %s24 = sphi 0, %s26
      %s27 = sphi 0, %s24
      %s28 = sphi 0, %s27
      %s44 = sphi 0, %s28
      %s48 = sphi 0, %s48
      %s50 = sphi 0, %s48
      %s51 = sphi 0, %s50
      %s65 = sphi 0, %s51
      %s69 = sphi 0, %s69
      %s71 = sphi 0, %s69
      %s72 = sphi 0, %s71
      %s86 = sphi 0, %s72
      %s90 = sphi 0, %s90
      %s92 = sphi 0, %s90
      %s93 = sphi 0, %s92
      %s107 = sphi 0, %s93
      %s111 = sphi 0, %s111
      %s113 = sphi 0, %s111
      %s114 = sphi 0, %s113
      %s128 = sphi 0, %s114
      %s134 = sphi 0, %s136
      %s137 = sphi 0, %s134
      %s138 = sphi 0, %s137
      %s154 = sphi 0, %s138
    $region4: #{tpu_custom_call.1} parent=1 // loop_header_branch
      %17 = sbr.rel (%p15) target = $region8
    $region5: #{tpu_custom_call.1} parent=1 // loop_body
      %s19 = ssub.s32 %s14, 1
      %s20 = ssub.s32 %s14, 2
      %s21 = sadd.s32 %s14, 1
      %s22 = ssub.s32 %s14, %s21
      %p23 = scmp.eq.s32.totalorder %s22, 0
      %s25 = sadd.s32 %s24, 1
      %s26 = scalar_select %p23, %s24, %s25
      %p29 = pneg %p23
      %p30 = scmp.eq.s32.totalorder %s14, 1
      %p31 = por %p29, %p30
      %p32 = scmp.ne.s32.totalorder %s24, %s27
      %p33 = scmp.eq.s32.totalorder %s14, 0
      %p34 = por %p32, %p33
      %p35 = scmp.ne.s32.totalorder %s24, %s27
      %p36 = scmp.eq.s32.totalorder %s19, 1
      %p37 = por %p35, %p36
      %p38 = scmp.ne.s32.totalorder %s27, %s28
      %p39 = scmp.eq.s32.totalorder %s19, 0
      %p40 = por %p38, %p39
      %p41 = scmp.ne.s32.totalorder %s27, %s28
      %p42 = scmp.eq.s32.totalorder %s20, 1
      %p43 = por %p41, %p42
      %p45 = scmp.ne.s32.totalorder %s28, %s44
      %p46 = scmp.eq.s32.totalorder %s20, 0
      %p47 = por %p45, %p46
      %s49 = sadd.s32 %s48, 1
      %p52 = scmp.eq.s32.totalorder %s14, 1
      %p53 = scmp.ne.s32.totalorder %s48, %s50
      %p54 = scmp.eq.s32.totalorder %s14, 0
      %p55 = por %p53, %p54
      %p56 = scmp.ne.s32.totalorder %s48, %s50
      %p57 = scmp.eq.s32.totalorder %s19, 1
      %p58 = por %p56, %p57
      %p59 = scmp.ne.s32.totalorder %s50, %s51
      %p60 = scmp.eq.s32.totalorder %s19, 0
      %p61 = por %p59, %p60
      %p62 = scmp.ne.s32.totalorder %s50, %s51
      %p63 = scmp.eq.s32.totalorder %s20, 1
      %p64 = por %p62, %p63
      %p66 = scmp.ne.s32.totalorder %s51, %s65
      %p67 = scmp.eq.s32.totalorder %s20, 0
      %p68 = por %p66, %p67
      %s70 = sadd.s32 %s69, 1
      %p73 = scmp.eq.s32.totalorder %s14, 1
      %p74 = scmp.ne.s32.totalorder %s69, %s71
      %p75 = scmp.eq.s32.totalorder %s14, 0
      %p76 = por %p74, %p75
      %p77 = scmp.ne.s32.totalorder %s69, %s71
      %p78 = scmp.eq.s32.totalorder %s19, 1
      %p79 = por %p77, %p78
      %p80 = scmp.ne.s32.totalorder %s71, %s72
      %p81 = scmp.eq.s32.totalorder %s19, 0
      %p82 = por %p80, %p81
      %p83 = scmp.ne.s32.totalorder %s71, %s72
      %p84 = scmp.eq.s32.totalorder %s20, 1
      %p85 = por %p83, %p84
      %p87 = scmp.ne.s32.totalorder %s72, %s86
      %p88 = scmp.eq.s32.totalorder %s20, 0
      %p89 = por %p87, %p88
      %s91 = sadd.s32 %s90, 1
      %p94 = scmp.eq.s32.totalorder %s14, 1
      %p95 = scmp.ne.s32.totalorder %s90, %s92
      %p96 = scmp.eq.s32.totalorder %s14, 0
      %p97 = por %p95, %p96
      %p98 = scmp.ne.s32.totalorder %s90, %s92
      %p99 = scmp.eq.s32.totalorder %s19, 1
      %p100 = por %p98, %p99
      %p101 = scmp.ne.s32.totalorder %s92, %s93
      %p102 = scmp.eq.s32.totalorder %s19, 0
      %p103 = por %p101, %p102
      %p104 = scmp.ne.s32.totalorder %s92, %s93
      %p105 = scmp.eq.s32.totalorder %s20, 1
      %p106 = por %p104, %p105
      %p108 = scmp.ne.s32.totalorder %s93, %s107
      %p109 = scmp.eq.s32.totalorder %s20, 0
      %p110 = por %p108, %p109
      %s112 = sadd.s32 %s111, 1
      %p115 = scmp.eq.s32.totalorder %s14, 1
      %p116 = scmp.ne.s32.totalorder %s111, %s113
      %p117 = scmp.eq.s32.totalorder %s14, 0
      %p118 = por %p116, %p117
      %p119 = scmp.ne.s32.totalorder %s111, %s113
      %p120 = scmp.eq.s32.totalorder %s19, 1
      %p121 = por %p119, %p120
      %p122 = scmp.ne.s32.totalorder %s113, %s114
      %p123 = scmp.eq.s32.totalorder %s19, 0
      %p124 = por %p122, %p123
      %p125 = scmp.ne.s32.totalorder %s113, %s114
      %p126 = scmp.eq.s32.totalorder %s20, 1
      %p127 = por %p125, %p126
      %p129 = scmp.ne.s32.totalorder %s114, %s128
      %p130 = scmp.eq.s32.totalorder %s20, 0
      %p131 = por %p129, %p130
      %s132 = ssub.s32 %s14, %s21
      %p133 = scmp.eq.s32.totalorder %s132, 0
      %s135 = sadd.s32 %s134, 1
      %s136 = scalar_select %p133, %s134, %s135
      %p139 = pneg %p133
      %p140 = scmp.eq.s32.totalorder %s14, 1
      %p141 = por %p139, %p140
      %p142 = scmp.ne.s32.totalorder %s134, %s137
      %p143 = scmp.eq.s32.totalorder %s14, 0
      %p144 = por %p142, %p143
      %p145 = scmp.ne.s32.totalorder %s134, %s137
      %p146 = scmp.eq.s32.totalorder %s19, 1
      %p147 = por %p145, %p146
      %p148 = scmp.ne.s32.totalorder %s137, %s138
      %p149 = scmp.eq.s32.totalorder %s19, 0
      %p150 = por %p148, %p149
      %p151 = scmp.ne.s32.totalorder %s137, %s138
      %p152 = scmp.eq.s32.totalorder %s20, 1
      %p153 = por %p151, %p152
      %p155 = scmp.ne.s32.totalorder %s138, %s154
      %p156 = scmp.eq.s32.totalorder %s20, 0
      %p157 = por %p155, %p156
      %p158 = scmp.le.s32.totalorder 1, %s14
      %p159 = scmp.lt.s32.totalorder %s14, 3
      %p160 = pnand %p158, %p159
      %p161 = pneg %p160
      // Predicated region
      $region9: #{tpu_custom_call.1} parent=5 // pred_check
        _
      $region10: #{tpu_custom_call.1} parent=5 // pred_check_branch
        %163 = sbr.rel (%p160) target = $region12
      $region11: #{tpu_custom_call.1} parent=5 // pred_region
        %s164 = ssub.s32 %s14, 1
        // Predicated region
        $region13: #{tpu_custom_call.1} parent=11 // pred_check
          %p165 = pneg %p61
        $region14: #{tpu_custom_call.1} parent=11 // pred_check_branch
          %167 = sbr.rel (%p165) target = $region16
        $region15: #{tpu_custom_call.1} parent=11 // pred_region
          _
        $region16: #{tpu_custom_call.1} parent=11 // pred_fallthru
          _
        // Predicated region
        $region17: #{tpu_custom_call.1} parent=11 // pred_check
          %p168 = pneg %p82
        $region18: #{tpu_custom_call.1} parent=11 // pred_check_branch
          %170 = sbr.rel (%p168) target = $region20
        $region19: #{tpu_custom_call.1} parent=11 // pred_region
          _
        $region20: #{tpu_custom_call.1} parent=11 // pred_fallthru
          _
        // Predicated region
        $region21: #{tpu_custom_call.1} parent=11 // pred_check
          %p171 = pneg %p103
        $region22: #{tpu_custom_call.1} parent=11 // pred_check_branch
          %173 = sbr.rel (%p171) target = $region24
        $region23: #{tpu_custom_call.1} parent=11 // pred_region
          _
        $region24: #{tpu_custom_call.1} parent=11 // pred_fallthru
          _
        // Predicated region
        $region25: #{tpu_custom_call.1} parent=11 // pred_check
          %p174 = pneg %p124
        $region26: #{tpu_custom_call.1} parent=11 // pred_check_branch
          %176 = sbr.rel (%p174) target = $region28
        $region27: #{tpu_custom_call.1} parent=11 // pred_region
          _
        $region28: #{tpu_custom_call.1} parent=11 // pred_fallthru
          _
      $region12: #{tpu_custom_call.1} parent=5 // pred_fallthru
        _
      %p177 = scmp.lt.s32.totalorder %s14, 2
      // Predicated region
      $region29: #{tpu_custom_call.1} parent=5 // pred_check
        %p178 = pneg %p177
      $region30: #{tpu_custom_call.1} parent=5 // pred_check_branch
        %180 = sbr.rel (%p178) target = $region32
      $region31: #{tpu_custom_call.1} parent=5 // pred_region
        // Predicated region
        $region33: #{tpu_custom_call.1} parent=31 // pred_check
          %p181 = pneg %p34
        $region34: #{tpu_custom_call.1} parent=31 // pred_check_branch
          %183 = sbr.rel (%p181) target = $region36
        $region35: #{tpu_custom_call.1} parent=31 // pred_region
          %p184 = scmp.lt.s32.totalorder %s14, 1
          %s185 = scalar_select %p184, %s14, 1
          %s186 = smul.addr %s185, 32
          %s187 = smul.addr %s186, 8
          %s188 = scalar_lea.vmem %s0, %s187
        $region36: #{tpu_custom_call.1} parent=31 // pred_fallthru
          _
      $region32: #{tpu_custom_call.1} parent=5 // pred_fallthru
        _
      %p189 = scmp.le.s32.totalorder 1, %s14
      %p190 = scmp.lt.s32.totalorder %s14, 3
      %p191 = pnand %p189, %p190
      %p192 = pneg %p191
      // Predicated region
      $region37: #{tpu_custom_call.1} parent=5 // pred_check
        _
      $region38: #{tpu_custom_call.1} parent=5 // pred_check_branch
        %194 = sbr.rel (%p191) target = $region40
      $region39: #{tpu_custom_call.1} parent=5 // pred_region
        %s195 = ssub.s32 %s14, 1
        %p196 = scmp.lt.s32.totalorder %s19, 1
        %s197 = scalar_select %p196, %s19, 1
        %s198 = smul.addr %s197, 32
        %s199 = smul.addr %s198, 8
        %s200 = scalar_lea.vmem %s0, %s199
        %p201 = pneg %p40
        %p202 = pneg %p37
        %p203 = pneg %p61
        %p204 = pneg %p58
        %p205 = pneg %p82
        %p206 = pneg %p79
        %p207 = pneg %p103
        %p208 = pneg %p100
        %p209 = pneg %p124
        %p210 = pneg %p121
        %p211 = pneg %p150
        %p212 = pneg %p147
        %s213 = sand.u32 %s137, 1
        %s214 = scalar_lea.sflag [#allocation3], %s213
        %s215 = sand.u32 %s137, 1
        %s216 = scalar_lea.vmem [#allocation2], %s215
        %p217 = scmp.lt.s32.totalorder %s19, 1
        %s218 = scalar_select %p217, %s19, 1
        %s219 = smul.addr %s218, 32
        %s220 = smul.addr %s219, 8
        %s221 = scalar_lea.vmem %s0, %s220
        %v223 = vld [vmem:[%s221] sm:$0xff]
        %v224 = vld [vmem:[%s221 + $0x8] sm:$0xff]
        %v225 = vld [vmem:[%s221 + $0x10] sm:$0xff]
        %v226 = vld [vmem:[%s221 + $0x18] sm:$0xff]
        %v227 = vld [vmem:[%s221 + $0x20] sm:$0xff]
        %v228 = vld [vmem:[%s221 + $0x28] sm:$0xff]
        %v229 = vld [vmem:[%s221 + $0x30] sm:$0xff]
        %v230 = vld [vmem:[%s221 + $0x38] sm:$0xff]
        %v231 = vld [vmem:[%s221 + $0x40] sm:$0xff]
        %v232 = vld [vmem:[%s221 + $0x48] sm:$0xff]
        %v233 = vld [vmem:[%s221 + $0x50] sm:$0xff]
        %v234 = vld [vmem:[%s221 + $0x58] sm:$0xff]
        %v235 = vld [vmem:[%s221 + $0x60] sm:$0xff]
        %v236 = vld [vmem:[%s221 + $0x68] sm:$0xff]
        %v237 = vld [vmem:[%s221 + $0x70] sm:$0xff]
        %v238 = vld [vmem:[%s221 + $0x78] sm:$0xff]
        %v239 = vld [vmem:[%s221 + $0x80] sm:$0xff]
        %v240 = vld [vmem:[%s221 + $0x88] sm:$0xff]
        %v241 = vld [vmem:[%s221 + $0x90] sm:$0xff]
        %v242 = vld [vmem:[%s221 + $0x98] sm:$0xff]
        %v243 = vld [vmem:[%s221 + $0xa0] sm:$0xff]
        %v244 = vld [vmem:[%s221 + $0xa8] sm:$0xff]
        %v245 = vld [vmem:[%s221 + $0xb0] sm:$0xff]
        %v246 = vld [vmem:[%s221 + $0xb8] sm:$0xff]
        %v247 = vld [vmem:[%s221 + $0xc0] sm:$0xff]
        %v248 = vld [vmem:[%s221 + $0xc8] sm:$0xff]
        %v249 = vld [vmem:[%s221 + $0xd0] sm:$0xff]
        %v250 = vld [vmem:[%s221 + $0xd8] sm:$0xff]
        %v251 = vld [vmem:[%s221 + $0xe0] sm:$0xff]
        %v252 = vld [vmem:[%s221 + $0xe8] sm:$0xff]
        %v253 = vld [vmem:[%s221 + $0xf0] sm:$0xff]
        %v254 = vld [vmem:[%s221 + $0xf8] sm:$0xff]
        %v255 = vld [vmem:[%s1] sm:$0xf]
        %v256 = vld [vmem:[%s2] sm:$0x1]
        %v258 = vlaneseq
        %v259 = vshrl.u32 %v258, 7
        %v260 = vsub.s32 0, %v259
        %v261 = vrot.slane %v256, %v260
        %vm263 = vcmask 31744
        %v265 = vsel %vm263, %v223, 0
        %v268 = vsel %vm263, %v224, 0
        %v271 = vsel %vm263, %v225, 0
        %v274 = vsel %vm263, %v226, 0
        %v277 = vsel %vm263, %v227, 0
        %v280 = vsel %vm263, %v228, 0
        %v283 = vsel %vm263, %v229, 0
        %v286 = vsel %vm263, %v230, 0
        %v289 = vsel %vm263, %v231, 0
        %v292 = vsel %vm263, %v232, 0
        %v295 = vsel %vm263, %v233, 0
        %v298 = vsel %vm263, %v234, 0
        %v301 = vsel %vm263, %v235, 0
        %v304 = vsel %vm263, %v236, 0
        %v307 = vsel %vm263, %v237, 0
        %v310 = vsel %vm263, %v238, 0
        %v313 = vsel %vm263, %v239, 0
        %v316 = vsel %vm263, %v240, 0
        %v319 = vsel %vm263, %v241, 0
        %v322 = vsel %vm263, %v242, 0
        %v325 = vsel %vm263, %v243, 0
        %v328 = vsel %vm263, %v244, 0
        %v331 = vsel %vm263, %v245, 0
        %v334 = vsel %vm263, %v246, 0
        %v337 = vsel %vm263, %v247, 0
        %v340 = vsel %vm263, %v248, 0
        %v343 = vsel %vm263, %v249, 0
        %v346 = vsel %vm263, %v250, 0
        %v349 = vsel %vm263, %v251, 0
        %v352 = vsel %vm263, %v252, 0
        %v355 = vsel %vm263, %v253, 0
        %v358 = vsel %vm263, %v254, 0
        %vm360 = vcmask 1043456
        %v362 = vsel %vm360, %v255, 0
        %364 = vmatprep.subr.mxu0 0.0
        %365 = vmatpush1.msra.mxu0 0.0
        %366 = vmatprep.subr.mxu0 0.0
        %367 = vmatpush1.msra.mxu0 0.0
        %368 = vmatprep.subr.mxu0 0.0
        %369 = vmatpush1.msra.mxu0 0.0
        %370 = vmatprep.subr.mxu0 0.0
        %371 = vmatpush1.msra.mxu0 0.0
        %372 = vmatprep.subr.mxu0 0.0
        %373 = vmatpush1.msra.mxu0 0.0
        %374 = vmatprep.subr.mxu0 0.0
        %375 = vmatpush1.msra.mxu0 0.0
        %376 = vmatprep.subr.mxu0 0.0
        %377 = vmatpush1.msra.mxu0 0.0
        %378 = vmatprep.subr.mxu0 0.0
        %379 = vmatpush1.msra.mxu0 0.0
        %380 = vmatprep.subr.mxu0 0.0
        %381 = vmatpush1.msra.mxu0 0.0
        %382 = vmatprep.subr.mxu0 0.0
        %383 = vmatpush1.msra.mxu0 0.0
        %384 = vmatprep.subr.mxu0 0.0
        %385 = vmatpush1.msra.mxu0 0.0
        %386 = vmatprep.subr.mxu0 0.0
        %387 = vmatpush1.msra.mxu0 0.0
        %388 = vmatprep.subr.mxu0 0.0
        %389 = vmatpush1.msra.mxu0 0.0
        %390 = vmatprep.subr.mxu0 0.0
        %391 = vmatpush1.msra.mxu0 0.0
        %392 = vmatprep.subr.mxu0 0.0
        %393 = vmatpush1.msra.mxu0 0.0
        %394 = vmatprep.subr.mxu0 0.0
        %395 = vmatpush1.msra.mxu0 %v362
        %396 = vmatprep.subr.mxu0 0.0
        %397 = vmatpush2.msra.mxu0 0.0
        %398 = vmatprep.subr.mxu0 0.0
        %399 = vmatpush2.msra.mxu0 0.0
        %400 = vmatprep.subr.mxu0 0.0
        %401 = vmatpush2.msra.mxu0 0.0
        %402 = vmatprep.subr.mxu0 0.0
        %403 = vmatpush2.msra.mxu0 0.0
        %404 = vmatprep.subr.mxu0 0.0
        %405 = vmatpush2.msra.mxu0 0.0
        %406 = vmatprep.subr.mxu0 0.0
        %407 = vmatpush2.msra.mxu0 0.0
        %408 = vmatprep.subr.mxu0 0.0
        %409 = vmatpush2.msra.mxu0 0.0
        %410 = vmatprep.subr.mxu0 0.0
        %411 = vmatpush2.msra.mxu0 0.0
        %412 = vmatprep.subr.mxu0 0.0
        %413 = vmatpush2.msra.mxu0 0.0
        %414 = vmatprep.subr.mxu0 0.0
        %415 = vmatpush2.msra.mxu0 0.0
        %416 = vmatprep.subr.mxu0 0.0
        %417 = vmatpush2.msra.mxu0 0.0
        %418 = vmatprep.subr.mxu0 0.0
        %419 = vmatpush2.msra.mxu0 0.0
        %420 = vmatprep.subr.mxu0 0.0
        %421 = vmatpush2.msra.mxu0 0.0
        %422 = vmatprep.subr.mxu0 0.0
        %423 = vmatpush2.msra.mxu0 0.0
        %424 = vmatprep.subr.mxu0 0.0
        %425 = vmatpush2.msra.mxu0 0.0
        %426 = vmatprep.subr.mxu0 0.0
        %427 = vmatpush2.msra.mxu0 0.0
        %428 = vmatprep.mubr.f32.mxu0 0.0
        %429 = vmatmul.mubr.f32.gmra.mxu0 %v265
        %v430 = vpop.f32.mrf.mxu0
        %v431 = vadd.f32 %v261, %v430
        %v432 = vpop.f32.mrf.mxu0
        %433 = vmatprep.mubr.f32.mxu0 0.0
        %434 = vmatmul.mubr.f32.gmra.mxu0 %v268
        %v435 = vpop.f32.mrf.mxu0
        %v436 = vadd.f32 %v261, %v435
        %v437 = vpop.f32.mrf.mxu0
        %438 = vmatprep.mubr.f32.mxu0 0.0
        %439 = vmatmul.mubr.f32.gmra.mxu0 %v271
        %v440 = vpop.f32.mrf.mxu0
        %v441 = vadd.f32 %v261, %v440
        %v442 = vpop.f32.mrf.mxu0
        %443 = vmatprep.mubr.f32.mxu0 0.0
        %444 = vmatmul.mubr.f32.gmra.mxu0 %v274
        %v445 = vpop.f32.mrf.mxu0
        %v446 = vadd.f32 %v261, %v445
        %v447 = vpop.f32.mrf.mxu0
        %448 = vmatprep.mubr.f32.mxu0 0.0
        %449 = vmatmul.mubr.f32.gmra.mxu0 %v277
        %v450 = vpop.f32.mrf.mxu0
        %v451 = vadd.f32 %v261, %v450
        %v452 = vpop.f32.mrf.mxu0
        %453 = vmatprep.mubr.f32.mxu0 0.0
        %454 = vmatmul.mubr.f32.gmra.mxu0 %v280
        %v455 = vpop.f32.mrf.mxu0
        %v456 = vadd.f32 %v261, %v455
        %v457 = vpop.f32.mrf.mxu0
        %458 = vmatprep.mubr.f32.mxu0 0.0
        %459 = vmatmul.mubr.f32.gmra.mxu0 %v283
        %v460 = vpop.f32.mrf.mxu0
        %v461 = vadd.f32 %v261, %v460
        %v462 = vpop.f32.mrf.mxu0
        %463 = vmatprep.mubr.f32.mxu0 0.0
        %464 = vmatmul.mubr.f32.gmra.mxu0 %v286
        %v465 = vpop.f32.mrf.mxu0
        %v466 = vadd.f32 %v261, %v465
        %v467 = vpop.f32.mrf.mxu0
        %468 = vmatprep.mubr.f32.mxu0 0.0
        %469 = vmatmul.mubr.f32.gmra.mxu0 %v289
        %v470 = vpop.f32.mrf.mxu0
        %v471 = vadd.f32 %v261, %v470
        %v472 = vpop.f32.mrf.mxu0
        %473 = vmatprep.mubr.f32.mxu0 0.0
        %474 = vmatmul.mubr.f32.gmra.mxu0 %v292
        %v475 = vpop.f32.mrf.mxu0
        %v476 = vadd.f32 %v261, %v475
        %v477 = vpop.f32.mrf.mxu0
        %478 = vmatprep.mubr.f32.mxu0 0.0
        %479 = vmatmul.mubr.f32.gmra.mxu0 %v295
        %v480 = vpop.f32.mrf.mxu0
        %v481 = vadd.f32 %v261, %v480
        %v482 = vpop.f32.mrf.mxu0
        %483 = vmatprep.mubr.f32.mxu0 0.0
        %484 = vmatmul.mubr.f32.gmra.mxu0 %v298
        %v485 = vpop.f32.mrf.mxu0
        %v486 = vadd.f32 %v261, %v485
        %v487 = vpop.f32.mrf.mxu0
        %488 = vmatprep.mubr.f32.mxu0 0.0
        %489 = vmatmul.mubr.f32.gmra.mxu0 %v301
        %v490 = vpop.f32.mrf.mxu0
        %v491 = vadd.f32 %v261, %v490
        %v492 = vpop.f32.mrf.mxu0
        %493 = vmatprep.mubr.f32.mxu0 0.0
        %494 = vmatmul.mubr.f32.gmra.mxu0 %v304
        %v495 = vpop.f32.mrf.mxu0
        %v496 = vadd.f32 %v261, %v495
        %v497 = vpop.f32.mrf.mxu0
        %498 = vmatprep.mubr.f32.mxu0 0.0
        %499 = vmatmul.mubr.f32.gmra.mxu0 %v307
        %v500 = vpop.f32.mrf.mxu0
        %v501 = vadd.f32 %v261, %v500
        %v502 = vpop.f32.mrf.mxu0
        %503 = vmatprep.mubr.f32.mxu0 0.0
        %504 = vmatmul.mubr.f32.gmra.mxu0 %v310
        %v505 = vpop.f32.mrf.mxu0
        %v506 = vadd.f32 %v261, %v505
        %v507 = vpop.f32.mrf.mxu0
        %508 = vmatprep.mubr.f32.mxu0 0.0
        %509 = vmatmul.mubr.f32.gmra.mxu0 %v313
        %v510 = vpop.f32.mrf.mxu0
        %v511 = vadd.f32 %v261, %v510
        %v512 = vpop.f32.mrf.mxu0
        %513 = vmatprep.mubr.f32.mxu0 0.0
        %514 = vmatmul.mubr.f32.gmra.mxu0 %v316
        %v515 = vpop.f32.mrf.mxu0
        %v516 = vadd.f32 %v261, %v515
        %v517 = vpop.f32.mrf.mxu0
        %518 = vmatprep.mubr.f32.mxu0 0.0
        %519 = vmatmul.mubr.f32.gmra.mxu0 %v319
        %v520 = vpop.f32.mrf.mxu0
        %v521 = vadd.f32 %v261, %v520
        %v522 = vpop.f32.mrf.mxu0
        %523 = vmatprep.mubr.f32.mxu0 0.0
        %524 = vmatmul.mubr.f32.gmra.mxu0 %v322
        %v525 = vpop.f32.mrf.mxu0
        %v526 = vadd.f32 %v261, %v525
        %v527 = vpop.f32.mrf.mxu0
        %528 = vmatprep.mubr.f32.mxu0 0.0
        %529 = vmatmul.mubr.f32.gmra.mxu0 %v325
        %v530 = vpop.f32.mrf.mxu0
        %v531 = vadd.f32 %v261, %v530
        %v532 = vpop.f32.mrf.mxu0
        %533 = vmatprep.mubr.f32.mxu0 0.0
        %534 = vmatmul.mubr.f32.gmra.mxu0 %v328
        %v535 = vpop.f32.mrf.mxu0
        %v536 = vadd.f32 %v261, %v535
        %v537 = vpop.f32.mrf.mxu0
        %538 = vmatprep.mubr.f32.mxu0 0.0
        %539 = vmatmul.mubr.f32.gmra.mxu0 %v331
        %v540 = vpop.f32.mrf.mxu0
        %v541 = vadd.f32 %v261, %v540
        %v542 = vpop.f32.mrf.mxu0
        %543 = vmatprep.mubr.f32.mxu0 0.0
        %544 = vmatmul.mubr.f32.gmra.mxu0 %v334
        %v545 = vpop.f32.mrf.mxu0
        %v546 = vadd.f32 %v261, %v545
        %v547 = vpop.f32.mrf.mxu0
        %548 = vmatprep.mubr.f32.mxu0 0.0
        %549 = vmatmul.mubr.f32.gmra.mxu0 %v337
        %v550 = vpop.f32.mrf.mxu0
        %v551 = vadd.f32 %v261, %v550
        %v552 = vpop.f32.mrf.mxu0
        %553 = vmatprep.mubr.f32.mxu0 0.0
        %554 = vmatmul.mubr.f32.gmra.mxu0 %v340
        %v555 = vpop.f32.mrf.mxu0
        %v556 = vadd.f32 %v261, %v555
        %v557 = vpop.f32.mrf.mxu0
        %558 = vmatprep.mubr.f32.mxu0 0.0
        %559 = vmatmul.mubr.f32.gmra.mxu0 %v343
        %v560 = vpop.f32.mrf.mxu0
        %v561 = vadd.f32 %v261, %v560
        %v562 = vpop.f32.mrf.mxu0
        %563 = vmatprep.mubr.f32.mxu0 0.0
        %564 = vmatmul.mubr.f32.gmra.mxu0 %v346
        %v565 = vpop.f32.mrf.mxu0
        %v566 = vadd.f32 %v261, %v565
        %v567 = vpop.f32.mrf.mxu0
        %568 = vmatprep.mubr.f32.mxu0 0.0
        %569 = vmatmul.mubr.f32.gmra.mxu0 %v349
        %v570 = vpop.f32.mrf.mxu0
        %v571 = vadd.f32 %v261, %v570
        %v572 = vpop.f32.mrf.mxu0
        %573 = vmatprep.mubr.f32.mxu0 0.0
        %574 = vmatmul.mubr.f32.gmra.mxu0 %v352
        %v575 = vpop.f32.mrf.mxu0
        %v576 = vadd.f32 %v261, %v575
        %v577 = vpop.f32.mrf.mxu0
        %578 = vmatprep.mubr.f32.mxu0 0.0
        %579 = vmatmul.mubr.f32.gmra.mxu0 %v355
        %v580 = vpop.f32.mrf.mxu0
        %v581 = vadd.f32 %v261, %v580
        %v582 = vpop.f32.mrf.mxu0
        %583 = vmatprep.mubr.f32.mxu0 0.0
        %584 = vmatmul.mubr.f32.gmra.mxu0 %v358
        %v585 = vpop.f32.mrf.mxu0
        %v586 = vadd.f32 %v261, %v585
        %v587 = vpop.f32.mrf.mxu0
        %588 = vdwg.mxu0
        %v589 = vld [vmem:[%s4] sm:$0x1]
        %v590 = vpack.c.bf16 %v436, %v431
        %v591 = vpack.c.bf16 %v446, %v441
        %v592 = vpack.c.bf16 %v456, %v451
        %v593 = vpack.c.bf16 %v466, %v461
        %v594 = vpack.c.bf16 %v476, %v471
        %v595 = vpack.c.bf16 %v486, %v481
        %v596 = vpack.c.bf16 %v496, %v491
        %v597 = vpack.c.bf16 %v506, %v501
        %v598 = vpack.c.bf16 %v516, %v511
        %v599 = vpack.c.bf16 %v526, %v521
        %v600 = vpack.c.bf16 %v536, %v531
        %v601 = vpack.c.bf16 %v546, %v541
        %v602 = vpack.c.bf16 %v556, %v551
        %v603 = vpack.c.bf16 %v566, %v561
        %v604 = vpack.c.bf16 %v576, %v571
        %v605 = vpack.c.bf16 %v586, %v581
        %622 = vrot.lane.b32.xlu0 %v590, 96
        %v623 = vpop.permute.xlu0 %622
        %624 = vrot.lane.b32.xlu0 %v591, 96
        %v625 = vpop.permute.xlu0 %624
        %626 = vrot.lane.b32.xlu0 %v592, 96
        %v627 = vpop.permute.xlu0 %626
        %628 = vrot.lane.b32.xlu0 %v593, 96
        %v629 = vpop.permute.xlu0 %628
        %630 = vrot.lane.b32.xlu0 %v594, 96
        %v631 = vpop.permute.xlu0 %630
        %632 = vrot.lane.b32.xlu0 %v595, 96
        %v633 = vpop.permute.xlu0 %632
        %634 = vrot.lane.b32.xlu0 %v596, 96
        %v635 = vpop.permute.xlu0 %634
        %636 = vrot.lane.b32.xlu0 %v597, 96
        %v637 = vpop.permute.xlu0 %636
        %638 = vrot.lane.b32.xlu0 %v598, 96
        %v639 = vpop.permute.xlu0 %638
        %640 = vrot.lane.b32.xlu0 %v599, 96
        %v641 = vpop.permute.xlu0 %640
        %642 = vrot.lane.b32.xlu0 %v600, 96
        %v643 = vpop.permute.xlu0 %642
        %644 = vrot.lane.b32.xlu0 %v601, 96
        %v645 = vpop.permute.xlu0 %644
        %646 = vrot.lane.b32.xlu0 %v602, 96
        %v647 = vpop.permute.xlu0 %646
        %648 = vrot.lane.b32.xlu0 %v603, 96
        %v649 = vpop.permute.xlu0 %648
        %650 = vrot.lane.b32.xlu0 %v604, 96
        %v651 = vpop.permute.xlu0 %650
        %652 = vrot.lane.b32.xlu0 %v605, 96
        %v653 = vpop.permute.xlu0 %652
        %vm654 = vcmask 64512
        %v656 = vsel %vm654, %v590, 0
        %v659 = vsel %vm654, %v591, 0
        %v662 = vsel %vm654, %v592, 0
        %v665 = vsel %vm654, %v593, 0
        %v668 = vsel %vm654, %v594, 0
        %v671 = vsel %vm654, %v595, 0
        %v674 = vsel %vm654, %v596, 0
        %v677 = vsel %vm654, %v597, 0
        %v680 = vsel %vm654, %v598, 0
        %v683 = vsel %vm654, %v599, 0
        %v686 = vsel %vm654, %v600, 0
        %v689 = vsel %vm654, %v601, 0
        %v692 = vsel %vm654, %v602, 0
        %v695 = vsel %vm654, %v603, 0
        %v698 = vsel %vm654, %v604, 0
        %v701 = vsel %vm654, %v605, 0
        %v704 = vsel %vm654, %v623, 0
        %v707 = vsel %vm654, %v625, 0
        %v710 = vsel %vm654, %v627, 0
        %v713 = vsel %vm654, %v629, 0
        %v716 = vsel %vm654, %v631, 0
        %v719 = vsel %vm654, %v633, 0
        %v722 = vsel %vm654, %v635, 0
        %v725 = vsel %vm654, %v637, 0
        %v728 = vsel %vm654, %v639, 0
        %v731 = vsel %vm654, %v641, 0
        %v734 = vsel %vm654, %v643, 0
        %v737 = vsel %vm654, %v645, 0
        %v740 = vsel %vm654, %v647, 0
        %v743 = vsel %vm654, %v649, 0
        %v746 = vsel %vm654, %v651, 0
        %v749 = vsel %vm654, %v653, 0
        %751 = vmatprep.subr.bf16.mxu0 0
        %752 = vmatpush1.bf16.xpose.msra.mxu0 %v725
        %753 = vmatprep.subr.bf16.mxu0 0
        %754 = vmatpush1.bf16.xpose.msra.mxu0 %v722
        %755 = vmatprep.subr.bf16.mxu0 0
        %756 = vmatpush1.bf16.xpose.msra.mxu0 %v719
        %757 = vmatprep.subr.bf16.mxu0 0
        %758 = vmatpush1.bf16.xpose.msra.mxu0 %v716
        %759 = vmatprep.subr.bf16.mxu0 0
        %760 = vmatpush1.bf16.xpose.msra.mxu0 %v713
        %761 = vmatprep.subr.bf16.mxu0 0
        %762 = vmatpush1.bf16.xpose.msra.mxu0 %v710
        %763 = vmatprep.subr.bf16.mxu0 0
        %764 = vmatpush1.bf16.xpose.msra.mxu0 %v707
        %765 = vmatprep.subr.bf16.mxu0 0
        %766 = vmatpush1.bf16.xpose.msra.mxu0 %v704
        %767 = vmatprep.subr.bf16.mxu0 0
        %768 = vmatpush2.bf16.xpose.msra.mxu0 %v749
        %769 = vmatprep.subr.bf16.mxu0 0
        %770 = vmatpush2.bf16.xpose.msra.mxu0 %v746
        %771 = vmatprep.subr.bf16.mxu0 0
        %772 = vmatpush2.bf16.xpose.msra.mxu0 %v743
        %773 = vmatprep.subr.bf16.mxu0 0
        %774 = vmatpush2.bf16.xpose.msra.mxu0 %v740
        %775 = vmatprep.subr.bf16.mxu0 0
        %776 = vmatpush2.bf16.xpose.msra.mxu0 %v737
        %777 = vmatprep.subr.bf16.mxu0 0
        %778 = vmatpush2.bf16.xpose.msra.mxu0 %v734
        %779 = vmatprep.subr.bf16.mxu0 0
        %780 = vmatpush2.bf16.xpose.msra.mxu0 %v731
        %781 = vmatprep.subr.bf16.mxu0 0
        %782 = vmatpush2.bf16.xpose.msra.mxu0 %v728
        %783 = vmatprep.mubr.bf16.mxu0 0
        %784 = vmatmul.mubr.bf16.gmra.mxu0 %v656
        %v785 = vpop.f32.mrf.mxu0
        %v786 = vadd.f32 0.0, %v785
        %v787 = vpop.f32.mrf.mxu0
        %v788 = vadd.f32 0.0, %v787
        %v789 = vpop.f32.mrf.mxu0
        %v790 = vadd.f32 0.0, %v789
        %v791 = vpop.f32.mrf.mxu0
        %v792 = vadd.f32 0.0, %v791
        %793 = vmatprep.mubr.bf16.mxu0 0
        %794 = vmatmul.mubr.bf16.gmra.mxu0 %v659
        %v795 = vpop.f32.mrf.mxu0
        %v796 = vadd.f32 0.0, %v795
        %v797 = vpop.f32.mrf.mxu0
        %v798 = vadd.f32 0.0, %v797
        %v799 = vpop.f32.mrf.mxu0
        %v800 = vadd.f32 0.0, %v799
        %v801 = vpop.f32.mrf.mxu0
        %v802 = vadd.f32 0.0, %v801
        %803 = vmatprep.mubr.bf16.mxu0 0
        %804 = vmatmul.mubr.bf16.gmra.mxu0 %v662
        %v805 = vpop.f32.mrf.mxu0
        %v806 = vadd.f32 0.0, %v805
        %v807 = vpop.f32.mrf.mxu0
        %v808 = vadd.f32 0.0, %v807
        %v809 = vpop.f32.mrf.mxu0
        %v810 = vadd.f32 0.0, %v809
        %v811 = vpop.f32.mrf.mxu0
        %v812 = vadd.f32 0.0, %v811
        %813 = vmatprep.mubr.bf16.mxu0 0
        %814 = vmatmul.mubr.bf16.gmra.mxu0 %v665
        %v815 = vpop.f32.mrf.mxu0
        %v816 = vadd.f32 0.0, %v815
        %v817 = vpop.f32.mrf.mxu0
        %v818 = vadd.f32 0.0, %v817
        %v819 = vpop.f32.mrf.mxu0
        %v820 = vadd.f32 0.0, %v819
        %v821 = vpop.f32.mrf.mxu0
        %v822 = vadd.f32 0.0, %v821
        %823 = vmatprep.mubr.bf16.mxu0 0
        %824 = vmatmul.mubr.bf16.gmra.mxu0 %v668
        %v825 = vpop.f32.mrf.mxu0
        %v826 = vadd.f32 0.0, %v825
        %v827 = vpop.f32.mrf.mxu0
        %v828 = vadd.f32 0.0, %v827
        %v829 = vpop.f32.mrf.mxu0
        %v830 = vadd.f32 0.0, %v829
        %v831 = vpop.f32.mrf.mxu0
        %v832 = vadd.f32 0.0, %v831
        %833 = vmatprep.mubr.bf16.mxu0 0
        %834 = vmatmul.mubr.bf16.gmra.mxu0 %v671
        %v835 = vpop.f32.mrf.mxu0
        %v836 = vadd.f32 0.0, %v835
        %v837 = vpop.f32.mrf.mxu0
        %v838 = vadd.f32 0.0, %v837
        %v839 = vpop.f32.mrf.mxu0
        %v840 = vadd.f32 0.0, %v839
        %v841 = vpop.f32.mrf.mxu0
        %v842 = vadd.f32 0.0, %v841
        %843 = vmatprep.mubr.bf16.mxu0 0
        %844 = vmatmul.mubr.bf16.gmra.mxu0 %v674
        %v845 = vpop.f32.mrf.mxu0
        %v846 = vadd.f32 0.0, %v845
        %v847 = vpop.f32.mrf.mxu0
        %v848 = vadd.f32 0.0, %v847
        %v849 = vpop.f32.mrf.mxu0
        %v850 = vadd.f32 0.0, %v849
        %v851 = vpop.f32.mrf.mxu0
        %v852 = vadd.f32 0.0, %v851
        %853 = vmatprep.mubr.bf16.mxu0 0
        %854 = vmatmul.mubr.bf16.gmra.mxu0 %v677
        %v855 = vpop.f32.mrf.mxu0
        %v856 = vadd.f32 0.0, %v855
        %v857 = vpop.f32.mrf.mxu0
        %v858 = vadd.f32 0.0, %v857
        %v859 = vpop.f32.mrf.mxu0
        %v860 = vadd.f32 0.0, %v859
        %v861 = vpop.f32.mrf.mxu0
        %v862 = vadd.f32 0.0, %v861
        %863 = vmatprep.mubr.bf16.mxu0 0
        %864 = vmatmul.mubr.bf16.gmra.mxu0 %v680
        %v865 = vpop.f32.mrf.mxu0
        %v866 = vadd.f32 0.0, %v865
        %v867 = vpop.f32.mrf.mxu0
        %v868 = vadd.f32 0.0, %v867
        %v869 = vpop.f32.mrf.mxu0
        %v870 = vadd.f32 0.0, %v869
        %v871 = vpop.f32.mrf.mxu0
        %v872 = vadd.f32 0.0, %v871
        %873 = vmatprep.mubr.bf16.mxu0 0
        %874 = vmatmul.mubr.bf16.gmra.mxu0 %v683
        %v875 = vpop.f32.mrf.mxu0
        %v876 = vadd.f32 0.0, %v875
        %v877 = vpop.f32.mrf.mxu0
        %v878 = vadd.f32 0.0, %v877
        %v879 = vpop.f32.mrf.mxu0
        %v880 = vadd.f32 0.0, %v879
        %v881 = vpop.f32.mrf.mxu0
        %v882 = vadd.f32 0.0, %v881
        %883 = vmatprep.mubr.bf16.mxu0 0
        %884 = vmatmul.mubr.bf16.gmra.mxu0 %v686
        %v885 = vpop.f32.mrf.mxu0
        %v886 = vadd.f32 0.0, %v885
        %v887 = vpop.f32.mrf.mxu0
        %v888 = vadd.f32 0.0, %v887
        %v889 = vpop.f32.mrf.mxu0
        %v890 = vadd.f32 0.0, %v889
        %v891 = vpop.f32.mrf.mxu0
        %v892 = vadd.f32 0.0, %v891
        %893 = vmatprep.mubr.bf16.mxu0 0
        %894 = vmatmul.mubr.bf16.gmra.mxu0 %v689
        %v895 = vpop.f32.mrf.mxu0
        %v896 = vadd.f32 0.0, %v895
        %v897 = vpop.f32.mrf.mxu0
        %v898 = vadd.f32 0.0, %v897
        %v899 = vpop.f32.mrf.mxu0
        %v900 = vadd.f32 0.0, %v899
        %v901 = vpop.f32.mrf.mxu0
        %v902 = vadd.f32 0.0, %v901
        %903 = vmatprep.mubr.bf16.mxu0 0
        %904 = vmatmul.mubr.bf16.gmra.mxu0 %v692
        %v905 = vpop.f32.mrf.mxu0
        %v906 = vadd.f32 0.0, %v905
        %v907 = vpop.f32.mrf.mxu0
        %v908 = vadd.f32 0.0, %v907
        %v909 = vpop.f32.mrf.mxu0
        %v910 = vadd.f32 0.0, %v909
        %v911 = vpop.f32.mrf.mxu0
        %v912 = vadd.f32 0.0, %v911
        %913 = vmatprep.mubr.bf16.mxu0 0
        %914 = vmatmul.mubr.bf16.gmra.mxu0 %v695
        %v915 = vpop.f32.mrf.mxu0
        %v916 = vadd.f32 0.0, %v915
        %v917 = vpop.f32.mrf.mxu0
        %v918 = vadd.f32 0.0, %v917
        %v919 = vpop.f32.mrf.mxu0
        %v920 = vadd.f32 0.0, %v919
        %v921 = vpop.f32.mrf.mxu0
        %v922 = vadd.f32 0.0, %v921
        %923 = vmatprep.mubr.bf16.mxu0 0
        %924 = vmatmul.mubr.bf16.gmra.mxu0 %v698
        %v925 = vpop.f32.mrf.mxu0
        %v926 = vadd.f32 0.0, %v925
        %v927 = vpop.f32.mrf.mxu0
        %v928 = vadd.f32 0.0, %v927
        %v929 = vpop.f32.mrf.mxu0
        %v930 = vadd.f32 0.0, %v929
        %v931 = vpop.f32.mrf.mxu0
        %v932 = vadd.f32 0.0, %v931
        %933 = vmatprep.mubr.bf16.mxu0 0
        %934 = vmatmul.mubr.bf16.gmra.mxu0 %v701
        %v935 = vpop.f32.mrf.mxu0
        %v936 = vadd.f32 0.0, %v935
        %v937 = vpop.f32.mrf.mxu0
        %v938 = vadd.f32 0.0, %v937
        %v939 = vpop.f32.mrf.mxu0
        %v940 = vadd.f32 0.0, %v939
        %v941 = vpop.f32.mrf.mxu0
        %v942 = vadd.f32 0.0, %v941
        %943 = vdwg.mxu0
        %v944 = vmax.f32 %v786, %v788
        %945 = vmax.xlane.f32.xlu0 %v944
        %v946 = vpop.xlane.xlu0 %945
        %v947 = vmax.f32 %v790, %v792
        %948 = vmax.xlane.f32.xlu0 %v947
        %v949 = vpop.xlane.xlu0 %948
        %v950 = vmax.f32 %v796, %v798
        %951 = vmax.xlane.f32.xlu0 %v950
        %v952 = vpop.xlane.xlu0 %951
        %v953 = vmax.f32 %v800, %v802
        %954 = vmax.xlane.f32.xlu0 %v953
        %v955 = vpop.xlane.xlu0 %954
        %v956 = vmax.f32 %v806, %v808
        %957 = vmax.xlane.f32.xlu0 %v956
        %v958 = vpop.xlane.xlu0 %957
        %v959 = vmax.f32 %v810, %v812
        %960 = vmax.xlane.f32.xlu0 %v959
        %v961 = vpop.xlane.xlu0 %960
        %v962 = vmax.f32 %v816, %v818
        %963 = vmax.xlane.f32.xlu0 %v962
        %v964 = vpop.xlane.xlu0 %963
        %v965 = vmax.f32 %v820, %v822
        %966 = vmax.xlane.f32.xlu0 %v965
        %v967 = vpop.xlane.xlu0 %966
        %v968 = vmax.f32 %v826, %v828
        %969 = vmax.xlane.f32.xlu0 %v968
        %v970 = vpop.xlane.xlu0 %969
        %v971 = vmax.f32 %v830, %v832
        %972 = vmax.xlane.f32.xlu0 %v971
        %v973 = vpop.xlane.xlu0 %972
        %v974 = vmax.f32 %v836, %v838
        %975 = vmax.xlane.f32.xlu0 %v974
        %v976 = vpop.xlane.xlu0 %975
        %v977 = vmax.f32 %v840, %v842
        %978 = vmax.xlane.f32.xlu0 %v977
        %v979 = vpop.xlane.xlu0 %978
        %v980 = vmax.f32 %v846, %v848
        %981 = vmax.xlane.f32.xlu0 %v980
        %v982 = vpop.xlane.xlu0 %981
        %v983 = vmax.f32 %v850, %v852
        %984 = vmax.xlane.f32.xlu0 %v983
        %v985 = vpop.xlane.xlu0 %984
        %v986 = vmax.f32 %v856, %v858
        %987 = vmax.xlane.f32.xlu0 %v986
        %v988 = vpop.xlane.xlu0 %987
        %v989 = vmax.f32 %v860, %v862
        %990 = vmax.xlane.f32.xlu0 %v989
        %v991 = vpop.xlane.xlu0 %990
        %v992 = vmax.f32 %v866, %v868
        %993 = vmax.xlane.f32.xlu0 %v992
        %v994 = vpop.xlane.xlu0 %993
        %v995 = vmax.f32 %v870, %v872
        %996 = vmax.xlane.f32.xlu0 %v995
        %v997 = vpop.xlane.xlu0 %996
        %v998 = vmax.f32 %v876, %v878
        %999 = vmax.xlane.f32.xlu0 %v998
        %v1000 = vpop.xlane.xlu0 %999
        %v1001 = vmax.f32 %v880, %v882
        %1002 = vmax.xlane.f32.xlu0 %v1001
        %v1003 = vpop.xlane.xlu0 %1002
        %v1004 = vmax.f32 %v886, %v888
        %1005 = vmax.xlane.f32.xlu0 %v1004
        %v1006 = vpop.xlane.xlu0 %1005
        %v1007 = vmax.f32 %v890, %v892
        %1008 = vmax.xlane.f32.xlu0 %v1007
        %v1009 = vpop.xlane.xlu0 %1008
        %v1010 = vmax.f32 %v896, %v898
        %1011 = vmax.xlane.f32.xlu0 %v1010
        %v1012 = vpop.xlane.xlu0 %1011
        %v1013 = vmax.f32 %v900, %v902
        %1014 = vmax.xlane.f32.xlu0 %v1013
        %v1015 = vpop.xlane.xlu0 %1014
        %v1016 = vmax.f32 %v906, %v908
        %1017 = vmax.xlane.f32.xlu0 %v1016
        %v1018 = vpop.xlane.xlu0 %1017
        %v1019 = vmax.f32 %v910, %v912
        %1020 = vmax.xlane.f32.xlu0 %v1019
        %v1021 = vpop.xlane.xlu0 %1020
        %v1022 = vmax.f32 %v916, %v918
        %1023 = vmax.xlane.f32.xlu0 %v1022
        %v1024 = vpop.xlane.xlu0 %1023
        %v1025 = vmax.f32 %v920, %v922
        %1026 = vmax.xlane.f32.xlu0 %v1025
        %v1027 = vpop.xlane.xlu0 %1026
        %v1028 = vmax.f32 %v926, %v928
        %1029 = vmax.xlane.f32.xlu0 %v1028
        %v1030 = vpop.xlane.xlu0 %1029
        %v1031 = vmax.f32 %v930, %v932
        %1032 = vmax.xlane.f32.xlu0 %v1031
        %v1033 = vpop.xlane.xlu0 %1032
        %v1034 = vmax.f32 %v936, %v938
        %1035 = vmax.xlane.f32.xlu0 %v1034
        %v1036 = vpop.xlane.xlu0 %1035
        %v1037 = vmax.f32 %v940, %v942
        %1038 = vmax.xlane.f32.xlu0 %v1037
        %v1039 = vpop.xlane.xlu0 %1038
        %v1040 = vsub.f32 %v786, %v946
        %v1041 = vsub.f32 %v788, %v946
        %v1042 = vsub.f32 %v790, %v949
        %v1043 = vsub.f32 %v792, %v949
        %v1044 = vsub.f32 %v796, %v952
        %v1045 = vsub.f32 %v798, %v952
        %v1046 = vsub.f32 %v800, %v955
        %v1047 = vsub.f32 %v802, %v955
        %v1048 = vsub.f32 %v806, %v958
        %v1049 = vsub.f32 %v808, %v958
        %v1050 = vsub.f32 %v810, %v961
        %v1051 = vsub.f32 %v812, %v961
        %v1052 = vsub.f32 %v816, %v964
        %v1053 = vsub.f32 %v818, %v964
        %v1054 = vsub.f32 %v820, %v967
        %v1055 = vsub.f32 %v822, %v967
        %v1056 = vsub.f32 %v826, %v970
        %v1057 = vsub.f32 %v828, %v970
        %v1058 = vsub.f32 %v830, %v973
        %v1059 = vsub.f32 %v832, %v973
        %v1060 = vsub.f32 %v836, %v976
        %v1061 = vsub.f32 %v838, %v976
        %v1062 = vsub.f32 %v840, %v979
        %v1063 = vsub.f32 %v842, %v979
        %v1064 = vsub.f32 %v846, %v982
        %v1065 = vsub.f32 %v848, %v982
        %v1066 = vsub.f32 %v850, %v985
        %v1067 = vsub.f32 %v852, %v985
        %v1068 = vsub.f32 %v856, %v988
        %v1069 = vsub.f32 %v858, %v988
        %v1070 = vsub.f32 %v860, %v991
        %v1071 = vsub.f32 %v862, %v991
        %v1072 = vsub.f32 %v866, %v994
        %v1073 = vsub.f32 %v868, %v994
        %v1074 = vsub.f32 %v870, %v997
        %v1075 = vsub.f32 %v872, %v997
        %v1076 = vsub.f32 %v876, %v1000
        %v1077 = vsub.f32 %v878, %v1000
        %v1078 = vsub.f32 %v880, %v1003
        %v1079 = vsub.f32 %v882, %v1003
        %v1080 = vsub.f32 %v886, %v1006
        %v1081 = vsub.f32 %v888, %v1006
        %v1082 = vsub.f32 %v890, %v1009
        %v1083 = vsub.f32 %v892, %v1009
        %v1084 = vsub.f32 %v896, %v1012
        %v1085 = vsub.f32 %v898, %v1012
        %v1086 = vsub.f32 %v900, %v1015
        %v1087 = vsub.f32 %v902, %v1015
        %v1088 = vsub.f32 %v906, %v1018
        %v1089 = vsub.f32 %v908, %v1018
        %v1090 = vsub.f32 %v910, %v1021
        %v1091 = vsub.f32 %v912, %v1021
        %v1092 = vsub.f32 %v916, %v1024
        %v1093 = vsub.f32 %v918, %v1024
        %v1094 = vsub.f32 %v920, %v1027
        %v1095 = vsub.f32 %v922, %v1027
        %v1096 = vsub.f32 %v926, %v1030
        %v1097 = vsub.f32 %v928, %v1030
        %v1098 = vsub.f32 %v930, %v1033
        %v1099 = vsub.f32 %v932, %v1033
        %v1100 = vsub.f32 %v936, %v1036
        %v1101 = vsub.f32 %v938, %v1036
        %v1102 = vsub.f32 %v940, %v1039
        %v1103 = vsub.f32 %v942, %v1039
        %v1104 = vpack.c.bf16 %v1042, %v1040
        %v1105 = vpack.c.bf16 %v1043, %v1041
        %v1106 = vpack.c.bf16 %v1046, %v1044
        %v1107 = vpack.c.bf16 %v1047, %v1045
        %v1108 = vpack.c.bf16 %v1050, %v1048
        %v1109 = vpack.c.bf16 %v1051, %v1049
        %v1110 = vpack.c.bf16 %v1054, %v1052
        %v1111 = vpack.c.bf16 %v1055, %v1053
        %v1112 = vpack.c.bf16 %v1058, %v1056
        %v1113 = vpack.c.bf16 %v1059, %v1057
        %v1114 = vpack.c.bf16 %v1062, %v1060
        %v1115 = vpack.c.bf16 %v1063, %v1061
        %v1116 = vpack.c.bf16 %v1066, %v1064
        %v1117 = vpack.c.bf16 %v1067, %v1065
        %v1118 = vpack.c.bf16 %v1070, %v1068
        %v1119 = vpack.c.bf16 %v1071, %v1069
        %v1120 = vpack.c.bf16 %v1074, %v1072
        %v1121 = vpack.c.bf16 %v1075, %v1073
        %v1122 = vpack.c.bf16 %v1078, %v1076
        %v1123 = vpack.c.bf16 %v1079, %v1077
        %v1124 = vpack.c.bf16 %v1082, %v1080
        %v1125 = vpack.c.bf16 %v1083, %v1081
        %v1126 = vpack.c.bf16 %v1086, %v1084
        %v1127 = vpack.c.bf16 %v1087, %v1085
        %v1128 = vpack.c.bf16 %v1090, %v1088
        %v1129 = vpack.c.bf16 %v1091, %v1089
        %v1130 = vpack.c.bf16 %v1094, %v1092
        %v1131 = vpack.c.bf16 %v1095, %v1093
        %v1132 = vpack.c.bf16 %v1098, %v1096
        %v1133 = vpack.c.bf16 %v1099, %v1097
        %v1134 = vpack.c.bf16 %v1102, %v1100
        %v1135 = vpack.c.bf16 %v1103, %v1101
        %v1137 = vmul.bf16 %v1104, 1069105081
        %v1138 = vpow.bf16.pop %v1137
        %v1140 = vmul.bf16 %v1105, 1069105081
        %v1141 = vpow.bf16.pop %v1140
        %v1143 = vmul.bf16 %v1106, 1069105081
        %v1144 = vpow.bf16.pop %v1143
        %v1146 = vmul.bf16 %v1107, 1069105081
        %v1147 = vpow.bf16.pop %v1146
        %v1149 = vmul.bf16 %v1108, 1069105081
        %v1150 = vpow.bf16.pop %v1149
        %v1152 = vmul.bf16 %v1109, 1069105081
        %v1153 = vpow.bf16.pop %v1152
        %v1155 = vmul.bf16 %v1110, 1069105081
        %v1156 = vpow.bf16.pop %v1155
        %v1158 = vmul.bf16 %v1111, 1069105081
        %v1159 = vpow.bf16.pop %v1158
        %v1161 = vmul.bf16 %v1112, 1069105081
        %v1162 = vpow.bf16.pop %v1161
        %v1164 = vmul.bf16 %v1113, 1069105081
        %v1165 = vpow.bf16.pop %v1164
        %v1167 = vmul.bf16 %v1114, 1069105081
        %v1168 = vpow.bf16.pop %v1167
        %v1170 = vmul.bf16 %v1115, 1069105081
        %v1171 = vpow.bf16.pop %v1170
        %v1173 = vmul.bf16 %v1116, 1069105081
        %v1174 = vpow.bf16.pop %v1173
        %v1176 = vmul.bf16 %v1117, 1069105081
        %v1177 = vpow.bf16.pop %v1176
        %v1179 = vmul.bf16 %v1118, 1069105081
        %v1180 = vpow.bf16.pop %v1179
        %v1182 = vmul.bf16 %v1119, 1069105081
        %v1183 = vpow.bf16.pop %v1182
        %v1185 = vmul.bf16 %v1120, 1069105081
        %v1186 = vpow.bf16.pop %v1185
        %v1188 = vmul.bf16 %v1121, 1069105081
        %v1189 = vpow.bf16.pop %v1188
        %v1191 = vmul.bf16 %v1122, 1069105081
        %v1192 = vpow.bf16.pop %v1191
        %v1194 = vmul.bf16 %v1123, 1069105081
        %v1195 = vpow.bf16.pop %v1194
        %v1197 = vmul.bf16 %v1124, 1069105081
        %v1198 = vpow.bf16.pop %v1197
        %v1200 = vmul.bf16 %v1125, 1069105081
        %v1201 = vpow.bf16.pop %v1200
        %v1203 = vmul.bf16 %v1126, 1069105081
        %v1204 = vpow.bf16.pop %v1203
        %v1206 = vmul.bf16 %v1127, 1069105081
        %v1207 = vpow.bf16.pop %v1206
        %v1209 = vmul.bf16 %v1128, 1069105081
        %v1210 = vpow.bf16.pop %v1209
        %v1212 = vmul.bf16 %v1129, 1069105081
        %v1213 = vpow.bf16.pop %v1212
        %v1215 = vmul.bf16 %v1130, 1069105081
        %v1216 = vpow.bf16.pop %v1215
        %v1218 = vmul.bf16 %v1131, 1069105081
        %v1219 = vpow.bf16.pop %v1218
        %v1221 = vmul.bf16 %v1132, 1069105081
        %v1222 = vpow.bf16.pop %v1221
        %v1224 = vmul.bf16 %v1133, 1069105081
        %v1225 = vpow.bf16.pop %v1224
        %v1227 = vmul.bf16 %v1134, 1069105081
        %v1228 = vpow.bf16.pop %v1227
        %v1230 = vmul.bf16 %v1135, 1069105081
        %v1231 = vpow.bf16.pop %v1230
        %v1232 = vunpack.c.l.bf16 %v1138
        %v1233 = vunpack.c.l.bf16 %v1141
        %v1234 = vunpack.c.h.bf16 %v1138
        %v1235 = vunpack.c.h.bf16 %v1141
        %v1236 = vunpack.c.l.bf16 %v1144
        %v1237 = vunpack.c.l.bf16 %v1147
        %v1238 = vunpack.c.h.bf16 %v1144
        %v1239 = vunpack.c.h.bf16 %v1147
        %v1240 = vunpack.c.l.bf16 %v1150
        %v1241 = vunpack.c.l.bf16 %v1153
        %v1242 = vunpack.c.h.bf16 %v1150
        %v1243 = vunpack.c.h.bf16 %v1153
        %v1244 = vunpack.c.l.bf16 %v1156
        %v1245 = vunpack.c.l.bf16 %v1159
        %v1246 = vunpack.c.h.bf16 %v1156
        %v1247 = vunpack.c.h.bf16 %v1159
        %v1248 = vunpack.c.l.bf16 %v1162
        %v1249 = vunpack.c.l.bf16 %v1165
        %v1250 = vunpack.c.h.bf16 %v1162
        %v1251 = vunpack.c.h.bf16 %v1165
        %v1252 = vunpack.c.l.bf16 %v1168
        %v1253 = vunpack.c.l.bf16 %v1171
        %v1254 = vunpack.c.h.bf16 %v1168
        %v1255 = vunpack.c.h.bf16 %v1171
        %v1256 = vunpack.c.l.bf16 %v1174
        %v1257 = vunpack.c.l.bf16 %v1177
        %v1258 = vunpack.c.h.bf16 %v1174
        %v1259 = vunpack.c.h.bf16 %v1177
        %v1260 = vunpack.c.l.bf16 %v1180
        %v1261 = vunpack.c.l.bf16 %v1183
        %v1262 = vunpack.c.h.bf16 %v1180
        %v1263 = vunpack.c.h.bf16 %v1183
        %v1264 = vunpack.c.l.bf16 %v1186
        %v1265 = vunpack.c.l.bf16 %v1189
        %v1266 = vunpack.c.h.bf16 %v1186
        %v1267 = vunpack.c.h.bf16 %v1189
        %v1268 = vunpack.c.l.bf16 %v1192
        %v1269 = vunpack.c.l.bf16 %v1195
        %v1270 = vunpack.c.h.bf16 %v1192
        %v1271 = vunpack.c.h.bf16 %v1195
        %v1272 = vunpack.c.l.bf16 %v1198
        %v1273 = vunpack.c.l.bf16 %v1201
        %v1274 = vunpack.c.h.bf16 %v1198
        %v1275 = vunpack.c.h.bf16 %v1201
        %v1276 = vunpack.c.l.bf16 %v1204
        %v1277 = vunpack.c.l.bf16 %v1207
        %v1278 = vunpack.c.h.bf16 %v1204
        %v1279 = vunpack.c.h.bf16 %v1207
        %v1280 = vunpack.c.l.bf16 %v1210
        %v1281 = vunpack.c.l.bf16 %v1213
        %v1282 = vunpack.c.h.bf16 %v1210
        %v1283 = vunpack.c.h.bf16 %v1213
        %v1284 = vunpack.c.l.bf16 %v1216
        %v1285 = vunpack.c.l.bf16 %v1219
        %v1286 = vunpack.c.h.bf16 %v1216
        %v1287 = vunpack.c.h.bf16 %v1219
        %v1288 = vunpack.c.l.bf16 %v1222
        %v1289 = vunpack.c.l.bf16 %v1225
        %v1290 = vunpack.c.h.bf16 %v1222
        %v1291 = vunpack.c.h.bf16 %v1225
        %v1292 = vunpack.c.l.bf16 %v1228
        %v1293 = vunpack.c.l.bf16 %v1231
        %v1294 = vunpack.c.h.bf16 %v1228
        %v1295 = vunpack.c.h.bf16 %v1231
        %v1296 = vadd.f32 %v1232, %v1233
        %1297 = vadd.xlane.f32.xlu0 %v1296
        %v1298 = vpop.xlane.xlu0 %1297
        %v1299 = vadd.f32 %v1234, %v1235
        %1300 = vadd.xlane.f32.xlu0 %v1299
        %v1301 = vpop.xlane.xlu0 %1300
        %v1302 = vadd.f32 %v1236, %v1237
        %1303 = vadd.xlane.f32.xlu0 %v1302
        %v1304 = vpop.xlane.xlu0 %1303
        %v1305 = vadd.f32 %v1238, %v1239
        %1306 = vadd.xlane.f32.xlu0 %v1305
        %v1307 = vpop.xlane.xlu0 %1306
        %v1308 = vadd.f32 %v1240, %v1241
        %1309 = vadd.xlane.f32.xlu0 %v1308
        %v1310 = vpop.xlane.xlu0 %1309
        %v1311 = vadd.f32 %v1242, %v1243
        %1312 = vadd.xlane.f32.xlu0 %v1311
        %v1313 = vpop.xlane.xlu0 %1312
        %v1314 = vadd.f32 %v1244, %v1245
        %1315 = vadd.xlane.f32.xlu0 %v1314
        %v1316 = vpop.xlane.xlu0 %1315
        %v1317 = vadd.f32 %v1246, %v1247
        %1318 = vadd.xlane.f32.xlu0 %v1317
        %v1319 = vpop.xlane.xlu0 %1318
        %v1320 = vadd.f32 %v1248, %v1249
        %1321 = vadd.xlane.f32.xlu0 %v1320
        %v1322 = vpop.xlane.xlu0 %1321
        %v1323 = vadd.f32 %v1250, %v1251
        %1324 = vadd.xlane.f32.xlu0 %v1323
        %v1325 = vpop.xlane.xlu0 %1324
        %v1326 = vadd.f32 %v1252, %v1253
        %1327 = vadd.xlane.f32.xlu0 %v1326
        %v1328 = vpop.xlane.xlu0 %1327
        %v1329 = vadd.f32 %v1254, %v1255
        %1330 = vadd.xlane.f32.xlu0 %v1329
        %v1331 = vpop.xlane.xlu0 %1330
        %v1332 = vadd.f32 %v1256, %v1257
        %1333 = vadd.xlane.f32.xlu0 %v1332
        %v1334 = vpop.xlane.xlu0 %1333
        %v1335 = vadd.f32 %v1258, %v1259
        %1336 = vadd.xlane.f32.xlu0 %v1335
        %v1337 = vpop.xlane.xlu0 %1336
        %v1338 = vadd.f32 %v1260, %v1261
        %1339 = vadd.xlane.f32.xlu0 %v1338
        %v1340 = vpop.xlane.xlu0 %1339
        %v1341 = vadd.f32 %v1262, %v1263
        %1342 = vadd.xlane.f32.xlu0 %v1341
        %v1343 = vpop.xlane.xlu0 %1342
        %v1344 = vadd.f32 %v1264, %v1265
        %1345 = vadd.xlane.f32.xlu0 %v1344
        %v1346 = vpop.xlane.xlu0 %1345
        %v1347 = vadd.f32 %v1266, %v1267
        %1348 = vadd.xlane.f32.xlu0 %v1347
        %v1349 = vpop.xlane.xlu0 %1348
        %v1350 = vadd.f32 %v1268, %v1269
        %1351 = vadd.xlane.f32.xlu0 %v1350
        %v1352 = vpop.xlane.xlu0 %1351
        %v1353 = vadd.f32 %v1270, %v1271
        %1354 = vadd.xlane.f32.xlu0 %v1353
        %v1355 = vpop.xlane.xlu0 %1354
        %v1356 = vadd.f32 %v1272, %v1273
        %1357 = vadd.xlane.f32.xlu0 %v1356
        %v1358 = vpop.xlane.xlu0 %1357
        %v1359 = vadd.f32 %v1274, %v1275
        %1360 = vadd.xlane.f32.xlu0 %v1359
        %v1361 = vpop.xlane.xlu0 %1360
        %v1362 = vadd.f32 %v1276, %v1277
        %1363 = vadd.xlane.f32.xlu0 %v1362
        %v1364 = vpop.xlane.xlu0 %1363
        %v1365 = vadd.f32 %v1278, %v1279
        %1366 = vadd.xlane.f32.xlu0 %v1365
        %v1367 = vpop.xlane.xlu0 %1366
        %v1368 = vadd.f32 %v1280, %v1281
        %1369 = vadd.xlane.f32.xlu0 %v1368
        %v1370 = vpop.xlane.xlu0 %1369
        %v1371 = vadd.f32 %v1282, %v1283
        %1372 = vadd.xlane.f32.xlu0 %v1371
        %v1373 = vpop.xlane.xlu0 %1372
        %v1374 = vadd.f32 %v1284, %v1285
        %1375 = vadd.xlane.f32.xlu0 %v1374
        %v1376 = vpop.xlane.xlu0 %1375
        %v1377 = vadd.f32 %v1286, %v1287
        %1378 = vadd.xlane.f32.xlu0 %v1377
        %v1379 = vpop.xlane.xlu0 %1378
        %v1380 = vadd.f32 %v1288, %v1289
        %1381 = vadd.xlane.f32.xlu0 %v1380
        %v1382 = vpop.xlane.xlu0 %1381
        %v1383 = vadd.f32 %v1290, %v1291
        %1384 = vadd.xlane.f32.xlu0 %v1383
        %v1385 = vpop.xlane.xlu0 %1384
        %v1386 = vadd.f32 %v1292, %v1293
        %1387 = vadd.xlane.f32.xlu0 %v1386
        %v1388 = vpop.xlane.xlu0 %1387
        %v1389 = vadd.f32 %v1294, %v1295
        %1390 = vadd.xlane.f32.xlu0 %v1389
        %v1391 = vpop.xlane.xlu0 %1390
        %v1392 = vrcp.pop %v1298
        %v1393 = vrcp.pop %v1301
        %v1394 = vrcp.pop %v1304
        %v1395 = vrcp.pop %v1307
        %v1396 = vrcp.pop %v1310
        %v1397 = vrcp.pop %v1313
        %v1398 = vrcp.pop %v1316
        %v1399 = vrcp.pop %v1319
        %v1400 = vrcp.pop %v1322
        %v1401 = vrcp.pop %v1325
        %v1402 = vrcp.pop %v1328
        %v1403 = vrcp.pop %v1331
        %v1404 = vrcp.pop %v1334
        %v1405 = vrcp.pop %v1337
        %v1406 = vrcp.pop %v1340
        %v1407 = vrcp.pop %v1343
        %v1408 = vrcp.pop %v1346
        %v1409 = vrcp.pop %v1349
        %v1410 = vrcp.pop %v1352
        %v1411 = vrcp.pop %v1355
        %v1412 = vrcp.pop %v1358
        %v1413 = vrcp.pop %v1361
        %v1414 = vrcp.pop %v1364
        %v1415 = vrcp.pop %v1367
        %v1416 = vrcp.pop %v1370
        %v1417 = vrcp.pop %v1373
        %v1418 = vrcp.pop %v1376
        %v1419 = vrcp.pop %v1379
        %v1420 = vrcp.pop %v1382
        %v1421 = vrcp.pop %v1385
        %v1422 = vrcp.pop %v1388
        %v1423 = vrcp.pop %v1391
        %v1424 = vmul.f32 %v1232, %v1392
        %v1425 = vmul.f32 %v1233, %v1392
        %v1426 = vmul.f32 %v1234, %v1393
        %v1427 = vmul.f32 %v1235, %v1393
        %v1428 = vmul.f32 %v1236, %v1394
        %v1429 = vmul.f32 %v1237, %v1394
        %v1430 = vmul.f32 %v1238, %v1395
        %v1431 = vmul.f32 %v1239, %v1395
        %v1432 = vmul.f32 %v1240, %v1396
        %v1433 = vmul.f32 %v1241, %v1396
        %v1434 = vmul.f32 %v1242, %v1397
        %v1435 = vmul.f32 %v1243, %v1397
        %v1436 = vmul.f32 %v1244, %v1398
        %v1437 = vmul.f32 %v1245, %v1398
        %v1438 = vmul.f32 %v1246, %v1399
        %v1439 = vmul.f32 %v1247, %v1399
        %v1440 = vmul.f32 %v1248, %v1400
        %v1441 = vmul.f32 %v1249, %v1400
        %v1442 = vmul.f32 %v1250, %v1401
        %v1443 = vmul.f32 %v1251, %v1401
        %v1444 = vmul.f32 %v1252, %v1402
        %v1445 = vmul.f32 %v1253, %v1402
        %v1446 = vmul.f32 %v1254, %v1403
        %v1447 = vmul.f32 %v1255, %v1403
        %v1448 = vmul.f32 %v1256, %v1404
        %v1449 = vmul.f32 %v1257, %v1404
        %v1450 = vmul.f32 %v1258, %v1405
        %v1451 = vmul.f32 %v1259, %v1405
        %v1452 = vmul.f32 %v1260, %v1406
        %v1453 = vmul.f32 %v1261, %v1406
        %v1454 = vmul.f32 %v1262, %v1407
        %v1455 = vmul.f32 %v1263, %v1407
        %v1456 = vmul.f32 %v1264, %v1408
        %v1457 = vmul.f32 %v1265, %v1408
        %v1458 = vmul.f32 %v1266, %v1409
        %v1459 = vmul.f32 %v1267, %v1409
        %v1460 = vmul.f32 %v1268, %v1410
        %v1461 = vmul.f32 %v1269, %v1410
        %v1462 = vmul.f32 %v1270, %v1411
        %v1463 = vmul.f32 %v1271, %v1411
        %v1464 = vmul.f32 %v1272, %v1412
        %v1465 = vmul.f32 %v1273, %v1412
        %v1466 = vmul.f32 %v1274, %v1413
        %v1467 = vmul.f32 %v1275, %v1413
        %v1468 = vmul.f32 %v1276, %v1414
        %v1469 = vmul.f32 %v1277, %v1414
        %v1470 = vmul.f32 %v1278, %v1415
        %v1471 = vmul.f32 %v1279, %v1415
        %v1472 = vmul.f32 %v1280, %v1416
        %v1473 = vmul.f32 %v1281, %v1416
        %v1474 = vmul.f32 %v1282, %v1417
        %v1475 = vmul.f32 %v1283, %v1417
        %v1476 = vmul.f32 %v1284, %v1418
        %v1477 = vmul.f32 %v1285, %v1418
        %v1478 = vmul.f32 %v1286, %v1419
        %v1479 = vmul.f32 %v1287, %v1419
        %v1480 = vmul.f32 %v1288, %v1420
        %v1481 = vmul.f32 %v1289, %v1420
        %v1482 = vmul.f32 %v1290, %v1421
        %v1483 = vmul.f32 %v1291, %v1421
        %v1484 = vmul.f32 %v1292, %v1422
        %v1485 = vmul.f32 %v1293, %v1422
        %v1486 = vmul.f32 %v1294, %v1423
        %v1487 = vmul.f32 %v1295, %v1423
        %v1488 = vadd.f32 %v1424, %v1426
        %v1489 = vadd.f32 %v1488, %v1428
        %v1490 = vadd.f32 %v1489, %v1430
        %v1491 = vadd.f32 %v1490, %v1432
        %v1492 = vadd.f32 %v1491, %v1434
        %v1493 = vadd.f32 %v1492, %v1436
        %v1494 = vadd.f32 %v1493, %v1438
        %v1495 = vadd.f32 %v1494, %v1440
        %v1496 = vadd.f32 %v1495, %v1442
        %v1497 = vadd.f32 %v1496, %v1444
        %v1498 = vadd.f32 %v1497, %v1446
        %v1499 = vadd.f32 %v1498, %v1448
        %v1500 = vadd.f32 %v1499, %v1450
        %v1501 = vadd.f32 %v1500, %v1452
        %v1502 = vadd.f32 %v1501, %v1454
        %v1503 = vadd.f32 %v1502, %v1456
        %v1504 = vadd.f32 %v1503, %v1458
        %v1505 = vadd.f32 %v1504, %v1460
        %v1506 = vadd.f32 %v1505, %v1462
        %v1507 = vadd.f32 %v1506, %v1464
        %v1508 = vadd.f32 %v1507, %v1466
        %v1509 = vadd.f32 %v1508, %v1468
        %v1510 = vadd.f32 %v1509, %v1470
        %v1511 = vadd.f32 %v1510, %v1472
        %v1512 = vadd.f32 %v1511, %v1474
        %v1513 = vadd.f32 %v1512, %v1476
        %v1514 = vadd.f32 %v1513, %v1478
        %v1515 = vadd.f32 %v1514, %v1480
        %v1516 = vadd.f32 %v1515, %v1482
        %v1517 = vadd.f32 %v1516, %v1484
        %v1518 = vadd.f32 %v1517, %v1486
        %v1519 = vrot.slane %v1518, 4
        %v1520 = vadd.f32 %v1518, %v1519
        %v1521 = vrot.slane %v1520, 2
        %v1522 = vadd.f32 %v1520, %v1521
        %v1523 = vrot.slane %v1522, 1
        %v1524 = vadd.f32 %v1522, %v1523
        %v1525 = vadd.f32 %v1425, %v1427
        %v1526 = vadd.f32 %v1525, %v1429
        %v1527 = vadd.f32 %v1526, %v1431
        %v1528 = vadd.f32 %v1527, %v1433
        %v1529 = vadd.f32 %v1528, %v1435
        %v1530 = vadd.f32 %v1529, %v1437
        %v1531 = vadd.f32 %v1530, %v1439
        %v1532 = vadd.f32 %v1531, %v1441
        %v1533 = vadd.f32 %v1532, %v1443
        %v1534 = vadd.f32 %v1533, %v1445
        %v1535 = vadd.f32 %v1534, %v1447
        %v1536 = vadd.f32 %v1535, %v1449
        %v1537 = vadd.f32 %v1536, %v1451
        %v1538 = vadd.f32 %v1537, %v1453
        %v1539 = vadd.f32 %v1538, %v1455
        %v1540 = vadd.f32 %v1539, %v1457
        %v1541 = vadd.f32 %v1540, %v1459
        %v1542 = vadd.f32 %v1541, %v1461
        %v1543 = vadd.f32 %v1542, %v1463
        %v1544 = vadd.f32 %v1543, %v1465
        %v1545 = vadd.f32 %v1544, %v1467
        %v1546 = vadd.f32 %v1545, %v1469
        %v1547 = vadd.f32 %v1546, %v1471
        %v1548 = vadd.f32 %v1547, %v1473
        %v1549 = vadd.f32 %v1548, %v1475
        %v1550 = vadd.f32 %v1549, %v1477
        %v1551 = vadd.f32 %v1550, %v1479
        %v1552 = vadd.f32 %v1551, %v1481
        %v1553 = vadd.f32 %v1552, %v1483
        %v1554 = vadd.f32 %v1553, %v1485
        %v1555 = vadd.f32 %v1554, %v1487
        %v1556 = vrot.slane %v1555, 4
        %v1557 = vadd.f32 %v1555, %v1556
        %v1558 = vrot.slane %v1557, 2
        %v1559 = vadd.f32 %v1557, %v1558
        %v1560 = vrot.slane %v1559, 1
        %v1561 = vadd.f32 %v1559, %v1560
        %v1562 = vrcp.pop 256.0
        %v1563 = vmul.f32 %v1524, %v1562
        %v1564 = vmul.f32 %v1561, %v1562
        %1597 = vrot.lane.b32.xlu0 %v431, 64
        %v1598 = vpop.permute.xlu0 %1597
        %1599 = vrot.lane.b32.xlu0 %v436, 64
        %v1600 = vpop.permute.xlu0 %1599
        %1601 = vrot.lane.b32.xlu0 %v441, 64
        %v1602 = vpop.permute.xlu0 %1601
        %1603 = vrot.lane.b32.xlu0 %v446, 64
        %v1604 = vpop.permute.xlu0 %1603
        %1605 = vrot.lane.b32.xlu0 %v451, 64
        %v1606 = vpop.permute.xlu0 %1605
        %1607 = vrot.lane.b32.xlu0 %v456, 64
        %v1608 = vpop.permute.xlu0 %1607
        %1609 = vrot.lane.b32.xlu0 %v461, 64
        %v1610 = vpop.permute.xlu0 %1609
        %1611 = vrot.lane.b32.xlu0 %v466, 64
        %v1612 = vpop.permute.xlu0 %1611
        %1613 = vrot.lane.b32.xlu0 %v471, 64
        %v1614 = vpop.permute.xlu0 %1613
        %1615 = vrot.lane.b32.xlu0 %v476, 64
        %v1616 = vpop.permute.xlu0 %1615
        %1617 = vrot.lane.b32.xlu0 %v481, 64
        %v1618 = vpop.permute.xlu0 %1617
        %1619 = vrot.lane.b32.xlu0 %v486, 64
        %v1620 = vpop.permute.xlu0 %1619
        %1621 = vrot.lane.b32.xlu0 %v491, 64
        %v1622 = vpop.permute.xlu0 %1621
        %1623 = vrot.lane.b32.xlu0 %v496, 64
        %v1624 = vpop.permute.xlu0 %1623
        %1625 = vrot.lane.b32.xlu0 %v501, 64
        %v1626 = vpop.permute.xlu0 %1625
        %1627 = vrot.lane.b32.xlu0 %v506, 64
        %v1628 = vpop.permute.xlu0 %1627
        %1629 = vrot.lane.b32.xlu0 %v511, 64
        %v1630 = vpop.permute.xlu0 %1629
        %1631 = vrot.lane.b32.xlu0 %v516, 64
        %v1632 = vpop.permute.xlu0 %1631
        %1633 = vrot.lane.b32.xlu0 %v521, 64
        %v1634 = vpop.permute.xlu0 %1633
        %1635 = vrot.lane.b32.xlu0 %v526, 64
        %v1636 = vpop.permute.xlu0 %1635
        %1637 = vrot.lane.b32.xlu0 %v531, 64
        %v1638 = vpop.permute.xlu0 %1637
        %1639 = vrot.lane.b32.xlu0 %v536, 64
        %v1640 = vpop.permute.xlu0 %1639
        %1641 = vrot.lane.b32.xlu0 %v541, 64
        %v1642 = vpop.permute.xlu0 %1641
        %1643 = vrot.lane.b32.xlu0 %v546, 64
        %v1644 = vpop.permute.xlu0 %1643
        %1645 = vrot.lane.b32.xlu0 %v551, 64
        %v1646 = vpop.permute.xlu0 %1645
        %1647 = vrot.lane.b32.xlu0 %v556, 64
        %v1648 = vpop.permute.xlu0 %1647
        %1649 = vrot.lane.b32.xlu0 %v561, 64
        %v1650 = vpop.permute.xlu0 %1649
        %1651 = vrot.lane.b32.xlu0 %v566, 64
        %v1652 = vpop.permute.xlu0 %1651
        %1653 = vrot.lane.b32.xlu0 %v571, 64
        %v1654 = vpop.permute.xlu0 %1653
        %1655 = vrot.lane.b32.xlu0 %v576, 64
        %v1656 = vpop.permute.xlu0 %1655
        %1657 = vrot.lane.b32.xlu0 %v581, 64
        %v1658 = vpop.permute.xlu0 %1657
        %1659 = vrot.lane.b32.xlu0 %v586, 64
        %v1660 = vpop.permute.xlu0 %1659
        %1693 = vmatprep.subr.mxu0 0.0
        %1694 = vmatpush1.msra.mxu0 %v1628
        %1695 = vmatprep.subr.mxu0 0.0
        %1696 = vmatpush1.msra.mxu0 %v1626
        %1697 = vmatprep.subr.mxu0 0.0
        %1698 = vmatpush1.msra.mxu0 %v1624
        %1699 = vmatprep.subr.mxu0 0.0
        %1700 = vmatpush1.msra.mxu0 %v1622
        %1701 = vmatprep.subr.mxu0 0.0
        %1702 = vmatpush1.msra.mxu0 %v1620
        %1703 = vmatprep.subr.mxu0 0.0
        %1704 = vmatpush1.msra.mxu0 %v1618
        %1705 = vmatprep.subr.mxu0 0.0
        %1706 = vmatpush1.msra.mxu0 %v1616
        %1707 = vmatprep.subr.mxu0 0.0
        %1708 = vmatpush1.msra.mxu0 %v1614
        %1709 = vmatprep.subr.mxu0 0.0
        %1710 = vmatpush1.msra.mxu0 %v1612
        %1711 = vmatprep.subr.mxu0 0.0
        %1712 = vmatpush1.msra.mxu0 %v1610
        %1713 = vmatprep.subr.mxu0 0.0
        %1714 = vmatpush1.msra.mxu0 %v1608
        %1715 = vmatprep.subr.mxu0 0.0
        %1716 = vmatpush1.msra.mxu0 %v1606
        %1717 = vmatprep.subr.mxu0 0.0
        %1718 = vmatpush1.msra.mxu0 %v1604
        %1719 = vmatprep.subr.mxu0 0.0
        %1720 = vmatpush1.msra.mxu0 %v1602
        %1721 = vmatprep.subr.mxu0 0.0
        %1722 = vmatpush1.msra.mxu0 %v1600
        %1723 = vmatprep.subr.mxu0 0.0
        %1724 = vmatpush1.msra.mxu0 %v1598
        %1725 = vmatprep.subr.mxu0 0.0
        %1726 = vmatpush2.msra.mxu0 %v1660
        %1727 = vmatprep.subr.mxu0 0.0
        %1728 = vmatpush2.msra.mxu0 %v1658
        %1729 = vmatprep.subr.mxu0 0.0
        %1730 = vmatpush2.msra.mxu0 %v1656
        %1731 = vmatprep.subr.mxu0 0.0
        %1732 = vmatpush2.msra.mxu0 %v1654
        %1733 = vmatprep.subr.mxu0 0.0
        %1734 = vmatpush2.msra.mxu0 %v1652
        %1735 = vmatprep.subr.mxu0 0.0
        %1736 = vmatpush2.msra.mxu0 %v1650
        %1737 = vmatprep.subr.mxu0 0.0
        %1738 = vmatpush2.msra.mxu0 %v1648
        %1739 = vmatprep.subr.mxu0 0.0
        %1740 = vmatpush2.msra.mxu0 %v1646
        %1741 = vmatprep.subr.mxu0 0.0
        %1742 = vmatpush2.msra.mxu0 %v1644
        %1743 = vmatprep.subr.mxu0 0.0
        %1744 = vmatpush2.msra.mxu0 %v1642
        %1745 = vmatprep.subr.mxu0 0.0
        %1746 = vmatpush2.msra.mxu0 %v1640
        %1747 = vmatprep.subr.mxu0 0.0
        %1748 = vmatpush2.msra.mxu0 %v1638
        %1749 = vmatprep.subr.mxu0 0.0
        %1750 = vmatpush2.msra.mxu0 %v1636
        %1751 = vmatprep.subr.mxu0 0.0
        %1752 = vmatpush2.msra.mxu0 %v1634
        %1753 = vmatprep.subr.mxu0 0.0
        %1754 = vmatpush2.msra.mxu0 %v1632
        %1755 = vmatprep.subr.mxu0 0.0
        %1756 = vmatpush2.msra.mxu0 %v1630
        %1757 = vmatprep.mubr.f32.mxu0 %v1564
        %1758 = vmatmul.mubr.f32.gmra.mxu0 %v1563
        %v1759 = vpop.f32.mrf.mxu0
        %v1760 = vadd.f32 0.0, %v1759
        %v1761 = vpop.f32.mrf.mxu0
        %1762 = vdwg.mxu0
        %v1763 = vld [vmem:[%s3] sm:$0xff]
        %v1765 = vsel %vm654, %v1760, 0
        %1767 = vmatprep.subr.mxu0 0.0
        %1768 = vmatpush1.msra.mxu0 0.0
        %1769 = vmatprep.subr.mxu0 0.0
        %1770 = vmatpush1.msra.mxu0 0.0
        %1771 = vmatprep.subr.mxu0 0.0
        %1772 = vmatpush1.msra.mxu0 0.0
        %1773 = vmatprep.subr.mxu0 0.0
        %1774 = vmatpush1.msra.mxu0 0.0
        %1775 = vmatprep.subr.mxu0 0.0
        %1776 = vmatpush1.msra.mxu0 0.0
        %1777 = vmatprep.subr.mxu0 0.0
        %1778 = vmatpush1.msra.mxu0 0.0
        %1779 = vmatprep.subr.mxu0 0.0
        %1780 = vmatpush1.msra.mxu0 0.0
        %1781 = vmatprep.subr.mxu0 0.0
        %1782 = vmatpush1.msra.mxu0 0.0
        %1783 = vmatprep.subr.mxu0 0.0
        %1784 = vmatpush1.msra.mxu0 0.0
        %1785 = vmatprep.subr.mxu0 0.0
        %1786 = vmatpush1.msra.mxu0 0.0
        %1787 = vmatprep.subr.mxu0 0.0
        %1788 = vmatpush1.msra.mxu0 0.0
        %1789 = vmatprep.subr.mxu0 0.0
        %1790 = vmatpush1.msra.mxu0 0.0
        %1791 = vmatprep.subr.mxu0 0.0
        %1792 = vmatpush1.msra.mxu0 0.0
        %1793 = vmatprep.subr.mxu0 0.0
        %1794 = vmatpush1.msra.mxu0 0.0
        %1795 = vmatprep.subr.mxu0 0.0
        %1796 = vmatpush1.msra.mxu0 0.0
        %1797 = vmatprep.subr.mxu0 0.0
        %1798 = vmatpush1.msra.mxu0 %v1763
        %1799 = vmatprep.subr.mxu0 0.0
        %1800 = vmatpush2.msra.mxu0 0.0
        %1801 = vmatprep.subr.mxu0 0.0
        %1802 = vmatpush2.msra.mxu0 0.0
        %1803 = vmatprep.subr.mxu0 0.0
        %1804 = vmatpush2.msra.mxu0 0.0
        %1805 = vmatprep.subr.mxu0 0.0
        %1806 = vmatpush2.msra.mxu0 0.0
        %1807 = vmatprep.subr.mxu0 0.0
        %1808 = vmatpush2.msra.mxu0 0.0
        %1809 = vmatprep.subr.mxu0 0.0
        %1810 = vmatpush2.msra.mxu0 0.0
        %1811 = vmatprep.subr.mxu0 0.0
        %1812 = vmatpush2.msra.mxu0 0.0
        %1813 = vmatprep.subr.mxu0 0.0
        %1814 = vmatpush2.msra.mxu0 0.0
        %1815 = vmatprep.subr.mxu0 0.0
        %1816 = vmatpush2.msra.mxu0 0.0
        %1817 = vmatprep.subr.mxu0 0.0
        %1818 = vmatpush2.msra.mxu0 0.0
        %1819 = vmatprep.subr.mxu0 0.0
        %1820 = vmatpush2.msra.mxu0 0.0
        %1821 = vmatprep.subr.mxu0 0.0
        %1822 = vmatpush2.msra.mxu0 0.0
        %1823 = vmatprep.subr.mxu0 0.0
        %1824 = vmatpush2.msra.mxu0 0.0
        %1825 = vmatprep.subr.mxu0 0.0
        %1826 = vmatpush2.msra.mxu0 0.0
        %1827 = vmatprep.subr.mxu0 0.0
        %1828 = vmatpush2.msra.mxu0 0.0
        %1829 = vmatprep.subr.mxu0 0.0
        %1830 = vmatpush2.msra.mxu0 0.0
        %1831 = vmatprep.mubr.f32.mxu0 0.0
        %1832 = vmatmul.mubr.f32.gmra.mxu0 %v1765
        %v1833 = vpop.f32.mrf.mxu0
        %v1834 = vadd.f32 0.0, %v1833
        %v1835 = vpop.f32.mrf.mxu0
        %1836 = vdwg.mxu0
        %v1837 = vadd.f32 %v589, %v1834
        %1838 = vrot.lane.b32.xlu0 %v590, 120
        %v1839 = vpop.permute.xlu0 %1838
        %1840 = vrot.lane.b32.xlu0 %v591, 120
        %v1841 = vpop.permute.xlu0 %1840
        %1842 = vrot.lane.b32.xlu0 %v592, 120
        %v1843 = vpop.permute.xlu0 %1842
        %1844 = vrot.lane.b32.xlu0 %v593, 120
        %v1845 = vpop.permute.xlu0 %1844
        %1846 = vrot.lane.b32.xlu0 %v594, 120
        %v1847 = vpop.permute.xlu0 %1846
        %1848 = vrot.lane.b32.xlu0 %v595, 120
        %v1849 = vpop.permute.xlu0 %1848
        %1850 = vrot.lane.b32.xlu0 %v596, 120
        %v1851 = vpop.permute.xlu0 %1850
        %1852 = vrot.lane.b32.xlu0 %v597, 120
        %v1853 = vpop.permute.xlu0 %1852
        %1854 = vrot.lane.b32.xlu0 %v598, 120
        %v1855 = vpop.permute.xlu0 %1854
        %1856 = vrot.lane.b32.xlu0 %v599, 120
        %v1857 = vpop.permute.xlu0 %1856
        %1858 = vrot.lane.b32.xlu0 %v600, 120
        %v1859 = vpop.permute.xlu0 %1858
        %1860 = vrot.lane.b32.xlu0 %v601, 120
        %v1861 = vpop.permute.xlu0 %1860
        %1862 = vrot.lane.b32.xlu0 %v602, 120
        %v1863 = vpop.permute.xlu0 %1862
        %1864 = vrot.lane.b32.xlu0 %v603, 120
        %v1865 = vpop.permute.xlu0 %1864
        %1866 = vrot.lane.b32.xlu0 %v604, 120
        %v1867 = vpop.permute.xlu0 %1866
        %1868 = vrot.lane.b32.xlu0 %v605, 120
        %v1869 = vpop.permute.xlu0 %1868
        %1870 = vrot.lane.b32.xlu0 %v590, 88
        %v1871 = vpop.permute.xlu0 %1870
        %1872 = vrot.lane.b32.xlu0 %v591, 88
        %v1873 = vpop.permute.xlu0 %1872
        %1874 = vrot.lane.b32.xlu0 %v592, 88
        %v1875 = vpop.permute.xlu0 %1874
        %1876 = vrot.lane.b32.xlu0 %v593, 88
        %v1877 = vpop.permute.xlu0 %1876
        %1878 = vrot.lane.b32.xlu0 %v594, 88
        %v1879 = vpop.permute.xlu0 %1878
        %1880 = vrot.lane.b32.xlu0 %v595, 88
        %v1881 = vpop.permute.xlu0 %1880
        %1882 = vrot.lane.b32.xlu0 %v596, 88
        %v1883 = vpop.permute.xlu0 %1882
        %1884 = vrot.lane.b32.xlu0 %v597, 88
        %v1885 = vpop.permute.xlu0 %1884
        %1886 = vrot.lane.b32.xlu0 %v598, 88
        %v1887 = vpop.permute.xlu0 %1886
        %1888 = vrot.lane.b32.xlu0 %v599, 88
        %v1889 = vpop.permute.xlu0 %1888
        %1890 = vrot.lane.b32.xlu0 %v600, 88
        %v1891 = vpop.permute.xlu0 %1890
        %1892 = vrot.lane.b32.xlu0 %v601, 88
        %v1893 = vpop.permute.xlu0 %1892
        %1894 = vrot.lane.b32.xlu0 %v602, 88
        %v1895 = vpop.permute.xlu0 %1894
        %1896 = vrot.lane.b32.xlu0 %v603, 88
        %v1897 = vpop.permute.xlu0 %1896
        %1898 = vrot.lane.b32.xlu0 %v604, 88
        %v1899 = vpop.permute.xlu0 %1898
        %1900 = vrot.lane.b32.xlu0 %v605, 88
        %v1901 = vpop.permute.xlu0 %1900
        %v1903 = vsel %vm654, %v1839, 0
        %v1906 = vsel %vm654, %v1841, 0
        %v1909 = vsel %vm654, %v1843, 0
        %v1912 = vsel %vm654, %v1845, 0
        %v1915 = vsel %vm654, %v1847, 0
        %v1918 = vsel %vm654, %v1849, 0
        %v1921 = vsel %vm654, %v1851, 0
        %v1924 = vsel %vm654, %v1853, 0
        %v1927 = vsel %vm654, %v1855, 0
        %v1930 = vsel %vm654, %v1857, 0
        %v1933 = vsel %vm654, %v1859, 0
        %v1936 = vsel %vm654, %v1861, 0
        %v1939 = vsel %vm654, %v1863, 0
        %v1942 = vsel %vm654, %v1865, 0
        %v1945 = vsel %vm654, %v1867, 0
        %v1948 = vsel %vm654, %v1869, 0
        %v1951 = vsel %vm654, %v1871, 0
        %v1954 = vsel %vm654, %v1873, 0
        %v1957 = vsel %vm654, %v1875, 0
        %v1960 = vsel %vm654, %v1877, 0
        %v1963 = vsel %vm654, %v1879, 0
        %v1966 = vsel %vm654, %v1881, 0
        %v1969 = vsel %vm654, %v1883, 0
        %v1972 = vsel %vm654, %v1885, 0
        %v1975 = vsel %vm654, %v1887, 0
        %v1978 = vsel %vm654, %v1889, 0
        %v1981 = vsel %vm654, %v1891, 0
        %v1984 = vsel %vm654, %v1893, 0
        %v1987 = vsel %vm654, %v1895, 0
        %v1990 = vsel %vm654, %v1897, 0
        %v1993 = vsel %vm654, %v1899, 0
        %v1996 = vsel %vm654, %v1901, 0
        %1998 = vmatprep.subr.bf16.mxu0 0
        %1999 = vmatpush1.bf16.xpose.msra.mxu0 %v1972
        %2000 = vmatprep.subr.bf16.mxu0 0
        %2001 = vmatpush1.bf16.xpose.msra.mxu0 %v1969
        %2002 = vmatprep.subr.bf16.mxu0 0
        %2003 = vmatpush1.bf16.xpose.msra.mxu0 %v1966
        %2004 = vmatprep.subr.bf16.mxu0 0
        %2005 = vmatpush1.bf16.xpose.msra.mxu0 %v1963
        %2006 = vmatprep.subr.bf16.mxu0 0
        %2007 = vmatpush1.bf16.xpose.msra.mxu0 %v1960
        %2008 = vmatprep.subr.bf16.mxu0 0
        %2009 = vmatpush1.bf16.xpose.msra.mxu0 %v1957
        %2010 = vmatprep.subr.bf16.mxu0 0
        %2011 = vmatpush1.bf16.xpose.msra.mxu0 %v1954
        %2012 = vmatprep.subr.bf16.mxu0 0
        %2013 = vmatpush1.bf16.xpose.msra.mxu0 %v1951
        %2014 = vmatprep.subr.bf16.mxu0 0
        %2015 = vmatpush2.bf16.xpose.msra.mxu0 %v1996
        %2016 = vmatprep.subr.bf16.mxu0 0
        %2017 = vmatpush2.bf16.xpose.msra.mxu0 %v1993
        %2018 = vmatprep.subr.bf16.mxu0 0
        %2019 = vmatpush2.bf16.xpose.msra.mxu0 %v1990
        %2020 = vmatprep.subr.bf16.mxu0 0
        %2021 = vmatpush2.bf16.xpose.msra.mxu0 %v1987
        %2022 = vmatprep.subr.bf16.mxu0 0
        %2023 = vmatpush2.bf16.xpose.msra.mxu0 %v1984
        %2024 = vmatprep.subr.bf16.mxu0 0
        %2025 = vmatpush2.bf16.xpose.msra.mxu0 %v1981
        %2026 = vmatprep.subr.bf16.mxu0 0
        %2027 = vmatpush2.bf16.xpose.msra.mxu0 %v1978
        %2028 = vmatprep.subr.bf16.mxu0 0
        %2029 = vmatpush2.bf16.xpose.msra.mxu0 %v1975
        %2030 = vmatprep.mubr.bf16.mxu0 0
        %2031 = vmatmul.mubr.bf16.gmra.mxu0 %v1903
        %v2032 = vpop.f32.mrf.mxu0
        %v2033 = vadd.f32 0.0, %v2032
        %v2034 = vpop.f32.mrf.mxu0
        %v2035 = vadd.f32 0.0, %v2034
        %v2036 = vpop.f32.mrf.mxu0
        %v2037 = vadd.f32 0.0, %v2036
        %v2038 = vpop.f32.mrf.mxu0
        %v2039 = vadd.f32 0.0, %v2038
        %2040 = vmatprep.mubr.bf16.mxu0 0
        %2041 = vmatmul.mubr.bf16.gmra.mxu0 %v1906
        %v2042 = vpop.f32.mrf.mxu0
        %v2043 = vadd.f32 0.0, %v2042
        %v2044 = vpop.f32.mrf.mxu0
        %v2045 = vadd.f32 0.0, %v2044
        %v2046 = vpop.f32.mrf.mxu0
        %v2047 = vadd.f32 0.0, %v2046
        %v2048 = vpop.f32.mrf.mxu0
        %v2049 = vadd.f32 0.0, %v2048
        %2050 = vmatprep.mubr.bf16.mxu0 0
        %2051 = vmatmul.mubr.bf16.gmra.mxu0 %v1909
        %v2052 = vpop.f32.mrf.mxu0
        %v2053 = vadd.f32 0.0, %v2052
        %v2054 = vpop.f32.mrf.mxu0
        %v2055 = vadd.f32 0.0, %v2054
        %v2056 = vpop.f32.mrf.mxu0
        %v2057 = vadd.f32 0.0, %v2056
        %v2058 = vpop.f32.mrf.mxu0
        %v2059 = vadd.f32 0.0, %v2058
        %2060 = vmatprep.mubr.bf16.mxu0 0
        %2061 = vmatmul.mubr.bf16.gmra.mxu0 %v1912
        %v2062 = vpop.f32.mrf.mxu0
        %v2063 = vadd.f32 0.0, %v2062
        %v2064 = vpop.f32.mrf.mxu0
        %v2065 = vadd.f32 0.0, %v2064
        %v2066 = vpop.f32.mrf.mxu0
        %v2067 = vadd.f32 0.0, %v2066
        %v2068 = vpop.f32.mrf.mxu0
        %v2069 = vadd.f32 0.0, %v2068
        %2070 = vmatprep.mubr.bf16.mxu0 0
        %2071 = vmatmul.mubr.bf16.gmra.mxu0 %v1915
        %v2072 = vpop.f32.mrf.mxu0
        %v2073 = vadd.f32 0.0, %v2072
        %v2074 = vpop.f32.mrf.mxu0
        %v2075 = vadd.f32 0.0, %v2074
        %v2076 = vpop.f32.mrf.mxu0
        %v2077 = vadd.f32 0.0, %v2076
        %v2078 = vpop.f32.mrf.mxu0
        %v2079 = vadd.f32 0.0, %v2078
        %2080 = vmatprep.mubr.bf16.mxu0 0
        %2081 = vmatmul.mubr.bf16.gmra.mxu0 %v1918
        %v2082 = vpop.f32.mrf.mxu0
        %v2083 = vadd.f32 0.0, %v2082
        %v2084 = vpop.f32.mrf.mxu0
        %v2085 = vadd.f32 0.0, %v2084
        %v2086 = vpop.f32.mrf.mxu0
        %v2087 = vadd.f32 0.0, %v2086
        %v2088 = vpop.f32.mrf.mxu0
        %v2089 = vadd.f32 0.0, %v2088
        %2090 = vmatprep.mubr.bf16.mxu0 0
        %2091 = vmatmul.mubr.bf16.gmra.mxu0 %v1921
        %v2092 = vpop.f32.mrf.mxu0
        %v2093 = vadd.f32 0.0, %v2092
        %v2094 = vpop.f32.mrf.mxu0
        %v2095 = vadd.f32 0.0, %v2094
        %v2096 = vpop.f32.mrf.mxu0
        %v2097 = vadd.f32 0.0, %v2096
        %v2098 = vpop.f32.mrf.mxu0
        %v2099 = vadd.f32 0.0, %v2098
        %2100 = vmatprep.mubr.bf16.mxu0 0
        %2101 = vmatmul.mubr.bf16.gmra.mxu0 %v1924
        %v2102 = vpop.f32.mrf.mxu0
        %v2103 = vadd.f32 0.0, %v2102
        %v2104 = vpop.f32.mrf.mxu0
        %v2105 = vadd.f32 0.0, %v2104
        %v2106 = vpop.f32.mrf.mxu0
        %v2107 = vadd.f32 0.0, %v2106
        %v2108 = vpop.f32.mrf.mxu0
        %v2109 = vadd.f32 0.0, %v2108
        %2110 = vmatprep.mubr.bf16.mxu0 0
        %2111 = vmatmul.mubr.bf16.gmra.mxu0 %v1927
        %v2112 = vpop.f32.mrf.mxu0
        %v2113 = vadd.f32 0.0, %v2112
        %v2114 = vpop.f32.mrf.mxu0
        %v2115 = vadd.f32 0.0, %v2114
        %v2116 = vpop.f32.mrf.mxu0
        %v2117 = vadd.f32 0.0, %v2116
        %v2118 = vpop.f32.mrf.mxu0
        %v2119 = vadd.f32 0.0, %v2118
        %2120 = vmatprep.mubr.bf16.mxu0 0
        %2121 = vmatmul.mubr.bf16.gmra.mxu0 %v1930
        %v2122 = vpop.f32.mrf.mxu0
        %v2123 = vadd.f32 0.0, %v2122
        %v2124 = vpop.f32.mrf.mxu0
        %v2125 = vadd.f32 0.0, %v2124
        %v2126 = vpop.f32.mrf.mxu0
        %v2127 = vadd.f32 0.0, %v2126
        %v2128 = vpop.f32.mrf.mxu0
        %v2129 = vadd.f32 0.0, %v2128
        %2130 = vmatprep.mubr.bf16.mxu0 0
        %2131 = vmatmul.mubr.bf16.gmra.mxu0 %v1933
        %v2132 = vpop.f32.mrf.mxu0
        %v2133 = vadd.f32 0.0, %v2132
        %v2134 = vpop.f32.mrf.mxu0
        %v2135 = vadd.f32 0.0, %v2134
        %v2136 = vpop.f32.mrf.mxu0
        %v2137 = vadd.f32 0.0, %v2136
        %v2138 = vpop.f32.mrf.mxu0
        %v2139 = vadd.f32 0.0, %v2138
        %2140 = vmatprep.mubr.bf16.mxu0 0
        %2141 = vmatmul.mubr.bf16.gmra.mxu0 %v1936
        %v2142 = vpop.f32.mrf.mxu0
        %v2143 = vadd.f32 0.0, %v2142
        %v2144 = vpop.f32.mrf.mxu0
        %v2145 = vadd.f32 0.0, %v2144
        %v2146 = vpop.f32.mrf.mxu0
        %v2147 = vadd.f32 0.0, %v2146
        %v2148 = vpop.f32.mrf.mxu0
        %v2149 = vadd.f32 0.0, %v2148
        %2150 = vmatprep.mubr.bf16.mxu0 0
        %2151 = vmatmul.mubr.bf16.gmra.mxu0 %v1939
        %v2152 = vpop.f32.mrf.mxu0
        %v2153 = vadd.f32 0.0, %v2152
        %v2154 = vpop.f32.mrf.mxu0
        %v2155 = vadd.f32 0.0, %v2154
        %v2156 = vpop.f32.mrf.mxu0
        %v2157 = vadd.f32 0.0, %v2156
        %v2158 = vpop.f32.mrf.mxu0
        %v2159 = vadd.f32 0.0, %v2158
        %2160 = vmatprep.mubr.bf16.mxu0 0
        %2161 = vmatmul.mubr.bf16.gmra.mxu0 %v1942
        %v2162 = vpop.f32.mrf.mxu0
        %v2163 = vadd.f32 0.0, %v2162
        %v2164 = vpop.f32.mrf.mxu0
        %v2165 = vadd.f32 0.0, %v2164
        %v2166 = vpop.f32.mrf.mxu0
        %v2167 = vadd.f32 0.0, %v2166
        %v2168 = vpop.f32.mrf.mxu0
        %v2169 = vadd.f32 0.0, %v2168
        %2170 = vmatprep.mubr.bf16.mxu0 0
        %2171 = vmatmul.mubr.bf16.gmra.mxu0 %v1945
        %v2172 = vpop.f32.mrf.mxu0
        %v2173 = vadd.f32 0.0, %v2172
        %v2174 = vpop.f32.mrf.mxu0
        %v2175 = vadd.f32 0.0, %v2174
        %v2176 = vpop.f32.mrf.mxu0
        %v2177 = vadd.f32 0.0, %v2176
        %v2178 = vpop.f32.mrf.mxu0
        %v2179 = vadd.f32 0.0, %v2178
        %2180 = vmatprep.mubr.bf16.mxu0 0
        %2181 = vmatmul.mubr.bf16.gmra.mxu0 %v1948
        %v2182 = vpop.f32.mrf.mxu0
        %v2183 = vadd.f32 0.0, %v2182
        %v2184 = vpop.f32.mrf.mxu0
        %v2185 = vadd.f32 0.0, %v2184
        %v2186 = vpop.f32.mrf.mxu0
        %v2187 = vadd.f32 0.0, %v2186
        %v2188 = vpop.f32.mrf.mxu0
        %v2189 = vadd.f32 0.0, %v2188
        %2190 = vdwg.mxu0
        %v2191 = vmax.f32 %v2033, %v2035
        %2192 = vmax.xlane.f32.xlu0 %v2191
        %v2193 = vpop.xlane.xlu0 %2192
        %v2194 = vmax.f32 %v2037, %v2039
        %2195 = vmax.xlane.f32.xlu0 %v2194
        %v2196 = vpop.xlane.xlu0 %2195
        %v2197 = vmax.f32 %v2043, %v2045
        %2198 = vmax.xlane.f32.xlu0 %v2197
        %v2199 = vpop.xlane.xlu0 %2198
        %v2200 = vmax.f32 %v2047, %v2049
        %2201 = vmax.xlane.f32.xlu0 %v2200
        %v2202 = vpop.xlane.xlu0 %2201
        %v2203 = vmax.f32 %v2053, %v2055
        %2204 = vmax.xlane.f32.xlu0 %v2203
        %v2205 = vpop.xlane.xlu0 %2204
        %v2206 = vmax.f32 %v2057, %v2059
        %2207 = vmax.xlane.f32.xlu0 %v2206
        %v2208 = vpop.xlane.xlu0 %2207
        %v2209 = vmax.f32 %v2063, %v2065
        %2210 = vmax.xlane.f32.xlu0 %v2209
        %v2211 = vpop.xlane.xlu0 %2210
        %v2212 = vmax.f32 %v2067, %v2069
        %2213 = vmax.xlane.f32.xlu0 %v2212
        %v2214 = vpop.xlane.xlu0 %2213
        %v2215 = vmax.f32 %v2073, %v2075
        %2216 = vmax.xlane.f32.xlu0 %v2215
        %v2217 = vpop.xlane.xlu0 %2216
        %v2218 = vmax.f32 %v2077, %v2079
        %2219 = vmax.xlane.f32.xlu0 %v2218
        %v2220 = vpop.xlane.xlu0 %2219
        %v2221 = vmax.f32 %v2083, %v2085
        %2222 = vmax.xlane.f32.xlu0 %v2221
        %v2223 = vpop.xlane.xlu0 %2222
        %v2224 = vmax.f32 %v2087, %v2089
        %2225 = vmax.xlane.f32.xlu0 %v2224
        %v2226 = vpop.xlane.xlu0 %2225
        %v2227 = vmax.f32 %v2093, %v2095
        %2228 = vmax.xlane.f32.xlu0 %v2227
        %v2229 = vpop.xlane.xlu0 %2228
        %v2230 = vmax.f32 %v2097, %v2099
        %2231 = vmax.xlane.f32.xlu0 %v2230
        %v2232 = vpop.xlane.xlu0 %2231
        %v2233 = vmax.f32 %v2103, %v2105
        %2234 = vmax.xlane.f32.xlu0 %v2233
        %v2235 = vpop.xlane.xlu0 %2234
        %v2236 = vmax.f32 %v2107, %v2109
        %2237 = vmax.xlane.f32.xlu0 %v2236
        %v2238 = vpop.xlane.xlu0 %2237
        %v2239 = vmax.f32 %v2113, %v2115
        %2240 = vmax.xlane.f32.xlu0 %v2239
        %v2241 = vpop.xlane.xlu0 %2240
        %v2242 = vmax.f32 %v2117, %v2119
        %2243 = vmax.xlane.f32.xlu0 %v2242
        %v2244 = vpop.xlane.xlu0 %2243
        %v2245 = vmax.f32 %v2123, %v2125
        %2246 = vmax.xlane.f32.xlu0 %v2245
        %v2247 = vpop.xlane.xlu0 %2246
        %v2248 = vmax.f32 %v2127, %v2129
        %2249 = vmax.xlane.f32.xlu0 %v2248
        %v2250 = vpop.xlane.xlu0 %2249
        %v2251 = vmax.f32 %v2133, %v2135
        %2252 = vmax.xlane.f32.xlu0 %v2251
        %v2253 = vpop.xlane.xlu0 %2252
        %v2254 = vmax.f32 %v2137, %v2139
        %2255 = vmax.xlane.f32.xlu0 %v2254
        %v2256 = vpop.xlane.xlu0 %2255
        %v2257 = vmax.f32 %v2143, %v2145
        %2258 = vmax.xlane.f32.xlu0 %v2257
        %v2259 = vpop.xlane.xlu0 %2258
        %v2260 = vmax.f32 %v2147, %v2149
        %2261 = vmax.xlane.f32.xlu0 %v2260
        %v2262 = vpop.xlane.xlu0 %2261
        %v2263 = vmax.f32 %v2153, %v2155
        %2264 = vmax.xlane.f32.xlu0 %v2263
        %v2265 = vpop.xlane.xlu0 %2264
        %v2266 = vmax.f32 %v2157, %v2159
        %2267 = vmax.xlane.f32.xlu0 %v2266
        %v2268 = vpop.xlane.xlu0 %2267
        %v2269 = vmax.f32 %v2163, %v2165
        %2270 = vmax.xlane.f32.xlu0 %v2269
        %v2271 = vpop.xlane.xlu0 %2270
        %v2272 = vmax.f32 %v2167, %v2169
        %2273 = vmax.xlane.f32.xlu0 %v2272
        %v2274 = vpop.xlane.xlu0 %2273
        %v2275 = vmax.f32 %v2173, %v2175
        %2276 = vmax.xlane.f32.xlu0 %v2275
        %v2277 = vpop.xlane.xlu0 %2276
        %v2278 = vmax.f32 %v2177, %v2179
        %2279 = vmax.xlane.f32.xlu0 %v2278
        %v2280 = vpop.xlane.xlu0 %2279
        %v2281 = vmax.f32 %v2183, %v2185
        %2282 = vmax.xlane.f32.xlu0 %v2281
        %v2283 = vpop.xlane.xlu0 %2282
        %v2284 = vmax.f32 %v2187, %v2189
        %2285 = vmax.xlane.f32.xlu0 %v2284
        %v2286 = vpop.xlane.xlu0 %2285
        %v2287 = vsub.f32 %v2033, %v2193
        %v2288 = vsub.f32 %v2035, %v2193
        %v2289 = vsub.f32 %v2037, %v2196
        %v2290 = vsub.f32 %v2039, %v2196
        %v2291 = vsub.f32 %v2043, %v2199
        %v2292 = vsub.f32 %v2045, %v2199
        %v2293 = vsub.f32 %v2047, %v2202
        %v2294 = vsub.f32 %v2049, %v2202
        %v2295 = vsub.f32 %v2053, %v2205
        %v2296 = vsub.f32 %v2055, %v2205
        %v2297 = vsub.f32 %v2057, %v2208
        %v2298 = vsub.f32 %v2059, %v2208
        %v2299 = vsub.f32 %v2063, %v2211
        %v2300 = vsub.f32 %v2065, %v2211
        %v2301 = vsub.f32 %v2067, %v2214
        %v2302 = vsub.f32 %v2069, %v2214
        %v2303 = vsub.f32 %v2073, %v2217
        %v2304 = vsub.f32 %v2075, %v2217
        %v2305 = vsub.f32 %v2077, %v2220
        %v2306 = vsub.f32 %v2079, %v2220
        %v2307 = vsub.f32 %v2083, %v2223
        %v2308 = vsub.f32 %v2085, %v2223
        %v2309 = vsub.f32 %v2087, %v2226
        %v2310 = vsub.f32 %v2089, %v2226
        %v2311 = vsub.f32 %v2093, %v2229
        %v2312 = vsub.f32 %v2095, %v2229
        %v2313 = vsub.f32 %v2097, %v2232
        %v2314 = vsub.f32 %v2099, %v2232
        %v2315 = vsub.f32 %v2103, %v2235
        %v2316 = vsub.f32 %v2105, %v2235
        %v2317 = vsub.f32 %v2107, %v2238
        %v2318 = vsub.f32 %v2109, %v2238
        %v2319 = vsub.f32 %v2113, %v2241
        %v2320 = vsub.f32 %v2115, %v2241
        %v2321 = vsub.f32 %v2117, %v2244
        %v2322 = vsub.f32 %v2119, %v2244
        %v2323 = vsub.f32 %v2123, %v2247
        %v2324 = vsub.f32 %v2125, %v2247
        %v2325 = vsub.f32 %v2127, %v2250
        %v2326 = vsub.f32 %v2129, %v2250
        %v2327 = vsub.f32 %v2133, %v2253
        %v2328 = vsub.f32 %v2135, %v2253
        %v2329 = vsub.f32 %v2137, %v2256
        %v2330 = vsub.f32 %v2139, %v2256
        %v2331 = vsub.f32 %v2143, %v2259
        %v2332 = vsub.f32 %v2145, %v2259
        %v2333 = vsub.f32 %v2147, %v2262
        %v2334 = vsub.f32 %v2149, %v2262
        %v2335 = vsub.f32 %v2153, %v2265
        %v2336 = vsub.f32 %v2155, %v2265
        %v2337 = vsub.f32 %v2157, %v2268
        %v2338 = vsub.f32 %v2159, %v2268
        %v2339 = vsub.f32 %v2163, %v2271
        %v2340 = vsub.f32 %v2165, %v2271
        %v2341 = vsub.f32 %v2167, %v2274
        %v2342 = vsub.f32 %v2169, %v2274
        %v2343 = vsub.f32 %v2173, %v2277
        %v2344 = vsub.f32 %v2175, %v2277
        %v2345 = vsub.f32 %v2177, %v2280
        %v2346 = vsub.f32 %v2179, %v2280
        %v2347 = vsub.f32 %v2183, %v2283
        %v2348 = vsub.f32 %v2185, %v2283
        %v2349 = vsub.f32 %v2187, %v2286
        %v2350 = vsub.f32 %v2189, %v2286
        %v2351 = vpack.c.bf16 %v2289, %v2287
        %v2352 = vpack.c.bf16 %v2290, %v2288
        %v2353 = vpack.c.bf16 %v2293, %v2291
        %v2354 = vpack.c.bf16 %v2294, %v2292
        %v2355 = vpack.c.bf16 %v2297, %v2295
        %v2356 = vpack.c.bf16 %v2298, %v2296
        %v2357 = vpack.c.bf16 %v2301, %v2299
        %v2358 = vpack.c.bf16 %v2302, %v2300
        %v2359 = vpack.c.bf16 %v2305, %v2303
        %v2360 = vpack.c.bf16 %v2306, %v2304
        %v2361 = vpack.c.bf16 %v2309, %v2307
        %v2362 = vpack.c.bf16 %v2310, %v2308
        %v2363 = vpack.c.bf16 %v2313, %v2311
        %v2364 = vpack.c.bf16 %v2314, %v2312
        %v2365 = vpack.c.bf16 %v2317, %v2315
        %v2366 = vpack.c.bf16 %v2318, %v2316
        %v2367 = vpack.c.bf16 %v2321, %v2319
        %v2368 = vpack.c.bf16 %v2322, %v2320
        %v2369 = vpack.c.bf16 %v2325, %v2323
        %v2370 = vpack.c.bf16 %v2326, %v2324
        %v2371 = vpack.c.bf16 %v2329, %v2327
        %v2372 = vpack.c.bf16 %v2330, %v2328
        %v2373 = vpack.c.bf16 %v2333, %v2331
        %v2374 = vpack.c.bf16 %v2334, %v2332
        %v2375 = vpack.c.bf16 %v2337, %v2335
        %v2376 = vpack.c.bf16 %v2338, %v2336
        %v2377 = vpack.c.bf16 %v2341, %v2339
        %v2378 = vpack.c.bf16 %v2342, %v2340
        %v2379 = vpack.c.bf16 %v2345, %v2343
        %v2380 = vpack.c.bf16 %v2346, %v2344
        %v2381 = vpack.c.bf16 %v2349, %v2347
        %v2382 = vpack.c.bf16 %v2350, %v2348
        %v2384 = vmul.bf16 %v2351, 1069105081
        %v2385 = vpow.bf16.pop %v2384
        %v2387 = vmul.bf16 %v2352, 1069105081
        %v2388 = vpow.bf16.pop %v2387
        %v2390 = vmul.bf16 %v2353, 1069105081
        %v2391 = vpow.bf16.pop %v2390
        %v2393 = vmul.bf16 %v2354, 1069105081
        %v2394 = vpow.bf16.pop %v2393
        %v2396 = vmul.bf16 %v2355, 1069105081
        %v2397 = vpow.bf16.pop %v2396
        %v2399 = vmul.bf16 %v2356, 1069105081
        %v2400 = vpow.bf16.pop %v2399
        %v2402 = vmul.bf16 %v2357, 1069105081
        %v2403 = vpow.bf16.pop %v2402
        %v2405 = vmul.bf16 %v2358, 1069105081
        %v2406 = vpow.bf16.pop %v2405
        %v2408 = vmul.bf16 %v2359, 1069105081
        %v2409 = vpow.bf16.pop %v2408
        %v2411 = vmul.bf16 %v2360, 1069105081
        %v2412 = vpow.bf16.pop %v2411
        %v2414 = vmul.bf16 %v2361, 1069105081
        %v2415 = vpow.bf16.pop %v2414
        %v2417 = vmul.bf16 %v2362, 1069105081
        %v2418 = vpow.bf16.pop %v2417
        %v2420 = vmul.bf16 %v2363, 1069105081
        %v2421 = vpow.bf16.pop %v2420
        %v2423 = vmul.bf16 %v2364, 1069105081
        %v2424 = vpow.bf16.pop %v2423
        %v2426 = vmul.bf16 %v2365, 1069105081
        %v2427 = vpow.bf16.pop %v2426
        %v2429 = vmul.bf16 %v2366, 1069105081
        %v2430 = vpow.bf16.pop %v2429
        %v2432 = vmul.bf16 %v2367, 1069105081
        %v2433 = vpow.bf16.pop %v2432
        %v2435 = vmul.bf16 %v2368, 1069105081
        %v2436 = vpow.bf16.pop %v2435
        %v2438 = vmul.bf16 %v2369, 1069105081
        %v2439 = vpow.bf16.pop %v2438
        %v2441 = vmul.bf16 %v2370, 1069105081
        %v2442 = vpow.bf16.pop %v2441
        %v2444 = vmul.bf16 %v2371, 1069105081
        %v2445 = vpow.bf16.pop %v2444
        %v2447 = vmul.bf16 %v2372, 1069105081
        %v2448 = vpow.bf16.pop %v2447
        %v2450 = vmul.bf16 %v2373, 1069105081
        %v2451 = vpow.bf16.pop %v2450
        %v2453 = vmul.bf16 %v2374, 1069105081
        %v2454 = vpow.bf16.pop %v2453
        %v2456 = vmul.bf16 %v2375, 1069105081
        %v2457 = vpow.bf16.pop %v2456
        %v2459 = vmul.bf16 %v2376, 1069105081
        %v2460 = vpow.bf16.pop %v2459
        %v2462 = vmul.bf16 %v2377, 1069105081
        %v2463 = vpow.bf16.pop %v2462
        %v2465 = vmul.bf16 %v2378, 1069105081
        %v2466 = vpow.bf16.pop %v2465
        %v2468 = vmul.bf16 %v2379, 1069105081
        %v2469 = vpow.bf16.pop %v2468
        %v2471 = vmul.bf16 %v2380, 1069105081
        %v2472 = vpow.bf16.pop %v2471
        %v2474 = vmul.bf16 %v2381, 1069105081
        %v2475 = vpow.bf16.pop %v2474
        %v2477 = vmul.bf16 %v2382, 1069105081
        %v2478 = vpow.bf16.pop %v2477
        %v2479 = vunpack.c.l.bf16 %v2385
        %v2480 = vunpack.c.l.bf16 %v2388
        %v2481 = vunpack.c.h.bf16 %v2385
        %v2482 = vunpack.c.h.bf16 %v2388
        %v2483 = vunpack.c.l.bf16 %v2391
        %v2484 = vunpack.c.l.bf16 %v2394
        %v2485 = vunpack.c.h.bf16 %v2391
        %v2486 = vunpack.c.h.bf16 %v2394
        %v2487 = vunpack.c.l.bf16 %v2397
        %v2488 = vunpack.c.l.bf16 %v2400
        %v2489 = vunpack.c.h.bf16 %v2397
        %v2490 = vunpack.c.h.bf16 %v2400
        %v2491 = vunpack.c.l.bf16 %v2403
        %v2492 = vunpack.c.l.bf16 %v2406
        %v2493 = vunpack.c.h.bf16 %v2403
        %v2494 = vunpack.c.h.bf16 %v2406
        %v2495 = vunpack.c.l.bf16 %v2409
        %v2496 = vunpack.c.l.bf16 %v2412
        %v2497 = vunpack.c.h.bf16 %v2409
        %v2498 = vunpack.c.h.bf16 %v2412
        %v2499 = vunpack.c.l.bf16 %v2415
        %v2500 = vunpack.c.l.bf16 %v2418
        %v2501 = vunpack.c.h.bf16 %v2415
        %v2502 = vunpack.c.h.bf16 %v2418
        %v2503 = vunpack.c.l.bf16 %v2421
        %v2504 = vunpack.c.l.bf16 %v2424
        %v2505 = vunpack.c.h.bf16 %v2421
        %v2506 = vunpack.c.h.bf16 %v2424
        %v2507 = vunpack.c.l.bf16 %v2427
        %v2508 = vunpack.c.l.bf16 %v2430
        %v2509 = vunpack.c.h.bf16 %v2427
        %v2510 = vunpack.c.h.bf16 %v2430
        %v2511 = vunpack.c.l.bf16 %v2433
        %v2512 = vunpack.c.l.bf16 %v2436
        %v2513 = vunpack.c.h.bf16 %v2433
        %v2514 = vunpack.c.h.bf16 %v2436
        %v2515 = vunpack.c.l.bf16 %v2439
        %v2516 = vunpack.c.l.bf16 %v2442
        %v2517 = vunpack.c.h.bf16 %v2439
        %v2518 = vunpack.c.h.bf16 %v2442
        %v2519 = vunpack.c.l.bf16 %v2445
        %v2520 = vunpack.c.l.bf16 %v2448
        %v2521 = vunpack.c.h.bf16 %v2445
        %v2522 = vunpack.c.h.bf16 %v2448
        %v2523 = vunpack.c.l.bf16 %v2451
        %v2524 = vunpack.c.l.bf16 %v2454
        %v2525 = vunpack.c.h.bf16 %v2451
        %v2526 = vunpack.c.h.bf16 %v2454
        %v2527 = vunpack.c.l.bf16 %v2457
        %v2528 = vunpack.c.l.bf16 %v2460
        %v2529 = vunpack.c.h.bf16 %v2457
        %v2530 = vunpack.c.h.bf16 %v2460
        %v2531 = vunpack.c.l.bf16 %v2463
        %v2532 = vunpack.c.l.bf16 %v2466
        %v2533 = vunpack.c.h.bf16 %v2463
        %v2534 = vunpack.c.h.bf16 %v2466
        %v2535 = vunpack.c.l.bf16 %v2469
        %v2536 = vunpack.c.l.bf16 %v2472
        %v2537 = vunpack.c.h.bf16 %v2469
        %v2538 = vunpack.c.h.bf16 %v2472
        %v2539 = vunpack.c.l.bf16 %v2475
        %v2540 = vunpack.c.l.bf16 %v2478
        %v2541 = vunpack.c.h.bf16 %v2475
        %v2542 = vunpack.c.h.bf16 %v2478
        %v2543 = vadd.f32 %v2479, %v2480
        %2544 = vadd.xlane.f32.xlu0 %v2543
        %v2545 = vpop.xlane.xlu0 %2544
        %v2546 = vadd.f32 %v2481, %v2482
        %2547 = vadd.xlane.f32.xlu0 %v2546
        %v2548 = vpop.xlane.xlu0 %2547
        %v2549 = vadd.f32 %v2483, %v2484
        %2550 = vadd.xlane.f32.xlu0 %v2549
        %v2551 = vpop.xlane.xlu0 %2550
        %v2552 = vadd.f32 %v2485, %v2486
        %2553 = vadd.xlane.f32.xlu0 %v2552
        %v2554 = vpop.xlane.xlu0 %2553
        %v2555 = vadd.f32 %v2487, %v2488
        %2556 = vadd.xlane.f32.xlu0 %v2555
        %v2557 = vpop.xlane.xlu0 %2556
        %v2558 = vadd.f32 %v2489, %v2490
        %2559 = vadd.xlane.f32.xlu0 %v2558
        %v2560 = vpop.xlane.xlu0 %2559
        %v2561 = vadd.f32 %v2491, %v2492
        %2562 = vadd.xlane.f32.xlu0 %v2561
        %v2563 = vpop.xlane.xlu0 %2562
        %v2564 = vadd.f32 %v2493, %v2494
        %2565 = vadd.xlane.f32.xlu0 %v2564
        %v2566 = vpop.xlane.xlu0 %2565
        %v2567 = vadd.f32 %v2495, %v2496
        %2568 = vadd.xlane.f32.xlu0 %v2567
        %v2569 = vpop.xlane.xlu0 %2568
        %v2570 = vadd.f32 %v2497, %v2498
        %2571 = vadd.xlane.f32.xlu0 %v2570
        %v2572 = vpop.xlane.xlu0 %2571
        %v2573 = vadd.f32 %v2499, %v2500
        %2574 = vadd.xlane.f32.xlu0 %v2573
        %v2575 = vpop.xlane.xlu0 %2574
        %v2576 = vadd.f32 %v2501, %v2502
        %2577 = vadd.xlane.f32.xlu0 %v2576
        %v2578 = vpop.xlane.xlu0 %2577
        %v2579 = vadd.f32 %v2503, %v2504
        %2580 = vadd.xlane.f32.xlu0 %v2579
        %v2581 = vpop.xlane.xlu0 %2580
        %v2582 = vadd.f32 %v2505, %v2506
        %2583 = vadd.xlane.f32.xlu0 %v2582
        %v2584 = vpop.xlane.xlu0 %2583
        %v2585 = vadd.f32 %v2507, %v2508
        %2586 = vadd.xlane.f32.xlu0 %v2585
        %v2587 = vpop.xlane.xlu0 %2586
        %v2588 = vadd.f32 %v2509, %v2510
        %2589 = vadd.xlane.f32.xlu0 %v2588
        %v2590 = vpop.xlane.xlu0 %2589
        %v2591 = vadd.f32 %v2511, %v2512
        %2592 = vadd.xlane.f32.xlu0 %v2591
        %v2593 = vpop.xlane.xlu0 %2592
        %v2594 = vadd.f32 %v2513, %v2514
        %2595 = vadd.xlane.f32.xlu0 %v2594
        %v2596 = vpop.xlane.xlu0 %2595
        %v2597 = vadd.f32 %v2515, %v2516
        %2598 = vadd.xlane.f32.xlu0 %v2597
        %v2599 = vpop.xlane.xlu0 %2598
        %v2600 = vadd.f32 %v2517, %v2518
        %2601 = vadd.xlane.f32.xlu0 %v2600
        %v2602 = vpop.xlane.xlu0 %2601
        %v2603 = vadd.f32 %v2519, %v2520
        %2604 = vadd.xlane.f32.xlu0 %v2603
        %v2605 = vpop.xlane.xlu0 %2604
        %v2606 = vadd.f32 %v2521, %v2522
        %2607 = vadd.xlane.f32.xlu0 %v2606
        %v2608 = vpop.xlane.xlu0 %2607
        %v2609 = vadd.f32 %v2523, %v2524
        %2610 = vadd.xlane.f32.xlu0 %v2609
        %v2611 = vpop.xlane.xlu0 %2610
        %v2612 = vadd.f32 %v2525, %v2526
        %2613 = vadd.xlane.f32.xlu0 %v2612
        %v2614 = vpop.xlane.xlu0 %2613
        %v2615 = vadd.f32 %v2527, %v2528
        %2616 = vadd.xlane.f32.xlu0 %v2615
        %v2617 = vpop.xlane.xlu0 %2616
        %v2618 = vadd.f32 %v2529, %v2530
        %2619 = vadd.xlane.f32.xlu0 %v2618
        %v2620 = vpop.xlane.xlu0 %2619
        %v2621 = vadd.f32 %v2531, %v2532
        %2622 = vadd.xlane.f32.xlu0 %v2621
        %v2623 = vpop.xlane.xlu0 %2622
        %v2624 = vadd.f32 %v2533, %v2534
        %2625 = vadd.xlane.f32.xlu0 %v2624
        %v2626 = vpop.xlane.xlu0 %2625
        %v2627 = vadd.f32 %v2535, %v2536
        %2628 = vadd.xlane.f32.xlu0 %v2627
        %v2629 = vpop.xlane.xlu0 %2628
        %v2630 = vadd.f32 %v2537, %v2538
        %2631 = vadd.xlane.f32.xlu0 %v2630
        %v2632 = vpop.xlane.xlu0 %2631
        %v2633 = vadd.f32 %v2539, %v2540
        %2634 = vadd.xlane.f32.xlu0 %v2633
        %v2635 = vpop.xlane.xlu0 %2634
        %v2636 = vadd.f32 %v2541, %v2542
        %2637 = vadd.xlane.f32.xlu0 %v2636
        %v2638 = vpop.xlane.xlu0 %2637
        %v2639 = vrcp.pop %v2545
        %v2640 = vrcp.pop %v2548
        %v2641 = vrcp.pop %v2551
        %v2642 = vrcp.pop %v2554
        %v2643 = vrcp.pop %v2557
        %v2644 = vrcp.pop %v2560
        %v2645 = vrcp.pop %v2563
        %v2646 = vrcp.pop %v2566
        %v2647 = vrcp.pop %v2569
        %v2648 = vrcp.pop %v2572
        %v2649 = vrcp.pop %v2575
        %v2650 = vrcp.pop %v2578
        %v2651 = vrcp.pop %v2581
        %v2652 = vrcp.pop %v2584
        %v2653 = vrcp.pop %v2587
        %v2654 = vrcp.pop %v2590
        %v2655 = vrcp.pop %v2593
        %v2656 = vrcp.pop %v2596
        %v2657 = vrcp.pop %v2599
        %v2658 = vrcp.pop %v2602
        %v2659 = vrcp.pop %v2605
        %v2660 = vrcp.pop %v2608
        %v2661 = vrcp.pop %v2611
        %v2662 = vrcp.pop %v2614
        %v2663 = vrcp.pop %v2617
        %v2664 = vrcp.pop %v2620
        %v2665 = vrcp.pop %v2623
        %v2666 = vrcp.pop %v2626
        %v2667 = vrcp.pop %v2629
        %v2668 = vrcp.pop %v2632
        %v2669 = vrcp.pop %v2635
        %v2670 = vrcp.pop %v2638
        %v2671 = vmul.f32 %v2479, %v2639
        %v2672 = vmul.f32 %v2480, %v2639
        %v2673 = vmul.f32 %v2481, %v2640
        %v2674 = vmul.f32 %v2482, %v2640
        %v2675 = vmul.f32 %v2483, %v2641
        %v2676 = vmul.f32 %v2484, %v2641
        %v2677 = vmul.f32 %v2485, %v2642
        %v2678 = vmul.f32 %v2486, %v2642
        %v2679 = vmul.f32 %v2487, %v2643
        %v2680 = vmul.f32 %v2488, %v2643
        %v2681 = vmul.f32 %v2489, %v2644
        %v2682 = vmul.f32 %v2490, %v2644
        %v2683 = vmul.f32 %v2491, %v2645
        %v2684 = vmul.f32 %v2492, %v2645
        %v2685 = vmul.f32 %v2493, %v2646
        %v2686 = vmul.f32 %v2494, %v2646
        %v2687 = vmul.f32 %v2495, %v2647
        %v2688 = vmul.f32 %v2496, %v2647
        %v2689 = vmul.f32 %v2497, %v2648
        %v2690 = vmul.f32 %v2498, %v2648
        %v2691 = vmul.f32 %v2499, %v2649
        %v2692 = vmul.f32 %v2500, %v2649
        %v2693 = vmul.f32 %v2501, %v2650
        %v2694 = vmul.f32 %v2502, %v2650
        %v2695 = vmul.f32 %v2503, %v2651
        %v2696 = vmul.f32 %v2504, %v2651
        %v2697 = vmul.f32 %v2505, %v2652
        %v2698 = vmul.f32 %v2506, %v2652
        %v2699 = vmul.f32 %v2507, %v2653
        %v2700 = vmul.f32 %v2508, %v2653
        %v2701 = vmul.f32 %v2509, %v2654
        %v2702 = vmul.f32 %v2510, %v2654
        %v2703 = vmul.f32 %v2511, %v2655
        %v2704 = vmul.f32 %v2512, %v2655
        %v2705 = vmul.f32 %v2513, %v2656
        %v2706 = vmul.f32 %v2514, %v2656
        %v2707 = vmul.f32 %v2515, %v2657
        %v2708 = vmul.f32 %v2516, %v2657
        %v2709 = vmul.f32 %v2517, %v2658
        %v2710 = vmul.f32 %v2518, %v2658
        %v2711 = vmul.f32 %v2519, %v2659
        %v2712 = vmul.f32 %v2520, %v2659
        %v2713 = vmul.f32 %v2521, %v2660
        %v2714 = vmul.f32 %v2522, %v2660
        %v2715 = vmul.f32 %v2523, %v2661
        %v2716 = vmul.f32 %v2524, %v2661
        %v2717 = vmul.f32 %v2525, %v2662
        %v2718 = vmul.f32 %v2526, %v2662
        %v2719 = vmul.f32 %v2527, %v2663
        %v2720 = vmul.f32 %v2528, %v2663
        %v2721 = vmul.f32 %v2529, %v2664
        %v2722 = vmul.f32 %v2530, %v2664
        %v2723 = vmul.f32 %v2531, %v2665
        %v2724 = vmul.f32 %v2532, %v2665
        %v2725 = vmul.f32 %v2533, %v2666
        %v2726 = vmul.f32 %v2534, %v2666
        %v2727 = vmul.f32 %v2535, %v2667
        %v2728 = vmul.f32 %v2536, %v2667
        %v2729 = vmul.f32 %v2537, %v2668
        %v2730 = vmul.f32 %v2538, %v2668
        %v2731 = vmul.f32 %v2539, %v2669
        %v2732 = vmul.f32 %v2540, %v2669
        %v2733 = vmul.f32 %v2541, %v2670
        %v2734 = vmul.f32 %v2542, %v2670
        %v2735 = vadd.f32 %v2671, %v2673
        %v2736 = vadd.f32 %v2735, %v2675
        %v2737 = vadd.f32 %v2736, %v2677
        %v2738 = vadd.f32 %v2737, %v2679
        %v2739 = vadd.f32 %v2738, %v2681
        %v2740 = vadd.f32 %v2739, %v2683
        %v2741 = vadd.f32 %v2740, %v2685
        %v2742 = vadd.f32 %v2741, %v2687
        %v2743 = vadd.f32 %v2742, %v2689
        %v2744 = vadd.f32 %v2743, %v2691
        %v2745 = vadd.f32 %v2744, %v2693
        %v2746 = vadd.f32 %v2745, %v2695
        %v2747 = vadd.f32 %v2746, %v2697
        %v2748 = vadd.f32 %v2747, %v2699
        %v2749 = vadd.f32 %v2748, %v2701
        %v2750 = vadd.f32 %v2749, %v2703
        %v2751 = vadd.f32 %v2750, %v2705
        %v2752 = vadd.f32 %v2751, %v2707
        %v2753 = vadd.f32 %v2752, %v2709
        %v2754 = vadd.f32 %v2753, %v2711
        %v2755 = vadd.f32 %v2754, %v2713
        %v2756 = vadd.f32 %v2755, %v2715
        %v2757 = vadd.f32 %v2756, %v2717
        %v2758 = vadd.f32 %v2757, %v2719
        %v2759 = vadd.f32 %v2758, %v2721
        %v2760 = vadd.f32 %v2759, %v2723
        %v2761 = vadd.f32 %v2760, %v2725
        %v2762 = vadd.f32 %v2761, %v2727
        %v2763 = vadd.f32 %v2762, %v2729
        %v2764 = vadd.f32 %v2763, %v2731
        %v2765 = vadd.f32 %v2764, %v2733
        %v2766 = vrot.slane %v2765, 4
        %v2767 = vadd.f32 %v2765, %v2766
        %v2768 = vrot.slane %v2767, 2
        %v2769 = vadd.f32 %v2767, %v2768
        %v2770 = vrot.slane %v2769, 1
        %v2771 = vadd.f32 %v2769, %v2770
        %v2772 = vadd.f32 %v2672, %v2674
        %v2773 = vadd.f32 %v2772, %v2676
        %v2774 = vadd.f32 %v2773, %v2678
        %v2775 = vadd.f32 %v2774, %v2680
        %v2776 = vadd.f32 %v2775, %v2682
        %v2777 = vadd.f32 %v2776, %v2684
        %v2778 = vadd.f32 %v2777, %v2686
        %v2779 = vadd.f32 %v2778, %v2688
        %v2780 = vadd.f32 %v2779, %v2690
        %v2781 = vadd.f32 %v2780, %v2692
        %v2782 = vadd.f32 %v2781, %v2694
        %v2783 = vadd.f32 %v2782, %v2696
        %v2784 = vadd.f32 %v2783, %v2698
        %v2785 = vadd.f32 %v2784, %v2700
        %v2786 = vadd.f32 %v2785, %v2702
        %v2787 = vadd.f32 %v2786, %v2704
        %v2788 = vadd.f32 %v2787, %v2706
        %v2789 = vadd.f32 %v2788, %v2708
        %v2790 = vadd.f32 %v2789, %v2710
        %v2791 = vadd.f32 %v2790, %v2712
        %v2792 = vadd.f32 %v2791, %v2714
        %v2793 = vadd.f32 %v2792, %v2716
        %v2794 = vadd.f32 %v2793, %v2718
        %v2795 = vadd.f32 %v2794, %v2720
        %v2796 = vadd.f32 %v2795, %v2722
        %v2797 = vadd.f32 %v2796, %v2724
        %v2798 = vadd.f32 %v2797, %v2726
        %v2799 = vadd.f32 %v2798, %v2728
        %v2800 = vadd.f32 %v2799, %v2730
        %v2801 = vadd.f32 %v2800, %v2732
        %v2802 = vadd.f32 %v2801, %v2734
        %v2803 = vrot.slane %v2802, 4
        %v2804 = vadd.f32 %v2802, %v2803
        %v2805 = vrot.slane %v2804, 2
        %v2806 = vadd.f32 %v2804, %v2805
        %v2807 = vrot.slane %v2806, 1
        %v2808 = vadd.f32 %v2806, %v2807
        %v2809 = vmul.f32 %v2771, %v1562
        %v2810 = vmul.f32 %v2808, %v1562
        %2811 = vrot.lane.b32.xlu0 %v431, 56
        %v2812 = vpop.permute.xlu0 %2811
        %2813 = vrot.lane.b32.xlu0 %v436, 56
        %v2814 = vpop.permute.xlu0 %2813
        %2815 = vrot.lane.b32.xlu0 %v441, 56
        %v2816 = vpop.permute.xlu0 %2815
        %2817 = vrot.lane.b32.xlu0 %v446, 56
        %v2818 = vpop.permute.xlu0 %2817
        %2819 = vrot.lane.b32.xlu0 %v451, 56
        %v2820 = vpop.permute.xlu0 %2819
        %2821 = vrot.lane.b32.xlu0 %v456, 56
        %v2822 = vpop.permute.xlu0 %2821
        %2823 = vrot.lane.b32.xlu0 %v461, 56
        %v2824 = vpop.permute.xlu0 %2823
        %2825 = vrot.lane.b32.xlu0 %v466, 56
        %v2826 = vpop.permute.xlu0 %2825
        %2827 = vrot.lane.b32.xlu0 %v471, 56
        %v2828 = vpop.permute.xlu0 %2827
        %2829 = vrot.lane.b32.xlu0 %v476, 56
        %v2830 = vpop.permute.xlu0 %2829
        %2831 = vrot.lane.b32.xlu0 %v481, 56
        %v2832 = vpop.permute.xlu0 %2831
        %2833 = vrot.lane.b32.xlu0 %v486, 56
        %v2834 = vpop.permute.xlu0 %2833
        %2835 = vrot.lane.b32.xlu0 %v491, 56
        %v2836 = vpop.permute.xlu0 %2835
        %2837 = vrot.lane.b32.xlu0 %v496, 56
        %v2838 = vpop.permute.xlu0 %2837
        %2839 = vrot.lane.b32.xlu0 %v501, 56
        %v2840 = vpop.permute.xlu0 %2839
        %2841 = vrot.lane.b32.xlu0 %v506, 56
        %v2842 = vpop.permute.xlu0 %2841
        %2843 = vrot.lane.b32.xlu0 %v511, 56
        %v2844 = vpop.permute.xlu0 %2843
        %2845 = vrot.lane.b32.xlu0 %v516, 56
        %v2846 = vpop.permute.xlu0 %2845
        %2847 = vrot.lane.b32.xlu0 %v521, 56
        %v2848 = vpop.permute.xlu0 %2847
        %2849 = vrot.lane.b32.xlu0 %v526, 56
        %v2850 = vpop.permute.xlu0 %2849
        %2851 = vrot.lane.b32.xlu0 %v531, 56
        %v2852 = vpop.permute.xlu0 %2851
        %2853 = vrot.lane.b32.xlu0 %v536, 56
        %v2854 = vpop.permute.xlu0 %2853
        %2855 = vrot.lane.b32.xlu0 %v541, 56
        %v2856 = vpop.permute.xlu0 %2855
        %2857 = vrot.lane.b32.xlu0 %v546, 56
        %v2858 = vpop.permute.xlu0 %2857
        %2859 = vrot.lane.b32.xlu0 %v551, 56
        %v2860 = vpop.permute.xlu0 %2859
        %2861 = vrot.lane.b32.xlu0 %v556, 56
        %v2862 = vpop.permute.xlu0 %2861
        %2863 = vrot.lane.b32.xlu0 %v561, 56
        %v2864 = vpop.permute.xlu0 %2863
        %2865 = vrot.lane.b32.xlu0 %v566, 56
        %v2866 = vpop.permute.xlu0 %2865
        %2867 = vrot.lane.b32.xlu0 %v571, 56
        %v2868 = vpop.permute.xlu0 %2867
        %2869 = vrot.lane.b32.xlu0 %v576, 56
        %v2870 = vpop.permute.xlu0 %2869
        %2871 = vrot.lane.b32.xlu0 %v581, 56
        %v2872 = vpop.permute.xlu0 %2871
        %2873 = vrot.lane.b32.xlu0 %v586, 56
        %v2874 = vpop.permute.xlu0 %2873
        %2907 = vmatprep.subr.mxu0 0.0
        %2908 = vmatpush1.msra.mxu0 %v2842
        %2909 = vmatprep.subr.mxu0 0.0
        %2910 = vmatpush1.msra.mxu0 %v2840
        %2911 = vmatprep.subr.mxu0 0.0
        %2912 = vmatpush1.msra.mxu0 %v2838
        %2913 = vmatprep.subr.mxu0 0.0
        %2914 = vmatpush1.msra.mxu0 %v2836
        %2915 = vmatprep.subr.mxu0 0.0
        %2916 = vmatpush1.msra.mxu0 %v2834
        %2917 = vmatprep.subr.mxu0 0.0
        %2918 = vmatpush1.msra.mxu0 %v2832
        %2919 = vmatprep.subr.mxu0 0.0
        %2920 = vmatpush1.msra.mxu0 %v2830
        %2921 = vmatprep.subr.mxu0 0.0
        %2922 = vmatpush1.msra.mxu0 %v2828
        %2923 = vmatprep.subr.mxu0 0.0
        %2924 = vmatpush1.msra.mxu0 %v2826
        %2925 = vmatprep.subr.mxu0 0.0
        %2926 = vmatpush1.msra.mxu0 %v2824
        %2927 = vmatprep.subr.mxu0 0.0
        %2928 = vmatpush1.msra.mxu0 %v2822
        %2929 = vmatprep.subr.mxu0 0.0
        %2930 = vmatpush1.msra.mxu0 %v2820
        %2931 = vmatprep.subr.mxu0 0.0
        %2932 = vmatpush1.msra.mxu0 %v2818
        %2933 = vmatprep.subr.mxu0 0.0
        %2934 = vmatpush1.msra.mxu0 %v2816
        %2935 = vmatprep.subr.mxu0 0.0
        %2936 = vmatpush1.msra.mxu0 %v2814
        %2937 = vmatprep.subr.mxu0 0.0
        %2938 = vmatpush1.msra.mxu0 %v2812
        %2939 = vmatprep.subr.mxu0 0.0
        %2940 = vmatpush2.msra.mxu0 %v2874
        %2941 = vmatprep.subr.mxu0 0.0
        %2942 = vmatpush2.msra.mxu0 %v2872
        %2943 = vmatprep.subr.mxu0 0.0
        %2944 = vmatpush2.msra.mxu0 %v2870
        %2945 = vmatprep.subr.mxu0 0.0
        %2946 = vmatpush2.msra.mxu0 %v2868
        %2947 = vmatprep.subr.mxu0 0.0
        %2948 = vmatpush2.msra.mxu0 %v2866
        %2949 = vmatprep.subr.mxu0 0.0
        %2950 = vmatpush2.msra.mxu0 %v2864
        %2951 = vmatprep.subr.mxu0 0.0
        %2952 = vmatpush2.msra.mxu0 %v2862
        %2953 = vmatprep.subr.mxu0 0.0
        %2954 = vmatpush2.msra.mxu0 %v2860
        %2955 = vmatprep.subr.mxu0 0.0
        %2956 = vmatpush2.msra.mxu0 %v2858
        %2957 = vmatprep.subr.mxu0 0.0
        %2958 = vmatpush2.msra.mxu0 %v2856
        %2959 = vmatprep.subr.mxu0 0.0
        %2960 = vmatpush2.msra.mxu0 %v2854
        %2961 = vmatprep.subr.mxu0 0.0
        %2962 = vmatpush2.msra.mxu0 %v2852
        %2963 = vmatprep.subr.mxu0 0.0
        %2964 = vmatpush2.msra.mxu0 %v2850
        %2965 = vmatprep.subr.mxu0 0.0
        %2966 = vmatpush2.msra.mxu0 %v2848
        %2967 = vmatprep.subr.mxu0 0.0
        %2968 = vmatpush2.msra.mxu0 %v2846
        %2969 = vmatprep.subr.mxu0 0.0
        %2970 = vmatpush2.msra.mxu0 %v2844
        %2971 = vmatprep.mubr.f32.mxu0 %v2810
        %2972 = vmatmul.mubr.f32.gmra.mxu0 %v2809
        %v2973 = vpop.f32.mrf.mxu0
        %v2974 = vadd.f32 0.0, %v2973
        %v2975 = vpop.f32.mrf.mxu0
        %2976 = vdwg.mxu0
        %v2977 = vld [vmem:[%s3 + $0x8] sm:$0xff]
        %v2979 = vsel %vm654, %v2974, 0
        %2981 = vmatprep.subr.mxu0 0.0
        %2982 = vmatpush1.msra.mxu0 0.0
        %2983 = vmatprep.subr.mxu0 0.0
        %2984 = vmatpush1.msra.mxu0 0.0
        %2985 = vmatprep.subr.mxu0 0.0
        %2986 = vmatpush1.msra.mxu0 0.0
        %2987 = vmatprep.subr.mxu0 0.0
        %2988 = vmatpush1.msra.mxu0 0.0
        %2989 = vmatprep.subr.mxu0 0.0
        %2990 = vmatpush1.msra.mxu0 0.0
        %2991 = vmatprep.subr.mxu0 0.0
        %2992 = vmatpush1.msra.mxu0 0.0
        %2993 = vmatprep.subr.mxu0 0.0
        %2994 = vmatpush1.msra.mxu0 0.0
        %2995 = vmatprep.subr.mxu0 0.0
        %2996 = vmatpush1.msra.mxu0 0.0
        %2997 = vmatprep.subr.mxu0 0.0
        %2998 = vmatpush1.msra.mxu0 0.0
        %2999 = vmatprep.subr.mxu0 0.0
        %3000 = vmatpush1.msra.mxu0 0.0
        %3001 = vmatprep.subr.mxu0 0.0
        %3002 = vmatpush1.msra.mxu0 0.0
        %3003 = vmatprep.subr.mxu0 0.0
        %3004 = vmatpush1.msra.mxu0 0.0
        %3005 = vmatprep.subr.mxu0 0.0
        %3006 = vmatpush1.msra.mxu0 0.0
        %3007 = vmatprep.subr.mxu0 0.0
        %3008 = vmatpush1.msra.mxu0 0.0
        %3009 = vmatprep.subr.mxu0 0.0
        %3010 = vmatpush1.msra.mxu0 0.0
        %3011 = vmatprep.subr.mxu0 0.0
        %3012 = vmatpush1.msra.mxu0 %v2977
        %3013 = vmatprep.subr.mxu0 0.0
        %3014 = vmatpush2.msra.mxu0 0.0
        %3015 = vmatprep.subr.mxu0 0.0
        %3016 = vmatpush2.msra.mxu0 0.0
        %3017 = vmatprep.subr.mxu0 0.0
        %3018 = vmatpush2.msra.mxu0 0.0
        %3019 = vmatprep.subr.mxu0 0.0
        %3020 = vmatpush2.msra.mxu0 0.0
        %3021 = vmatprep.subr.mxu0 0.0
        %3022 = vmatpush2.msra.mxu0 0.0
        %3023 = vmatprep.subr.mxu0 0.0
        %3024 = vmatpush2.msra.mxu0 0.0
        %3025 = vmatprep.subr.mxu0 0.0
        %3026 = vmatpush2.msra.mxu0 0.0
        %3027 = vmatprep.subr.mxu0 0.0
        %3028 = vmatpush2.msra.mxu0 0.0
        %3029 = vmatprep.subr.mxu0 0.0
        %3030 = vmatpush2.msra.mxu0 0.0
        %3031 = vmatprep.subr.mxu0 0.0
        %3032 = vmatpush2.msra.mxu0 0.0
        %3033 = vmatprep.subr.mxu0 0.0
        %3034 = vmatpush2.msra.mxu0 0.0
        %3035 = vmatprep.subr.mxu0 0.0
        %3036 = vmatpush2.msra.mxu0 0.0
        %3037 = vmatprep.subr.mxu0 0.0
        %3038 = vmatpush2.msra.mxu0 0.0
        %3039 = vmatprep.subr.mxu0 0.0
        %3040 = vmatpush2.msra.mxu0 0.0
        %3041 = vmatprep.subr.mxu0 0.0
        %3042 = vmatpush2.msra.mxu0 0.0
        %3043 = vmatprep.subr.mxu0 0.0
        %3044 = vmatpush2.msra.mxu0 0.0
        %3045 = vmatprep.mubr.f32.mxu0 0.0
        %3046 = vmatmul.mubr.f32.gmra.mxu0 %v2979
        %v3047 = vpop.f32.mrf.mxu0
        %v3048 = vadd.f32 0.0, %v3047
        %v3049 = vpop.f32.mrf.mxu0
        %3050 = vdwg.mxu0
        %v3051 = vadd.f32 %v1837, %v3048
        %3052 = vrot.lane.b32.xlu0 %v590, 112
        %v3053 = vpop.permute.xlu0 %3052
        %3054 = vrot.lane.b32.xlu0 %v591, 112
        %v3055 = vpop.permute.xlu0 %3054
        %3056 = vrot.lane.b32.xlu0 %v592, 112
        %v3057 = vpop.permute.xlu0 %3056
        %3058 = vrot.lane.b32.xlu0 %v593, 112
        %v3059 = vpop.permute.xlu0 %3058
        %3060 = vrot.lane.b32.xlu0 %v594, 112
        %v3061 = vpop.permute.xlu0 %3060
        %3062 = vrot.lane.b32.xlu0 %v595, 112
        %v3063 = vpop.permute.xlu0 %3062
        %3064 = vrot.lane.b32.xlu0 %v596, 112
        %v3065 = vpop.permute.xlu0 %3064
        %3066 = vrot.lane.b32.xlu0 %v597, 112
        %v3067 = vpop.permute.xlu0 %3066
        %3068 = vrot.lane.b32.xlu0 %v598, 112
        %v3069 = vpop.permute.xlu0 %3068
        %3070 = vrot.lane.b32.xlu0 %v599, 112
        %v3071 = vpop.permute.xlu0 %3070
        %3072 = vrot.lane.b32.xlu0 %v600, 112
        %v3073 = vpop.permute.xlu0 %3072
        %3074 = vrot.lane.b32.xlu0 %v601, 112
        %v3075 = vpop.permute.xlu0 %3074
        %3076 = vrot.lane.b32.xlu0 %v602, 112
        %v3077 = vpop.permute.xlu0 %3076
        %3078 = vrot.lane.b32.xlu0 %v603, 112
        %v3079 = vpop.permute.xlu0 %3078
        %3080 = vrot.lane.b32.xlu0 %v604, 112
        %v3081 = vpop.permute.xlu0 %3080
        %3082 = vrot.lane.b32.xlu0 %v605, 112
        %v3083 = vpop.permute.xlu0 %3082
        %3084 = vrot.lane.b32.xlu0 %v590, 80
        %v3085 = vpop.permute.xlu0 %3084
        %3086 = vrot.lane.b32.xlu0 %v591, 80
        %v3087 = vpop.permute.xlu0 %3086
        %3088 = vrot.lane.b32.xlu0 %v592, 80
        %v3089 = vpop.permute.xlu0 %3088
        %3090 = vrot.lane.b32.xlu0 %v593, 80
        %v3091 = vpop.permute.xlu0 %3090
        %3092 = vrot.lane.b32.xlu0 %v594, 80
        %v3093 = vpop.permute.xlu0 %3092
        %3094 = vrot.lane.b32.xlu0 %v595, 80
        %v3095 = vpop.permute.xlu0 %3094
        %3096 = vrot.lane.b32.xlu0 %v596, 80
        %v3097 = vpop.permute.xlu0 %3096
        %3098 = vrot.lane.b32.xlu0 %v597, 80
        %v3099 = vpop.permute.xlu0 %3098
        %3100 = vrot.lane.b32.xlu0 %v598, 80
        %v3101 = vpop.permute.xlu0 %3100
        %3102 = vrot.lane.b32.xlu0 %v599, 80
        %v3103 = vpop.permute.xlu0 %3102
        %3104 = vrot.lane.b32.xlu0 %v600, 80
        %v3105 = vpop.permute.xlu0 %3104
        %3106 = vrot.lane.b32.xlu0 %v601, 80
        %v3107 = vpop.permute.xlu0 %3106
        %3108 = vrot.lane.b32.xlu0 %v602, 80
        %v3109 = vpop.permute.xlu0 %3108
        %3110 = vrot.lane.b32.xlu0 %v603, 80
        %v3111 = vpop.permute.xlu0 %3110
        %3112 = vrot.lane.b32.xlu0 %v604, 80
        %v3113 = vpop.permute.xlu0 %3112
        %3114 = vrot.lane.b32.xlu0 %v605, 80
        %v3115 = vpop.permute.xlu0 %3114
        %v3117 = vsel %vm654, %v3053, 0
        %v3120 = vsel %vm654, %v3055, 0
        %v3123 = vsel %vm654, %v3057, 0
        %v3126 = vsel %vm654, %v3059, 0
        %v3129 = vsel %vm654, %v3061, 0
        %v3132 = vsel %vm654, %v3063, 0
        %v3135 = vsel %vm654, %v3065, 0
        %v3138 = vsel %vm654, %v3067, 0
        %v3141 = vsel %vm654, %v3069, 0
        %v3144 = vsel %vm654, %v3071, 0
        %v3147 = vsel %vm654, %v3073, 0
        %v3150 = vsel %vm654, %v3075, 0
        %v3153 = vsel %vm654, %v3077, 0
        %v3156 = vsel %vm654, %v3079, 0
        %v3159 = vsel %vm654, %v3081, 0
        %v3162 = vsel %vm654, %v3083, 0
        %v3165 = vsel %vm654, %v3085, 0
        %v3168 = vsel %vm654, %v3087, 0
        %v3171 = vsel %vm654, %v3089, 0
        %v3174 = vsel %vm654, %v3091, 0
        %v3177 = vsel %vm654, %v3093, 0
        %v3180 = vsel %vm654, %v3095, 0
        %v3183 = vsel %vm654, %v3097, 0
        %v3186 = vsel %vm654, %v3099, 0
        %v3189 = vsel %vm654, %v3101, 0
        %v3192 = vsel %vm654, %v3103, 0
        %v3195 = vsel %vm654, %v3105, 0
        %v3198 = vsel %vm654, %v3107, 0
        %v3201 = vsel %vm654, %v3109, 0
        %v3204 = vsel %vm654, %v3111, 0
        %v3207 = vsel %vm654, %v3113, 0
        %v3210 = vsel %vm654, %v3115, 0
        %3212 = vmatprep.subr.bf16.mxu0 0
        %3213 = vmatpush1.bf16.xpose.msra.mxu0 %v3186
        %3214 = vmatprep.subr.bf16.mxu0 0
        %3215 = vmatpush1.bf16.xpose.msra.mxu0 %v3183
        %3216 = vmatprep.subr.bf16.mxu0 0
        %3217 = vmatpush1.bf16.xpose.msra.mxu0 %v3180
        %3218 = vmatprep.subr.bf16.mxu0 0
        %3219 = vmatpush1.bf16.xpose.msra.mxu0 %v3177
        %3220 = vmatprep.subr.bf16.mxu0 0
        %3221 = vmatpush1.bf16.xpose.msra.mxu0 %v3174
        %3222 = vmatprep.subr.bf16.mxu0 0
        %3223 = vmatpush1.bf16.xpose.msra.mxu0 %v3171
        %3224 = vmatprep.subr.bf16.mxu0 0
        %3225 = vmatpush1.bf16.xpose.msra.mxu0 %v3168
        %3226 = vmatprep.subr.bf16.mxu0 0
        %3227 = vmatpush1.bf16.xpose.msra.mxu0 %v3165
        %3228 = vmatprep.subr.bf16.mxu0 0
        %3229 = vmatpush2.bf16.xpose.msra.mxu0 %v3210
        %3230 = vmatprep.subr.bf16.mxu0 0
        %3231 = vmatpush2.bf16.xpose.msra.mxu0 %v3207
        %3232 = vmatprep.subr.bf16.mxu0 0
        %3233 = vmatpush2.bf16.xpose.msra.mxu0 %v3204
        %3234 = vmatprep.subr.bf16.mxu0 0
        %3235 = vmatpush2.bf16.xpose.msra.mxu0 %v3201
        %3236 = vmatprep.subr.bf16.mxu0 0
        %3237 = vmatpush2.bf16.xpose.msra.mxu0 %v3198
        %3238 = vmatprep.subr.bf16.mxu0 0
        %3239 = vmatpush2.bf16.xpose.msra.mxu0 %v3195
        %3240 = vmatprep.subr.bf16.mxu0 0
        %3241 = vmatpush2.bf16.xpose.msra.mxu0 %v3192
        %3242 = vmatprep.subr.bf16.mxu0 0
        %3243 = vmatpush2.bf16.xpose.msra.mxu0 %v3189
        %3244 = vmatprep.mubr.bf16.mxu0 0
        %3245 = vmatmul.mubr.bf16.gmra.mxu0 %v3117
        %v3246 = vpop.f32.mrf.mxu0
        %v3247 = vadd.f32 0.0, %v3246
        %v3248 = vpop.f32.mrf.mxu0
        %v3249 = vadd.f32 0.0, %v3248
        %v3250 = vpop.f32.mrf.mxu0
        %v3251 = vadd.f32 0.0, %v3250
        %v3252 = vpop.f32.mrf.mxu0
        %v3253 = vadd.f32 0.0, %v3252
        %3254 = vmatprep.mubr.bf16.mxu0 0
        %3255 = vmatmul.mubr.bf16.gmra.mxu0 %v3120
        %v3256 = vpop.f32.mrf.mxu0
        %v3257 = vadd.f32 0.0, %v3256
        %v3258 = vpop.f32.mrf.mxu0
        %v3259 = vadd.f32 0.0, %v3258
        %v3260 = vpop.f32.mrf.mxu0
        %v3261 = vadd.f32 0.0, %v3260
        %v3262 = vpop.f32.mrf.mxu0
        %v3263 = vadd.f32 0.0, %v3262
        %3264 = vmatprep.mubr.bf16.mxu0 0
        %3265 = vmatmul.mubr.bf16.gmra.mxu0 %v3123
        %v3266 = vpop.f32.mrf.mxu0
        %v3267 = vadd.f32 0.0, %v3266
        %v3268 = vpop.f32.mrf.mxu0
        %v3269 = vadd.f32 0.0, %v3268
        %v3270 = vpop.f32.mrf.mxu0
        %v3271 = vadd.f32 0.0, %v3270
        %v3272 = vpop.f32.mrf.mxu0
        %v3273 = vadd.f32 0.0, %v3272
        %3274 = vmatprep.mubr.bf16.mxu0 0
        %3275 = vmatmul.mubr.bf16.gmra.mxu0 %v3126
        %v3276 = vpop.f32.mrf.mxu0
        %v3277 = vadd.f32 0.0, %v3276
        %v3278 = vpop.f32.mrf.mxu0
        %v3279 = vadd.f32 0.0, %v3278
        %v3280 = vpop.f32.mrf.mxu0
        %v3281 = vadd.f32 0.0, %v3280
        %v3282 = vpop.f32.mrf.mxu0
        %v3283 = vadd.f32 0.0, %v3282
        %3284 = vmatprep.mubr.bf16.mxu0 0
        %3285 = vmatmul.mubr.bf16.gmra.mxu0 %v3129
        %v3286 = vpop.f32.mrf.mxu0
        %v3287 = vadd.f32 0.0, %v3286
        %v3288 = vpop.f32.mrf.mxu0
        %v3289 = vadd.f32 0.0, %v3288
        %v3290 = vpop.f32.mrf.mxu0
        %v3291 = vadd.f32 0.0, %v3290
        %v3292 = vpop.f32.mrf.mxu0
        %v3293 = vadd.f32 0.0, %v3292
        %3294 = vmatprep.mubr.bf16.mxu0 0
        %3295 = vmatmul.mubr.bf16.gmra.mxu0 %v3132
        %v3296 = vpop.f32.mrf.mxu0
        %v3297 = vadd.f32 0.0, %v3296
        %v3298 = vpop.f32.mrf.mxu0
        %v3299 = vadd.f32 0.0, %v3298
        %v3300 = vpop.f32.mrf.mxu0
        %v3301 = vadd.f32 0.0, %v3300
        %v3302 = vpop.f32.mrf.mxu0
        %v3303 = vadd.f32 0.0, %v3302
        %3304 = vmatprep.mubr.bf16.mxu0 0
        %3305 = vmatmul.mubr.bf16.gmra.mxu0 %v3135
        %v3306 = vpop.f32.mrf.mxu0
        %v3307 = vadd.f32 0.0, %v3306
        %v3308 = vpop.f32.mrf.mxu0
        %v3309 = vadd.f32 0.0, %v3308
        %v3310 = vpop.f32.mrf.mxu0
        %v3311 = vadd.f32 0.0, %v3310
        %v3312 = vpop.f32.mrf.mxu0
        %v3313 = vadd.f32 0.0, %v3312
        %3314 = vmatprep.mubr.bf16.mxu0 0
        %3315 = vmatmul.mubr.bf16.gmra.mxu0 %v3138
        %v3316 = vpop.f32.mrf.mxu0
        %v3317 = vadd.f32 0.0, %v3316
        %v3318 = vpop.f32.mrf.mxu0
        %v3319 = vadd.f32 0.0, %v3318
        %v3320 = vpop.f32.mrf.mxu0
        %v3321 = vadd.f32 0.0, %v3320
        %v3322 = vpop.f32.mrf.mxu0
        %v3323 = vadd.f32 0.0, %v3322
        %3324 = vmatprep.mubr.bf16.mxu0 0
        %3325 = vmatmul.mubr.bf16.gmra.mxu0 %v3141
        %v3326 = vpop.f32.mrf.mxu0
        %v3327 = vadd.f32 0.0, %v3326
        %v3328 = vpop.f32.mrf.mxu0
        %v3329 = vadd.f32 0.0, %v3328
        %v3330 = vpop.f32.mrf.mxu0
        %v3331 = vadd.f32 0.0, %v3330
        %v3332 = vpop.f32.mrf.mxu0
        %v3333 = vadd.f32 0.0, %v3332
        %3334 = vmatprep.mubr.bf16.mxu0 0
        %3335 = vmatmul.mubr.bf16.gmra.mxu0 %v3144
        %v3336 = vpop.f32.mrf.mxu0
        %v3337 = vadd.f32 0.0, %v3336
        %v3338 = vpop.f32.mrf.mxu0
        %v3339 = vadd.f32 0.0, %v3338
        %v3340 = vpop.f32.mrf.mxu0
        %v3341 = vadd.f32 0.0, %v3340
        %v3342 = vpop.f32.mrf.mxu0
        %v3343 = vadd.f32 0.0, %v3342
        %3344 = vmatprep.mubr.bf16.mxu0 0
        %3345 = vmatmul.mubr.bf16.gmra.mxu0 %v3147
        %v3346 = vpop.f32.mrf.mxu0
        %v3347 = vadd.f32 0.0, %v3346
        %v3348 = vpop.f32.mrf.mxu0
        %v3349 = vadd.f32 0.0, %v3348
        %v3350 = vpop.f32.mrf.mxu0
        %v3351 = vadd.f32 0.0, %v3350
        %v3352 = vpop.f32.mrf.mxu0
        %v3353 = vadd.f32 0.0, %v3352
        %3354 = vmatprep.mubr.bf16.mxu0 0
        %3355 = vmatmul.mubr.bf16.gmra.mxu0 %v3150
        %v3356 = vpop.f32.mrf.mxu0
        %v3357 = vadd.f32 0.0, %v3356
        %v3358 = vpop.f32.mrf.mxu0
        %v3359 = vadd.f32 0.0, %v3358
        %v3360 = vpop.f32.mrf.mxu0
        %v3361 = vadd.f32 0.0, %v3360
        %v3362 = vpop.f32.mrf.mxu0
        %v3363 = vadd.f32 0.0, %v3362
        %3364 = vmatprep.mubr.bf16.mxu0 0
        %3365 = vmatmul.mubr.bf16.gmra.mxu0 %v3153
        %v3366 = vpop.f32.mrf.mxu0
        %v3367 = vadd.f32 0.0, %v3366
        %v3368 = vpop.f32.mrf.mxu0
        %v3369 = vadd.f32 0.0, %v3368
        %v3370 = vpop.f32.mrf.mxu0
        %v3371 = vadd.f32 0.0, %v3370
        %v3372 = vpop.f32.mrf.mxu0
        %v3373 = vadd.f32 0.0, %v3372
        %3374 = vmatprep.mubr.bf16.mxu0 0
        %3375 = vmatmul.mubr.bf16.gmra.mxu0 %v3156
        %v3376 = vpop.f32.mrf.mxu0
        %v3377 = vadd.f32 0.0, %v3376
        %v3378 = vpop.f32.mrf.mxu0
        %v3379 = vadd.f32 0.0, %v3378
        %v3380 = vpop.f32.mrf.mxu0
        %v3381 = vadd.f32 0.0, %v3380
        %v3382 = vpop.f32.mrf.mxu0
        %v3383 = vadd.f32 0.0, %v3382
        %3384 = vmatprep.mubr.bf16.mxu0 0
        %3385 = vmatmul.mubr.bf16.gmra.mxu0 %v3159
        %v3386 = vpop.f32.mrf.mxu0
        %v3387 = vadd.f32 0.0, %v3386
        %v3388 = vpop.f32.mrf.mxu0
        %v3389 = vadd.f32 0.0, %v3388
        %v3390 = vpop.f32.mrf.mxu0
        %v3391 = vadd.f32 0.0, %v3390
        %v3392 = vpop.f32.mrf.mxu0
        %v3393 = vadd.f32 0.0, %v3392
        %3394 = vmatprep.mubr.bf16.mxu0 0
        %3395 = vmatmul.mubr.bf16.gmra.mxu0 %v3162
        %v3396 = vpop.f32.mrf.mxu0
        %v3397 = vadd.f32 0.0, %v3396
        %v3398 = vpop.f32.mrf.mxu0
        %v3399 = vadd.f32 0.0, %v3398
        %v3400 = vpop.f32.mrf.mxu0
        %v3401 = vadd.f32 0.0, %v3400
        %v3402 = vpop.f32.mrf.mxu0
        %v3403 = vadd.f32 0.0, %v3402
        %3404 = vdwg.mxu0
        %v3405 = vmax.f32 %v3247, %v3249
        %3406 = vmax.xlane.f32.xlu0 %v3405
        %v3407 = vpop.xlane.xlu0 %3406
        %v3408 = vmax.f32 %v3251, %v3253
        %3409 = vmax.xlane.f32.xlu0 %v3408
        %v3410 = vpop.xlane.xlu0 %3409
        %v3411 = vmax.f32 %v3257, %v3259
        %3412 = vmax.xlane.f32.xlu0 %v3411
        %v3413 = vpop.xlane.xlu0 %3412
        %v3414 = vmax.f32 %v3261, %v3263
        %3415 = vmax.xlane.f32.xlu0 %v3414
        %v3416 = vpop.xlane.xlu0 %3415
        %v3417 = vmax.f32 %v3267, %v3269
        %3418 = vmax.xlane.f32.xlu0 %v3417
        %v3419 = vpop.xlane.xlu0 %3418
        %v3420 = vmax.f32 %v3271, %v3273
        %3421 = vmax.xlane.f32.xlu0 %v3420
        %v3422 = vpop.xlane.xlu0 %3421
        %v3423 = vmax.f32 %v3277, %v3279
        %3424 = vmax.xlane.f32.xlu0 %v3423
        %v3425 = vpop.xlane.xlu0 %3424
        %v3426 = vmax.f32 %v3281, %v3283
        %3427 = vmax.xlane.f32.xlu0 %v3426
        %v3428 = vpop.xlane.xlu0 %3427
        %v3429 = vmax.f32 %v3287, %v3289
        %3430 = vmax.xlane.f32.xlu0 %v3429
        %v3431 = vpop.xlane.xlu0 %3430
        %v3432 = vmax.f32 %v3291, %v3293
        %3433 = vmax.xlane.f32.xlu0 %v3432
        %v3434 = vpop.xlane.xlu0 %3433
        %v3435 = vmax.f32 %v3297, %v3299
        %3436 = vmax.xlane.f32.xlu0 %v3435
        %v3437 = vpop.xlane.xlu0 %3436
        %v3438 = vmax.f32 %v3301, %v3303
        %3439 = vmax.xlane.f32.xlu0 %v3438
        %v3440 = vpop.xlane.xlu0 %3439
        %v3441 = vmax.f32 %v3307, %v3309
        %3442 = vmax.xlane.f32.xlu0 %v3441
        %v3443 = vpop.xlane.xlu0 %3442
        %v3444 = vmax.f32 %v3311, %v3313
        %3445 = vmax.xlane.f32.xlu0 %v3444
        %v3446 = vpop.xlane.xlu0 %3445
        %v3447 = vmax.f32 %v3317, %v3319
        %3448 = vmax.xlane.f32.xlu0 %v3447
        %v3449 = vpop.xlane.xlu0 %3448
        %v3450 = vmax.f32 %v3321, %v3323
        %3451 = vmax.xlane.f32.xlu0 %v3450
        %v3452 = vpop.xlane.xlu0 %3451
        %v3453 = vmax.f32 %v3327, %v3329
        %3454 = vmax.xlane.f32.xlu0 %v3453
        %v3455 = vpop.xlane.xlu0 %3454
        %v3456 = vmax.f32 %v3331, %v3333
        %3457 = vmax.xlane.f32.xlu0 %v3456
        %v3458 = vpop.xlane.xlu0 %3457
        %v3459 = vmax.f32 %v3337, %v3339
        %3460 = vmax.xlane.f32.xlu0 %v3459
        %v3461 = vpop.xlane.xlu0 %3460
        %v3462 = vmax.f32 %v3341, %v3343
        %3463 = vmax.xlane.f32.xlu0 %v3462
        %v3464 = vpop.xlane.xlu0 %3463
        %v3465 = vmax.f32 %v3347, %v3349
        %3466 = vmax.xlane.f32.xlu0 %v3465
        %v3467 = vpop.xlane.xlu0 %3466
        %v3468 = vmax.f32 %v3351, %v3353
        %3469 = vmax.xlane.f32.xlu0 %v3468
        %v3470 = vpop.xlane.xlu0 %3469
        %v3471 = vmax.f32 %v3357, %v3359
        %3472 = vmax.xlane.f32.xlu0 %v3471
        %v3473 = vpop.xlane.xlu0 %3472
        %v3474 = vmax.f32 %v3361, %v3363
        %3475 = vmax.xlane.f32.xlu0 %v3474
        %v3476 = vpop.xlane.xlu0 %3475
        %v3477 = vmax.f32 %v3367, %v3369
        %3478 = vmax.xlane.f32.xlu0 %v3477
        %v3479 = vpop.xlane.xlu0 %3478
        %v3480 = vmax.f32 %v3371, %v3373
        %3481 = vmax.xlane.f32.xlu0 %v3480
        %v3482 = vpop.xlane.xlu0 %3481
        %v3483 = vmax.f32 %v3377, %v3379
        %3484 = vmax.xlane.f32.xlu0 %v3483
        %v3485 = vpop.xlane.xlu0 %3484
        %v3486 = vmax.f32 %v3381, %v3383
        %3487 = vmax.xlane.f32.xlu0 %v3486
        %v3488 = vpop.xlane.xlu0 %3487
        %v3489 = vmax.f32 %v3387, %v3389
        %3490 = vmax.xlane.f32.xlu0 %v3489
        %v3491 = vpop.xlane.xlu0 %3490
        %v3492 = vmax.f32 %v3391, %v3393
        %3493 = vmax.xlane.f32.xlu0 %v3492
        %v3494 = vpop.xlane.xlu0 %3493
        %v3495 = vmax.f32 %v3397, %v3399
        %3496 = vmax.xlane.f32.xlu0 %v3495
        %v3497 = vpop.xlane.xlu0 %3496
        %v3498 = vmax.f32 %v3401, %v3403
        %3499 = vmax.xlane.f32.xlu0 %v3498
        %v3500 = vpop.xlane.xlu0 %3499
        %v3501 = vsub.f32 %v3247, %v3407
        %v3502 = vsub.f32 %v3249, %v3407
        %v3503 = vsub.f32 %v3251, %v3410
        %v3504 = vsub.f32 %v3253, %v3410
        %v3505 = vsub.f32 %v3257, %v3413
        %v3506 = vsub.f32 %v3259, %v3413
        %v3507 = vsub.f32 %v3261, %v3416
        %v3508 = vsub.f32 %v3263, %v3416
        %v3509 = vsub.f32 %v3267, %v3419
        %v3510 = vsub.f32 %v3269, %v3419
        %v3511 = vsub.f32 %v3271, %v3422
        %v3512 = vsub.f32 %v3273, %v3422
        %v3513 = vsub.f32 %v3277, %v3425
        %v3514 = vsub.f32 %v3279, %v3425
        %v3515 = vsub.f32 %v3281, %v3428
        %v3516 = vsub.f32 %v3283, %v3428
        %v3517 = vsub.f32 %v3287, %v3431
        %v3518 = vsub.f32 %v3289, %v3431
        %v3519 = vsub.f32 %v3291, %v3434
        %v3520 = vsub.f32 %v3293, %v3434
        %v3521 = vsub.f32 %v3297, %v3437
        %v3522 = vsub.f32 %v3299, %v3437
        %v3523 = vsub.f32 %v3301, %v3440
        %v3524 = vsub.f32 %v3303, %v3440
        %v3525 = vsub.f32 %v3307, %v3443
        %v3526 = vsub.f32 %v3309, %v3443
        %v3527 = vsub.f32 %v3311, %v3446
        %v3528 = vsub.f32 %v3313, %v3446
        %v3529 = vsub.f32 %v3317, %v3449
        %v3530 = vsub.f32 %v3319, %v3449
        %v3531 = vsub.f32 %v3321, %v3452
        %v3532 = vsub.f32 %v3323, %v3452
        %v3533 = vsub.f32 %v3327, %v3455
        %v3534 = vsub.f32 %v3329, %v3455
        %v3535 = vsub.f32 %v3331, %v3458
        %v3536 = vsub.f32 %v3333, %v3458
        %v3537 = vsub.f32 %v3337, %v3461
        %v3538 = vsub.f32 %v3339, %v3461
        %v3539 = vsub.f32 %v3341, %v3464
        %v3540 = vsub.f32 %v3343, %v3464
        %v3541 = vsub.f32 %v3347, %v3467
        %v3542 = vsub.f32 %v3349, %v3467
        %v3543 = vsub.f32 %v3351, %v3470
        %v3544 = vsub.f32 %v3353, %v3470
        %v3545 = vsub.f32 %v3357, %v3473
        %v3546 = vsub.f32 %v3359, %v3473
        %v3547 = vsub.f32 %v3361, %v3476
        %v3548 = vsub.f32 %v3363, %v3476
        %v3549 = vsub.f32 %v3367, %v3479
        %v3550 = vsub.f32 %v3369, %v3479
        %v3551 = vsub.f32 %v3371, %v3482
        %v3552 = vsub.f32 %v3373, %v3482
        %v3553 = vsub.f32 %v3377, %v3485
        %v3554 = vsub.f32 %v3379, %v3485
        %v3555 = vsub.f32 %v3381, %v3488
        %v3556 = vsub.f32 %v3383, %v3488
        %v3557 = vsub.f32 %v3387, %v3491
        %v3558 = vsub.f32 %v3389, %v3491
        %v3559 = vsub.f32 %v3391, %v3494
        %v3560 = vsub.f32 %v3393, %v3494
        %v3561 = vsub.f32 %v3397, %v3497
        %v3562 = vsub.f32 %v3399, %v3497
        %v3563 = vsub.f32 %v3401, %v3500
        %v3564 = vsub.f32 %v3403, %v3500
        %v3565 = vpack.c.bf16 %v3503, %v3501
        %v3566 = vpack.c.bf16 %v3504, %v3502
        %v3567 = vpack.c.bf16 %v3507, %v3505
        %v3568 = vpack.c.bf16 %v3508, %v3506
        %v3569 = vpack.c.bf16 %v3511, %v3509
        %v3570 = vpack.c.bf16 %v3512, %v3510
        %v3571 = vpack.c.bf16 %v3515, %v3513
        %v3572 = vpack.c.bf16 %v3516, %v3514
        %v3573 = vpack.c.bf16 %v3519, %v3517
        %v3574 = vpack.c.bf16 %v3520, %v3518
        %v3575 = vpack.c.bf16 %v3523, %v3521
        %v3576 = vpack.c.bf16 %v3524, %v3522
        %v3577 = vpack.c.bf16 %v3527, %v3525
        %v3578 = vpack.c.bf16 %v3528, %v3526
        %v3579 = vpack.c.bf16 %v3531, %v3529
        %v3580 = vpack.c.bf16 %v3532, %v3530
        %v3581 = vpack.c.bf16 %v3535, %v3533
        %v3582 = vpack.c.bf16 %v3536, %v3534
        %v3583 = vpack.c.bf16 %v3539, %v3537
        %v3584 = vpack.c.bf16 %v3540, %v3538
        %v3585 = vpack.c.bf16 %v3543, %v3541
        %v3586 = vpack.c.bf16 %v3544, %v3542
        %v3587 = vpack.c.bf16 %v3547, %v3545
        %v3588 = vpack.c.bf16 %v3548, %v3546
        %v3589 = vpack.c.bf16 %v3551, %v3549
        %v3590 = vpack.c.bf16 %v3552, %v3550
        %v3591 = vpack.c.bf16 %v3555, %v3553
        %v3592 = vpack.c.bf16 %v3556, %v3554
        %v3593 = vpack.c.bf16 %v3559, %v3557
        %v3594 = vpack.c.bf16 %v3560, %v3558
        %v3595 = vpack.c.bf16 %v3563, %v3561
        %v3596 = vpack.c.bf16 %v3564, %v3562
        %v3598 = vmul.bf16 %v3565, 1069105081
        %v3599 = vpow.bf16.pop %v3598
        %v3601 = vmul.bf16 %v3566, 1069105081
        %v3602 = vpow.bf16.pop %v3601
        %v3604 = vmul.bf16 %v3567, 1069105081
        %v3605 = vpow.bf16.pop %v3604
        %v3607 = vmul.bf16 %v3568, 1069105081
        %v3608 = vpow.bf16.pop %v3607
        %v3610 = vmul.bf16 %v3569, 1069105081
        %v3611 = vpow.bf16.pop %v3610
        %v3613 = vmul.bf16 %v3570, 1069105081
        %v3614 = vpow.bf16.pop %v3613
        %v3616 = vmul.bf16 %v3571, 1069105081
        %v3617 = vpow.bf16.pop %v3616
        %v3619 = vmul.bf16 %v3572, 1069105081
        %v3620 = vpow.bf16.pop %v3619
        %v3622 = vmul.bf16 %v3573, 1069105081
        %v3623 = vpow.bf16.pop %v3622
        %v3625 = vmul.bf16 %v3574, 1069105081
        %v3626 = vpow.bf16.pop %v3625
        %v3628 = vmul.bf16 %v3575, 1069105081
        %v3629 = vpow.bf16.pop %v3628
        %v3631 = vmul.bf16 %v3576, 1069105081
        %v3632 = vpow.bf16.pop %v3631
        %v3634 = vmul.bf16 %v3577, 1069105081
        %v3635 = vpow.bf16.pop %v3634
        %v3637 = vmul.bf16 %v3578, 1069105081
        %v3638 = vpow.bf16.pop %v3637
        %v3640 = vmul.bf16 %v3579, 1069105081
        %v3641 = vpow.bf16.pop %v3640
        %v3643 = vmul.bf16 %v3580, 1069105081
        %v3644 = vpow.bf16.pop %v3643
        %v3646 = vmul.bf16 %v3581, 1069105081
        %v3647 = vpow.bf16.pop %v3646
        %v3649 = vmul.bf16 %v3582, 1069105081
        %v3650 = vpow.bf16.pop %v3649
        %v3652 = vmul.bf16 %v3583, 1069105081
        %v3653 = vpow.bf16.pop %v3652
        %v3655 = vmul.bf16 %v3584, 1069105081
        %v3656 = vpow.bf16.pop %v3655
        %v3658 = vmul.bf16 %v3585, 1069105081
        %v3659 = vpow.bf16.pop %v3658
        %v3661 = vmul.bf16 %v3586, 1069105081
        %v3662 = vpow.bf16.pop %v3661
        %v3664 = vmul.bf16 %v3587, 1069105081
        %v3665 = vpow.bf16.pop %v3664
        %v3667 = vmul.bf16 %v3588, 1069105081
        %v3668 = vpow.bf16.pop %v3667
        %v3670 = vmul.bf16 %v3589, 1069105081
        %v3671 = vpow.bf16.pop %v3670
        %v3673 = vmul.bf16 %v3590, 1069105081
        %v3674 = vpow.bf16.pop %v3673
        %v3676 = vmul.bf16 %v3591, 1069105081
        %v3677 = vpow.bf16.pop %v3676
        %v3679 = vmul.bf16 %v3592, 1069105081
        %v3680 = vpow.bf16.pop %v3679
        %v3682 = vmul.bf16 %v3593, 1069105081
        %v3683 = vpow.bf16.pop %v3682
        %v3685 = vmul.bf16 %v3594, 1069105081
        %v3686 = vpow.bf16.pop %v3685
        %v3688 = vmul.bf16 %v3595, 1069105081
        %v3689 = vpow.bf16.pop %v3688
        %v3691 = vmul.bf16 %v3596, 1069105081
        %v3692 = vpow.bf16.pop %v3691
        %v3693 = vunpack.c.l.bf16 %v3599
        %v3694 = vunpack.c.l.bf16 %v3602
        %v3695 = vunpack.c.h.bf16 %v3599
        %v3696 = vunpack.c.h.bf16 %v3602
        %v3697 = vunpack.c.l.bf16 %v3605
        %v3698 = vunpack.c.l.bf16 %v3608
        %v3699 = vunpack.c.h.bf16 %v3605
        %v3700 = vunpack.c.h.bf16 %v3608
        %v3701 = vunpack.c.l.bf16 %v3611
        %v3702 = vunpack.c.l.bf16 %v3614
        %v3703 = vunpack.c.h.bf16 %v3611
        %v3704 = vunpack.c.h.bf16 %v3614
        %v3705 = vunpack.c.l.bf16 %v3617
        %v3706 = vunpack.c.l.bf16 %v3620
        %v3707 = vunpack.c.h.bf16 %v3617
        %v3708 = vunpack.c.h.bf16 %v3620
        %v3709 = vunpack.c.l.bf16 %v3623
        %v3710 = vunpack.c.l.bf16 %v3626
        %v3711 = vunpack.c.h.bf16 %v3623
        %v3712 = vunpack.c.h.bf16 %v3626
        %v3713 = vunpack.c.l.bf16 %v3629
        %v3714 = vunpack.c.l.bf16 %v3632
        %v3715 = vunpack.c.h.bf16 %v3629
        %v3716 = vunpack.c.h.bf16 %v3632
        %v3717 = vunpack.c.l.bf16 %v3635
        %v3718 = vunpack.c.l.bf16 %v3638
        %v3719 = vunpack.c.h.bf16 %v3635
        %v3720 = vunpack.c.h.bf16 %v3638
        %v3721 = vunpack.c.l.bf16 %v3641
        %v3722 = vunpack.c.l.bf16 %v3644
        %v3723 = vunpack.c.h.bf16 %v3641
        %v3724 = vunpack.c.h.bf16 %v3644
        %v3725 = vunpack.c.l.bf16 %v3647
        %v3726 = vunpack.c.l.bf16 %v3650
        %v3727 = vunpack.c.h.bf16 %v3647
        %v3728 = vunpack.c.h.bf16 %v3650
        %v3729 = vunpack.c.l.bf16 %v3653
        %v3730 = vunpack.c.l.bf16 %v3656
        %v3731 = vunpack.c.h.bf16 %v3653
        %v3732 = vunpack.c.h.bf16 %v3656
        %v3733 = vunpack.c.l.bf16 %v3659
        %v3734 = vunpack.c.l.bf16 %v3662
        %v3735 = vunpack.c.h.bf16 %v3659
        %v3736 = vunpack.c.h.bf16 %v3662
        %v3737 = vunpack.c.l.bf16 %v3665
        %v3738 = vunpack.c.l.bf16 %v3668
        %v3739 = vunpack.c.h.bf16 %v3665
        %v3740 = vunpack.c.h.bf16 %v3668
        %v3741 = vunpack.c.l.bf16 %v3671
        %v3742 = vunpack.c.l.bf16 %v3674
        %v3743 = vunpack.c.h.bf16 %v3671
        %v3744 = vunpack.c.h.bf16 %v3674
        %v3745 = vunpack.c.l.bf16 %v3677
        %v3746 = vunpack.c.l.bf16 %v3680
        %v3747 = vunpack.c.h.bf16 %v3677
        %v3748 = vunpack.c.h.bf16 %v3680
        %v3749 = vunpack.c.l.bf16 %v3683
        %v3750 = vunpack.c.l.bf16 %v3686
        %v3751 = vunpack.c.h.bf16 %v3683
        %v3752 = vunpack.c.h.bf16 %v3686
        %v3753 = vunpack.c.l.bf16 %v3689
        %v3754 = vunpack.c.l.bf16 %v3692
        %v3755 = vunpack.c.h.bf16 %v3689
        %v3756 = vunpack.c.h.bf16 %v3692
        %v3757 = vadd.f32 %v3693, %v3694
        %3758 = vadd.xlane.f32.xlu0 %v3757
        %v3759 = vpop.xlane.xlu0 %3758
        %v3760 = vadd.f32 %v3695, %v3696
        %3761 = vadd.xlane.f32.xlu0 %v3760
        %v3762 = vpop.xlane.xlu0 %3761
        %v3763 = vadd.f32 %v3697, %v3698
        %3764 = vadd.xlane.f32.xlu0 %v3763
        %v3765 = vpop.xlane.xlu0 %3764
        %v3766 = vadd.f32 %v3699, %v3700
        %3767 = vadd.xlane.f32.xlu0 %v3766
        %v3768 = vpop.xlane.xlu0 %3767
        %v3769 = vadd.f32 %v3701, %v3702
        %3770 = vadd.xlane.f32.xlu0 %v3769
        %v3771 = vpop.xlane.xlu0 %3770
        %v3772 = vadd.f32 %v3703, %v3704
        %3773 = vadd.xlane.f32.xlu0 %v3772
        %v3774 = vpop.xlane.xlu0 %3773
        %v3775 = vadd.f32 %v3705, %v3706
        %3776 = vadd.xlane.f32.xlu0 %v3775
        %v3777 = vpop.xlane.xlu0 %3776
        %v3778 = vadd.f32 %v3707, %v3708
        %3779 = vadd.xlane.f32.xlu0 %v3778
        %v3780 = vpop.xlane.xlu0 %3779
        %v3781 = vadd.f32 %v3709, %v3710
        %3782 = vadd.xlane.f32.xlu0 %v3781
        %v3783 = vpop.xlane.xlu0 %3782
        %v3784 = vadd.f32 %v3711, %v3712
        %3785 = vadd.xlane.f32.xlu0 %v3784
        %v3786 = vpop.xlane.xlu0 %3785
        %v3787 = vadd.f32 %v3713, %v3714
        %3788 = vadd.xlane.f32.xlu0 %v3787
        %v3789 = vpop.xlane.xlu0 %3788
        %v3790 = vadd.f32 %v3715, %v3716
        %3791 = vadd.xlane.f32.xlu0 %v3790
        %v3792 = vpop.xlane.xlu0 %3791
        %v3793 = vadd.f32 %v3717, %v3718
        %3794 = vadd.xlane.f32.xlu0 %v3793
        %v3795 = vpop.xlane.xlu0 %3794
        %v3796 = vadd.f32 %v3719, %v3720
        %3797 = vadd.xlane.f32.xlu0 %v3796
        %v3798 = vpop.xlane.xlu0 %3797
        %v3799 = vadd.f32 %v3721, %v3722
        %3800 = vadd.xlane.f32.xlu0 %v3799
        %v3801 = vpop.xlane.xlu0 %3800
        %v3802 = vadd.f32 %v3723, %v3724
        %3803 = vadd.xlane.f32.xlu0 %v3802
        %v3804 = vpop.xlane.xlu0 %3803
        %v3805 = vadd.f32 %v3725, %v3726
        %3806 = vadd.xlane.f32.xlu0 %v3805
        %v3807 = vpop.xlane.xlu0 %3806
        %v3808 = vadd.f32 %v3727, %v3728
        %3809 = vadd.xlane.f32.xlu0 %v3808
        %v3810 = vpop.xlane.xlu0 %3809
        %v3811 = vadd.f32 %v3729, %v3730
        %3812 = vadd.xlane.f32.xlu0 %v3811
        %v3813 = vpop.xlane.xlu0 %3812
        %v3814 = vadd.f32 %v3731, %v3732
        %3815 = vadd.xlane.f32.xlu0 %v3814
        %v3816 = vpop.xlane.xlu0 %3815
        %v3817 = vadd.f32 %v3733, %v3734
        %3818 = vadd.xlane.f32.xlu0 %v3817
        %v3819 = vpop.xlane.xlu0 %3818
        %v3820 = vadd.f32 %v3735, %v3736
        %3821 = vadd.xlane.f32.xlu0 %v3820
        %v3822 = vpop.xlane.xlu0 %3821
        %v3823 = vadd.f32 %v3737, %v3738
        %3824 = vadd.xlane.f32.xlu0 %v3823
        %v3825 = vpop.xlane.xlu0 %3824
        %v3826 = vadd.f32 %v3739, %v3740
        %3827 = vadd.xlane.f32.xlu0 %v3826
        %v3828 = vpop.xlane.xlu0 %3827
        %v3829 = vadd.f32 %v3741, %v3742
        %3830 = vadd.xlane.f32.xlu0 %v3829
        %v3831 = vpop.xlane.xlu0 %3830
        %v3832 = vadd.f32 %v3743, %v3744
        %3833 = vadd.xlane.f32.xlu0 %v3832
        %v3834 = vpop.xlane.xlu0 %3833
        %v3835 = vadd.f32 %v3745, %v3746
        %3836 = vadd.xlane.f32.xlu0 %v3835
        %v3837 = vpop.xlane.xlu0 %3836
        %v3838 = vadd.f32 %v3747, %v3748
        %3839 = vadd.xlane.f32.xlu0 %v3838
        %v3840 = vpop.xlane.xlu0 %3839
        %v3841 = vadd.f32 %v3749, %v3750
        %3842 = vadd.xlane.f32.xlu0 %v3841
        %v3843 = vpop.xlane.xlu0 %3842
        %v3844 = vadd.f32 %v3751, %v3752
        %3845 = vadd.xlane.f32.xlu0 %v3844
        %v3846 = vpop.xlane.xlu0 %3845
        %v3847 = vadd.f32 %v3753, %v3754
        %3848 = vadd.xlane.f32.xlu0 %v3847
        %v3849 = vpop.xlane.xlu0 %3848
        %v3850 = vadd.f32 %v3755, %v3756
        %3851 = vadd.xlane.f32.xlu0 %v3850
        %v3852 = vpop.xlane.xlu0 %3851
        %v3853 = vrcp.pop %v3759
        %v3854 = vrcp.pop %v3762
        %v3855 = vrcp.pop %v3765
        %v3856 = vrcp.pop %v3768
        %v3857 = vrcp.pop %v3771
        %v3858 = vrcp.pop %v3774
        %v3859 = vrcp.pop %v3777
        %v3860 = vrcp.pop %v3780
        %v3861 = vrcp.pop %v3783
        %v3862 = vrcp.pop %v3786
        %v3863 = vrcp.pop %v3789
        %v3864 = vrcp.pop %v3792
        %v3865 = vrcp.pop %v3795
        %v3866 = vrcp.pop %v3798
        %v3867 = vrcp.pop %v3801
        %v3868 = vrcp.pop %v3804
        %v3869 = vrcp.pop %v3807
        %v3870 = vrcp.pop %v3810
        %v3871 = vrcp.pop %v3813
        %v3872 = vrcp.pop %v3816
        %v3873 = vrcp.pop %v3819
        %v3874 = vrcp.pop %v3822
        %v3875 = vrcp.pop %v3825
        %v3876 = vrcp.pop %v3828
        %v3877 = vrcp.pop %v3831
        %v3878 = vrcp.pop %v3834
        %v3879 = vrcp.pop %v3837
        %v3880 = vrcp.pop %v3840
        %v3881 = vrcp.pop %v3843
        %v3882 = vrcp.pop %v3846
        %v3883 = vrcp.pop %v3849
        %v3884 = vrcp.pop %v3852
        %v3885 = vmul.f32 %v3693, %v3853
        %v3886 = vmul.f32 %v3694, %v3853
        %v3887 = vmul.f32 %v3695, %v3854
        %v3888 = vmul.f32 %v3696, %v3854
        %v3889 = vmul.f32 %v3697, %v3855
        %v3890 = vmul.f32 %v3698, %v3855
        %v3891 = vmul.f32 %v3699, %v3856
        %v3892 = vmul.f32 %v3700, %v3856
        %v3893 = vmul.f32 %v3701, %v3857
        %v3894 = vmul.f32 %v3702, %v3857
        %v3895 = vmul.f32 %v3703, %v3858
        %v3896 = vmul.f32 %v3704, %v3858
        %v3897 = vmul.f32 %v3705, %v3859
        %v3898 = vmul.f32 %v3706, %v3859
        %v3899 = vmul.f32 %v3707, %v3860
        %v3900 = vmul.f32 %v3708, %v3860
        %v3901 = vmul.f32 %v3709, %v3861
        %v3902 = vmul.f32 %v3710, %v3861
        %v3903 = vmul.f32 %v3711, %v3862
        %v3904 = vmul.f32 %v3712, %v3862
        %v3905 = vmul.f32 %v3713, %v3863
        %v3906 = vmul.f32 %v3714, %v3863
        %v3907 = vmul.f32 %v3715, %v3864
        %v3908 = vmul.f32 %v3716, %v3864
        %v3909 = vmul.f32 %v3717, %v3865
        %v3910 = vmul.f32 %v3718, %v3865
        %v3911 = vmul.f32 %v3719, %v3866
        %v3912 = vmul.f32 %v3720, %v3866
        %v3913 = vmul.f32 %v3721, %v3867
        %v3914 = vmul.f32 %v3722, %v3867
        %v3915 = vmul.f32 %v3723, %v3868
        %v3916 = vmul.f32 %v3724, %v3868
        %v3917 = vmul.f32 %v3725, %v3869
        %v3918 = vmul.f32 %v3726, %v3869
        %v3919 = vmul.f32 %v3727, %v3870
        %v3920 = vmul.f32 %v3728, %v3870
        %v3921 = vmul.f32 %v3729, %v3871
        %v3922 = vmul.f32 %v3730, %v3871
        %v3923 = vmul.f32 %v3731, %v3872
        %v3924 = vmul.f32 %v3732, %v3872
        %v3925 = vmul.f32 %v3733, %v3873
        %v3926 = vmul.f32 %v3734, %v3873
        %v3927 = vmul.f32 %v3735, %v3874
        %v3928 = vmul.f32 %v3736, %v3874
        %v3929 = vmul.f32 %v3737, %v3875
        %v3930 = vmul.f32 %v3738, %v3875
        %v3931 = vmul.f32 %v3739, %v3876
        %v3932 = vmul.f32 %v3740, %v3876
        %v3933 = vmul.f32 %v3741, %v3877
        %v3934 = vmul.f32 %v3742, %v3877
        %v3935 = vmul.f32 %v3743, %v3878
        %v3936 = vmul.f32 %v3744, %v3878
        %v3937 = vmul.f32 %v3745, %v3879
        %v3938 = vmul.f32 %v3746, %v3879
        %v3939 = vmul.f32 %v3747, %v3880
        %v3940 = vmul.f32 %v3748, %v3880
        %v3941 = vmul.f32 %v3749, %v3881
        %v3942 = vmul.f32 %v3750, %v3881
        %v3943 = vmul.f32 %v3751, %v3882
        %v3944 = vmul.f32 %v3752, %v3882
        %v3945 = vmul.f32 %v3753, %v3883
        %v3946 = vmul.f32 %v3754, %v3883
        %v3947 = vmul.f32 %v3755, %v3884
        %v3948 = vmul.f32 %v3756, %v3884
        %v3949 = vadd.f32 %v3885, %v3887
        %v3950 = vadd.f32 %v3949, %v3889
        %v3951 = vadd.f32 %v3950, %v3891
        %v3952 = vadd.f32 %v3951, %v3893
        %v3953 = vadd.f32 %v3952, %v3895
        %v3954 = vadd.f32 %v3953, %v3897
        %v3955 = vadd.f32 %v3954, %v3899
        %v3956 = vadd.f32 %v3955, %v3901
        %v3957 = vadd.f32 %v3956, %v3903
        %v3958 = vadd.f32 %v3957, %v3905
        %v3959 = vadd.f32 %v3958, %v3907
        %v3960 = vadd.f32 %v3959, %v3909
        %v3961 = vadd.f32 %v3960, %v3911
        %v3962 = vadd.f32 %v3961, %v3913
        %v3963 = vadd.f32 %v3962, %v3915
        %v3964 = vadd.f32 %v3963, %v3917
        %v3965 = vadd.f32 %v3964, %v3919
        %v3966 = vadd.f32 %v3965, %v3921
        %v3967 = vadd.f32 %v3966, %v3923
        %v3968 = vadd.f32 %v3967, %v3925
        %v3969 = vadd.f32 %v3968, %v3927
        %v3970 = vadd.f32 %v3969, %v3929
        %v3971 = vadd.f32 %v3970, %v3931
        %v3972 = vadd.f32 %v3971, %v3933
        %v3973 = vadd.f32 %v3972, %v3935
        %v3974 = vadd.f32 %v3973, %v3937
        %v3975 = vadd.f32 %v3974, %v3939
        %v3976 = vadd.f32 %v3975, %v3941
        %v3977 = vadd.f32 %v3976, %v3943
        %v3978 = vadd.f32 %v3977, %v3945
        %v3979 = vadd.f32 %v3978, %v3947
        %v3980 = vrot.slane %v3979, 4
        %v3981 = vadd.f32 %v3979, %v3980
        %v3982 = vrot.slane %v3981, 2
        %v3983 = vadd.f32 %v3981, %v3982
        %v3984 = vrot.slane %v3983, 1
        %v3985 = vadd.f32 %v3983, %v3984
        %v3986 = vadd.f32 %v3886, %v3888
        %v3987 = vadd.f32 %v3986, %v3890
        %v3988 = vadd.f32 %v3987, %v3892
        %v3989 = vadd.f32 %v3988, %v3894
        %v3990 = vadd.f32 %v3989, %v3896
        %v3991 = vadd.f32 %v3990, %v3898
        %v3992 = vadd.f32 %v3991, %v3900
        %v3993 = vadd.f32 %v3992, %v3902
        %v3994 = vadd.f32 %v3993, %v3904
        %v3995 = vadd.f32 %v3994, %v3906
        %v3996 = vadd.f32 %v3995, %v3908
        %v3997 = vadd.f32 %v3996, %v3910
        %v3998 = vadd.f32 %v3997, %v3912
        %v3999 = vadd.f32 %v3998, %v3914
        %v4000 = vadd.f32 %v3999, %v3916
        %v4001 = vadd.f32 %v4000, %v3918
        %v4002 = vadd.f32 %v4001, %v3920
        %v4003 = vadd.f32 %v4002, %v3922
        %v4004 = vadd.f32 %v4003, %v3924
        %v4005 = vadd.f32 %v4004, %v3926
        %v4006 = vadd.f32 %v4005, %v3928
        %v4007 = vadd.f32 %v4006, %v3930
        %v4008 = vadd.f32 %v4007, %v3932
        %v4009 = vadd.f32 %v4008, %v3934
        %v4010 = vadd.f32 %v4009, %v3936
        %v4011 = vadd.f32 %v4010, %v3938
        %v4012 = vadd.f32 %v4011, %v3940
        %v4013 = vadd.f32 %v4012, %v3942
        %v4014 = vadd.f32 %v4013, %v3944
        %v4015 = vadd.f32 %v4014, %v3946
        %v4016 = vadd.f32 %v4015, %v3948
        %v4017 = vrot.slane %v4016, 4
        %v4018 = vadd.f32 %v4016, %v4017
        %v4019 = vrot.slane %v4018, 2
        %v4020 = vadd.f32 %v4018, %v4019
        %v4021 = vrot.slane %v4020, 1
        %v4022 = vadd.f32 %v4020, %v4021
        %v4023 = vmul.f32 %v3985, %v1562
        %v4024 = vmul.f32 %v4022, %v1562
        %4025 = vrot.lane.b32.xlu0 %v431, 48
        %v4026 = vpop.permute.xlu0 %4025
        %4027 = vrot.lane.b32.xlu0 %v436, 48
        %v4028 = vpop.permute.xlu0 %4027
        %4029 = vrot.lane.b32.xlu0 %v441, 48
        %v4030 = vpop.permute.xlu0 %4029
        %4031 = vrot.lane.b32.xlu0 %v446, 48
        %v4032 = vpop.permute.xlu0 %4031
        %4033 = vrot.lane.b32.xlu0 %v451, 48
        %v4034 = vpop.permute.xlu0 %4033
        %4035 = vrot.lane.b32.xlu0 %v456, 48
        %v4036 = vpop.permute.xlu0 %4035
        %4037 = vrot.lane.b32.xlu0 %v461, 48
        %v4038 = vpop.permute.xlu0 %4037
        %4039 = vrot.lane.b32.xlu0 %v466, 48
        %v4040 = vpop.permute.xlu0 %4039
        %4041 = vrot.lane.b32.xlu0 %v471, 48
        %v4042 = vpop.permute.xlu0 %4041
        %4043 = vrot.lane.b32.xlu0 %v476, 48
        %v4044 = vpop.permute.xlu0 %4043
        %4045 = vrot.lane.b32.xlu0 %v481, 48
        %v4046 = vpop.permute.xlu0 %4045
        %4047 = vrot.lane.b32.xlu0 %v486, 48
        %v4048 = vpop.permute.xlu0 %4047
        %4049 = vrot.lane.b32.xlu0 %v491, 48
        %v4050 = vpop.permute.xlu0 %4049
        %4051 = vrot.lane.b32.xlu0 %v496, 48
        %v4052 = vpop.permute.xlu0 %4051
        %4053 = vrot.lane.b32.xlu0 %v501, 48
        %v4054 = vpop.permute.xlu0 %4053
        %4055 = vrot.lane.b32.xlu0 %v506, 48
        %v4056 = vpop.permute.xlu0 %4055
        %4057 = vrot.lane.b32.xlu0 %v511, 48
        %v4058 = vpop.permute.xlu0 %4057
        %4059 = vrot.lane.b32.xlu0 %v516, 48
        %v4060 = vpop.permute.xlu0 %4059
        %4061 = vrot.lane.b32.xlu0 %v521, 48
        %v4062 = vpop.permute.xlu0 %4061
        %4063 = vrot.lane.b32.xlu0 %v526, 48
        %v4064 = vpop.permute.xlu0 %4063
        %4065 = vrot.lane.b32.xlu0 %v531, 48
        %v4066 = vpop.permute.xlu0 %4065
        %4067 = vrot.lane.b32.xlu0 %v536, 48
        %v4068 = vpop.permute.xlu0 %4067
        %4069 = vrot.lane.b32.xlu0 %v541, 48
        %v4070 = vpop.permute.xlu0 %4069
        %4071 = vrot.lane.b32.xlu0 %v546, 48
        %v4072 = vpop.permute.xlu0 %4071
        %4073 = vrot.lane.b32.xlu0 %v551, 48
        %v4074 = vpop.permute.xlu0 %4073
        %4075 = vrot.lane.b32.xlu0 %v556, 48
        %v4076 = vpop.permute.xlu0 %4075
        %4077 = vrot.lane.b32.xlu0 %v561, 48
        %v4078 = vpop.permute.xlu0 %4077
        %4079 = vrot.lane.b32.xlu0 %v566, 48
        %v4080 = vpop.permute.xlu0 %4079
        %4081 = vrot.lane.b32.xlu0 %v571, 48
        %v4082 = vpop.permute.xlu0 %4081
        %4083 = vrot.lane.b32.xlu0 %v576, 48
        %v4084 = vpop.permute.xlu0 %4083
        %4085 = vrot.lane.b32.xlu0 %v581, 48
        %v4086 = vpop.permute.xlu0 %4085
        %4087 = vrot.lane.b32.xlu0 %v586, 48
        %v4088 = vpop.permute.xlu0 %4087
        %4121 = vmatprep.subr.mxu0 0.0
        %4122 = vmatpush1.msra.mxu0 %v4056
        %4123 = vmatprep.subr.mxu0 0.0
        %4124 = vmatpush1.msra.mxu0 %v4054
        %4125 = vmatprep.subr.mxu0 0.0
        %4126 = vmatpush1.msra.mxu0 %v4052
        %4127 = vmatprep.subr.mxu0 0.0
        %4128 = vmatpush1.msra.mxu0 %v4050
        %4129 = vmatprep.subr.mxu0 0.0
        %4130 = vmatpush1.msra.mxu0 %v4048
        %4131 = vmatprep.subr.mxu0 0.0
        %4132 = vmatpush1.msra.mxu0 %v4046
        %4133 = vmatprep.subr.mxu0 0.0
        %4134 = vmatpush1.msra.mxu0 %v4044
        %4135 = vmatprep.subr.mxu0 0.0
        %4136 = vmatpush1.msra.mxu0 %v4042
        %4137 = vmatprep.subr.mxu0 0.0
        %4138 = vmatpush1.msra.mxu0 %v4040
        %4139 = vmatprep.subr.mxu0 0.0
        %4140 = vmatpush1.msra.mxu0 %v4038
        %4141 = vmatprep.subr.mxu0 0.0
        %4142 = vmatpush1.msra.mxu0 %v4036
        %4143 = vmatprep.subr.mxu0 0.0
        %4144 = vmatpush1.msra.mxu0 %v4034
        %4145 = vmatprep.subr.mxu0 0.0
        %4146 = vmatpush1.msra.mxu0 %v4032
        %4147 = vmatprep.subr.mxu0 0.0
        %4148 = vmatpush1.msra.mxu0 %v4030
        %4149 = vmatprep.subr.mxu0 0.0
        %4150 = vmatpush1.msra.mxu0 %v4028
        %4151 = vmatprep.subr.mxu0 0.0
        %4152 = vmatpush1.msra.mxu0 %v4026
        %4153 = vmatprep.subr.mxu0 0.0
        %4154 = vmatpush2.msra.mxu0 %v4088
        %4155 = vmatprep.subr.mxu0 0.0
        %4156 = vmatpush2.msra.mxu0 %v4086
        %4157 = vmatprep.subr.mxu0 0.0
        %4158 = vmatpush2.msra.mxu0 %v4084
        %4159 = vmatprep.subr.mxu0 0.0
        %4160 = vmatpush2.msra.mxu0 %v4082
        %4161 = vmatprep.subr.mxu0 0.0
        %4162 = vmatpush2.msra.mxu0 %v4080
        %4163 = vmatprep.subr.mxu0 0.0
        %4164 = vmatpush2.msra.mxu0 %v4078
        %4165 = vmatprep.subr.mxu0 0.0
        %4166 = vmatpush2.msra.mxu0 %v4076
        %4167 = vmatprep.subr.mxu0 0.0
        %4168 = vmatpush2.msra.mxu0 %v4074
        %4169 = vmatprep.subr.mxu0 0.0
        %4170 = vmatpush2.msra.mxu0 %v4072
        %4171 = vmatprep.subr.mxu0 0.0
        %4172 = vmatpush2.msra.mxu0 %v4070
        %4173 = vmatprep.subr.mxu0 0.0
        %4174 = vmatpush2.msra.mxu0 %v4068
        %4175 = vmatprep.subr.mxu0 0.0
        %4176 = vmatpush2.msra.mxu0 %v4066
        %4177 = vmatprep.subr.mxu0 0.0
        %4178 = vmatpush2.msra.mxu0 %v4064
        %4179 = vmatprep.subr.mxu0 0.0
        %4180 = vmatpush2.msra.mxu0 %v4062
        %4181 = vmatprep.subr.mxu0 0.0
        %4182 = vmatpush2.msra.mxu0 %v4060
        %4183 = vmatprep.subr.mxu0 0.0
        %4184 = vmatpush2.msra.mxu0 %v4058
        %4185 = vmatprep.mubr.f32.mxu0 %v4024
        %4186 = vmatmul.mubr.f32.gmra.mxu0 %v4023
        %v4187 = vpop.f32.mrf.mxu0
        %v4188 = vadd.f32 0.0, %v4187
        %v4189 = vpop.f32.mrf.mxu0
        %4190 = vdwg.mxu0
        %v4191 = vld [vmem:[%s3 + $0x10] sm:$0xff]
        %v4193 = vsel %vm654, %v4188, 0
        %4195 = vmatprep.subr.mxu0 0.0
        %4196 = vmatpush1.msra.mxu0 0.0
        %4197 = vmatprep.subr.mxu0 0.0
        %4198 = vmatpush1.msra.mxu0 0.0
        %4199 = vmatprep.subr.mxu0 0.0
        %4200 = vmatpush1.msra.mxu0 0.0
        %4201 = vmatprep.subr.mxu0 0.0
        %4202 = vmatpush1.msra.mxu0 0.0
        %4203 = vmatprep.subr.mxu0 0.0
        %4204 = vmatpush1.msra.mxu0 0.0
        %4205 = vmatprep.subr.mxu0 0.0
        %4206 = vmatpush1.msra.mxu0 0.0
        %4207 = vmatprep.subr.mxu0 0.0
        %4208 = vmatpush1.msra.mxu0 0.0
        %4209 = vmatprep.subr.mxu0 0.0
        %4210 = vmatpush1.msra.mxu0 0.0
        %4211 = vmatprep.subr.mxu0 0.0
        %4212 = vmatpush1.msra.mxu0 0.0
        %4213 = vmatprep.subr.mxu0 0.0
        %4214 = vmatpush1.msra.mxu0 0.0
        %4215 = vmatprep.subr.mxu0 0.0
        %4216 = vmatpush1.msra.mxu0 0.0
        %4217 = vmatprep.subr.mxu0 0.0
        %4218 = vmatpush1.msra.mxu0 0.0
        %4219 = vmatprep.subr.mxu0 0.0
        %4220 = vmatpush1.msra.mxu0 0.0
        %4221 = vmatprep.subr.mxu0 0.0
        %4222 = vmatpush1.msra.mxu0 0.0
        %4223 = vmatprep.subr.mxu0 0.0
        %4224 = vmatpush1.msra.mxu0 0.0
        %4225 = vmatprep.subr.mxu0 0.0
        %4226 = vmatpush1.msra.mxu0 %v4191
        %4227 = vmatprep.subr.mxu0 0.0
        %4228 = vmatpush2.msra.mxu0 0.0
        %4229 = vmatprep.subr.mxu0 0.0
        %4230 = vmatpush2.msra.mxu0 0.0
        %4231 = vmatprep.subr.mxu0 0.0
        %4232 = vmatpush2.msra.mxu0 0.0
        %4233 = vmatprep.subr.mxu0 0.0
        %4234 = vmatpush2.msra.mxu0 0.0
        %4235 = vmatprep.subr.mxu0 0.0
        %4236 = vmatpush2.msra.mxu0 0.0
        %4237 = vmatprep.subr.mxu0 0.0
        %4238 = vmatpush2.msra.mxu0 0.0
        %4239 = vmatprep.subr.mxu0 0.0
        %4240 = vmatpush2.msra.mxu0 0.0
        %4241 = vmatprep.subr.mxu0 0.0
        %4242 = vmatpush2.msra.mxu0 0.0
        %4243 = vmatprep.subr.mxu0 0.0
        %4244 = vmatpush2.msra.mxu0 0.0
        %4245 = vmatprep.subr.mxu0 0.0
        %4246 = vmatpush2.msra.mxu0 0.0
        %4247 = vmatprep.subr.mxu0 0.0
        %4248 = vmatpush2.msra.mxu0 0.0
        %4249 = vmatprep.subr.mxu0 0.0
        %4250 = vmatpush2.msra.mxu0 0.0
        %4251 = vmatprep.subr.mxu0 0.0
        %4252 = vmatpush2.msra.mxu0 0.0
        %4253 = vmatprep.subr.mxu0 0.0
        %4254 = vmatpush2.msra.mxu0 0.0
        %4255 = vmatprep.subr.mxu0 0.0
        %4256 = vmatpush2.msra.mxu0 0.0
        %4257 = vmatprep.subr.mxu0 0.0
        %4258 = vmatpush2.msra.mxu0 0.0
        %4259 = vmatprep.mubr.f32.mxu0 0.0
        %4260 = vmatmul.mubr.f32.gmra.mxu0 %v4193
        %v4261 = vpop.f32.mrf.mxu0
        %v4262 = vadd.f32 0.0, %v4261
        %v4263 = vpop.f32.mrf.mxu0
        %4264 = vdwg.mxu0
        %v4265 = vadd.f32 %v3051, %v4262
        %4266 = vrot.lane.b32.xlu0 %v590, 104
        %v4267 = vpop.permute.xlu0 %4266
        %4268 = vrot.lane.b32.xlu0 %v591, 104
        %v4269 = vpop.permute.xlu0 %4268
        %4270 = vrot.lane.b32.xlu0 %v592, 104
        %v4271 = vpop.permute.xlu0 %4270
        %4272 = vrot.lane.b32.xlu0 %v593, 104
        %v4273 = vpop.permute.xlu0 %4272
        %4274 = vrot.lane.b32.xlu0 %v594, 104
        %v4275 = vpop.permute.xlu0 %4274
        %4276 = vrot.lane.b32.xlu0 %v595, 104
        %v4277 = vpop.permute.xlu0 %4276
        %4278 = vrot.lane.b32.xlu0 %v596, 104
        %v4279 = vpop.permute.xlu0 %4278
        %4280 = vrot.lane.b32.xlu0 %v597, 104
        %v4281 = vpop.permute.xlu0 %4280
        %4282 = vrot.lane.b32.xlu0 %v598, 104
        %v4283 = vpop.permute.xlu0 %4282
        %4284 = vrot.lane.b32.xlu0 %v599, 104
        %v4285 = vpop.permute.xlu0 %4284
        %4286 = vrot.lane.b32.xlu0 %v600, 104
        %v4287 = vpop.permute.xlu0 %4286
        %4288 = vrot.lane.b32.xlu0 %v601, 104
        %v4289 = vpop.permute.xlu0 %4288
        %4290 = vrot.lane.b32.xlu0 %v602, 104
        %v4291 = vpop.permute.xlu0 %4290
        %4292 = vrot.lane.b32.xlu0 %v603, 104
        %v4293 = vpop.permute.xlu0 %4292
        %4294 = vrot.lane.b32.xlu0 %v604, 104
        %v4295 = vpop.permute.xlu0 %4294
        %4296 = vrot.lane.b32.xlu0 %v605, 104
        %v4297 = vpop.permute.xlu0 %4296
        %4298 = vrot.lane.b32.xlu0 %v590, 72
        %v4299 = vpop.permute.xlu0 %4298
        %4300 = vrot.lane.b32.xlu0 %v591, 72
        %v4301 = vpop.permute.xlu0 %4300
        %4302 = vrot.lane.b32.xlu0 %v592, 72
        %v4303 = vpop.permute.xlu0 %4302
        %4304 = vrot.lane.b32.xlu0 %v593, 72
        %v4305 = vpop.permute.xlu0 %4304
        %4306 = vrot.lane.b32.xlu0 %v594, 72
        %v4307 = vpop.permute.xlu0 %4306
        %4308 = vrot.lane.b32.xlu0 %v595, 72
        %v4309 = vpop.permute.xlu0 %4308
        %4310 = vrot.lane.b32.xlu0 %v596, 72
        %v4311 = vpop.permute.xlu0 %4310
        %4312 = vrot.lane.b32.xlu0 %v597, 72
        %v4313 = vpop.permute.xlu0 %4312
        %4314 = vrot.lane.b32.xlu0 %v598, 72
        %v4315 = vpop.permute.xlu0 %4314
        %4316 = vrot.lane.b32.xlu0 %v599, 72
        %v4317 = vpop.permute.xlu0 %4316
        %4318 = vrot.lane.b32.xlu0 %v600, 72
        %v4319 = vpop.permute.xlu0 %4318
        %4320 = vrot.lane.b32.xlu0 %v601, 72
        %v4321 = vpop.permute.xlu0 %4320
        %4322 = vrot.lane.b32.xlu0 %v602, 72
        %v4323 = vpop.permute.xlu0 %4322
        %4324 = vrot.lane.b32.xlu0 %v603, 72
        %v4325 = vpop.permute.xlu0 %4324
        %4326 = vrot.lane.b32.xlu0 %v604, 72
        %v4327 = vpop.permute.xlu0 %4326
        %4328 = vrot.lane.b32.xlu0 %v605, 72
        %v4329 = vpop.permute.xlu0 %4328
        %v4331 = vsel %vm654, %v4267, 0
        %v4334 = vsel %vm654, %v4269, 0
        %v4337 = vsel %vm654, %v4271, 0
        %v4340 = vsel %vm654, %v4273, 0
        %v4343 = vsel %vm654, %v4275, 0
        %v4346 = vsel %vm654, %v4277, 0
        %v4349 = vsel %vm654, %v4279, 0
        %v4352 = vsel %vm654, %v4281, 0
        %v4355 = vsel %vm654, %v4283, 0
        %v4358 = vsel %vm654, %v4285, 0
        %v4361 = vsel %vm654, %v4287, 0
        %v4364 = vsel %vm654, %v4289, 0
        %v4367 = vsel %vm654, %v4291, 0
        %v4370 = vsel %vm654, %v4293, 0
        %v4373 = vsel %vm654, %v4295, 0
        %v4376 = vsel %vm654, %v4297, 0
        %v4379 = vsel %vm654, %v4299, 0
        %v4382 = vsel %vm654, %v4301, 0
        %v4385 = vsel %vm654, %v4303, 0
        %v4388 = vsel %vm654, %v4305, 0
        %v4391 = vsel %vm654, %v4307, 0
        %v4394 = vsel %vm654, %v4309, 0
        %v4397 = vsel %vm654, %v4311, 0
        %v4400 = vsel %vm654, %v4313, 0
        %v4403 = vsel %vm654, %v4315, 0
        %v4406 = vsel %vm654, %v4317, 0
        %v4409 = vsel %vm654, %v4319, 0
        %v4412 = vsel %vm654, %v4321, 0
        %v4415 = vsel %vm654, %v4323, 0
        %v4418 = vsel %vm654, %v4325, 0
        %v4421 = vsel %vm654, %v4327, 0
        %v4424 = vsel %vm654, %v4329, 0
        %4426 = vmatprep.subr.bf16.mxu0 0
        %4427 = vmatpush1.bf16.xpose.msra.mxu0 %v4400
        %4428 = vmatprep.subr.bf16.mxu0 0
        %4429 = vmatpush1.bf16.xpose.msra.mxu0 %v4397
        %4430 = vmatprep.subr.bf16.mxu0 0
        %4431 = vmatpush1.bf16.xpose.msra.mxu0 %v4394
        %4432 = vmatprep.subr.bf16.mxu0 0
        %4433 = vmatpush1.bf16.xpose.msra.mxu0 %v4391
        %4434 = vmatprep.subr.bf16.mxu0 0
        %4435 = vmatpush1.bf16.xpose.msra.mxu0 %v4388
        %4436 = vmatprep.subr.bf16.mxu0 0
        %4437 = vmatpush1.bf16.xpose.msra.mxu0 %v4385
        %4438 = vmatprep.subr.bf16.mxu0 0
        %4439 = vmatpush1.bf16.xpose.msra.mxu0 %v4382
        %4440 = vmatprep.subr.bf16.mxu0 0
        %4441 = vmatpush1.bf16.xpose.msra.mxu0 %v4379
        %4442 = vmatprep.subr.bf16.mxu0 0
        %4443 = vmatpush2.bf16.xpose.msra.mxu0 %v4424
        %4444 = vmatprep.subr.bf16.mxu0 0
        %4445 = vmatpush2.bf16.xpose.msra.mxu0 %v4421
        %4446 = vmatprep.subr.bf16.mxu0 0
        %4447 = vmatpush2.bf16.xpose.msra.mxu0 %v4418
        %4448 = vmatprep.subr.bf16.mxu0 0
        %4449 = vmatpush2.bf16.xpose.msra.mxu0 %v4415
        %4450 = vmatprep.subr.bf16.mxu0 0
        %4451 = vmatpush2.bf16.xpose.msra.mxu0 %v4412
        %4452 = vmatprep.subr.bf16.mxu0 0
        %4453 = vmatpush2.bf16.xpose.msra.mxu0 %v4409
        %4454 = vmatprep.subr.bf16.mxu0 0
        %4455 = vmatpush2.bf16.xpose.msra.mxu0 %v4406
        %4456 = vmatprep.subr.bf16.mxu0 0
        %4457 = vmatpush2.bf16.xpose.msra.mxu0 %v4403
        %4458 = vmatprep.mubr.bf16.mxu0 0
        %4459 = vmatmul.mubr.bf16.gmra.mxu0 %v4331
        %v4460 = vpop.f32.mrf.mxu0
        %v4461 = vadd.f32 0.0, %v4460
        %v4462 = vpop.f32.mrf.mxu0
        %v4463 = vadd.f32 0.0, %v4462
        %v4464 = vpop.f32.mrf.mxu0
        %v4465 = vadd.f32 0.0, %v4464
        %v4466 = vpop.f32.mrf.mxu0
        %v4467 = vadd.f32 0.0, %v4466
        %4468 = vmatprep.mubr.bf16.mxu0 0
        %4469 = vmatmul.mubr.bf16.gmra.mxu0 %v4334
        %v4470 = vpop.f32.mrf.mxu0
        %v4471 = vadd.f32 0.0, %v4470
        %v4472 = vpop.f32.mrf.mxu0
        %v4473 = vadd.f32 0.0, %v4472
        %v4474 = vpop.f32.mrf.mxu0
        %v4475 = vadd.f32 0.0, %v4474
        %v4476 = vpop.f32.mrf.mxu0
        %v4477 = vadd.f32 0.0, %v4476
        %4478 = vmatprep.mubr.bf16.mxu0 0
        %4479 = vmatmul.mubr.bf16.gmra.mxu0 %v4337
        %v4480 = vpop.f32.mrf.mxu0
        %v4481 = vadd.f32 0.0, %v4480
        %v4482 = vpop.f32.mrf.mxu0
        %v4483 = vadd.f32 0.0, %v4482
        %v4484 = vpop.f32.mrf.mxu0
        %v4485 = vadd.f32 0.0, %v4484
        %v4486 = vpop.f32.mrf.mxu0
        %v4487 = vadd.f32 0.0, %v4486
        %4488 = vmatprep.mubr.bf16.mxu0 0
        %4489 = vmatmul.mubr.bf16.gmra.mxu0 %v4340
        %v4490 = vpop.f32.mrf.mxu0
        %v4491 = vadd.f32 0.0, %v4490
        %v4492 = vpop.f32.mrf.mxu0
        %v4493 = vadd.f32 0.0, %v4492
        %v4494 = vpop.f32.mrf.mxu0
        %v4495 = vadd.f32 0.0, %v4494
        %v4496 = vpop.f32.mrf.mxu0
        %v4497 = vadd.f32 0.0, %v4496
        %4498 = vmatprep.mubr.bf16.mxu0 0
        %4499 = vmatmul.mubr.bf16.gmra.mxu0 %v4343
        %v4500 = vpop.f32.mrf.mxu0
        %v4501 = vadd.f32 0.0, %v4500
        %v4502 = vpop.f32.mrf.mxu0
        %v4503 = vadd.f32 0.0, %v4502
        %v4504 = vpop.f32.mrf.mxu0
        %v4505 = vadd.f32 0.0, %v4504
        %v4506 = vpop.f32.mrf.mxu0
        %v4507 = vadd.f32 0.0, %v4506
        %4508 = vmatprep.mubr.bf16.mxu0 0
        %4509 = vmatmul.mubr.bf16.gmra.mxu0 %v4346
        %v4510 = vpop.f32.mrf.mxu0
        %v4511 = vadd.f32 0.0, %v4510
        %v4512 = vpop.f32.mrf.mxu0
        %v4513 = vadd.f32 0.0, %v4512
        %v4514 = vpop.f32.mrf.mxu0
        %v4515 = vadd.f32 0.0, %v4514
        %v4516 = vpop.f32.mrf.mxu0
        %v4517 = vadd.f32 0.0, %v4516
        %4518 = vmatprep.mubr.bf16.mxu0 0
        %4519 = vmatmul.mubr.bf16.gmra.mxu0 %v4349
        %v4520 = vpop.f32.mrf.mxu0
        %v4521 = vadd.f32 0.0, %v4520
        %v4522 = vpop.f32.mrf.mxu0
        %v4523 = vadd.f32 0.0, %v4522
        %v4524 = vpop.f32.mrf.mxu0
        %v4525 = vadd.f32 0.0, %v4524
        %v4526 = vpop.f32.mrf.mxu0
        %v4527 = vadd.f32 0.0, %v4526
        %4528 = vmatprep.mubr.bf16.mxu0 0
        %4529 = vmatmul.mubr.bf16.gmra.mxu0 %v4352
        %v4530 = vpop.f32.mrf.mxu0
        %v4531 = vadd.f32 0.0, %v4530
        %v4532 = vpop.f32.mrf.mxu0
        %v4533 = vadd.f32 0.0, %v4532
        %v4534 = vpop.f32.mrf.mxu0
        %v4535 = vadd.f32 0.0, %v4534
        %v4536 = vpop.f32.mrf.mxu0
        %v4537 = vadd.f32 0.0, %v4536
        %4538 = vmatprep.mubr.bf16.mxu0 0
        %4539 = vmatmul.mubr.bf16.gmra.mxu0 %v4355
        %v4540 = vpop.f32.mrf.mxu0
        %v4541 = vadd.f32 0.0, %v4540
        %v4542 = vpop.f32.mrf.mxu0
        %v4543 = vadd.f32 0.0, %v4542
        %v4544 = vpop.f32.mrf.mxu0
        %v4545 = vadd.f32 0.0, %v4544
        %v4546 = vpop.f32.mrf.mxu0
        %v4547 = vadd.f32 0.0, %v4546
        %4548 = vmatprep.mubr.bf16.mxu0 0
        %4549 = vmatmul.mubr.bf16.gmra.mxu0 %v4358
        %v4550 = vpop.f32.mrf.mxu0
        %v4551 = vadd.f32 0.0, %v4550
        %v4552 = vpop.f32.mrf.mxu0
        %v4553 = vadd.f32 0.0, %v4552
        %v4554 = vpop.f32.mrf.mxu0
        %v4555 = vadd.f32 0.0, %v4554
        %v4556 = vpop.f32.mrf.mxu0
        %v4557 = vadd.f32 0.0, %v4556
        %4558 = vmatprep.mubr.bf16.mxu0 0
        %4559 = vmatmul.mubr.bf16.gmra.mxu0 %v4361
        %v4560 = vpop.f32.mrf.mxu0
        %v4561 = vadd.f32 0.0, %v4560
        %v4562 = vpop.f32.mrf.mxu0
        %v4563 = vadd.f32 0.0, %v4562
        %v4564 = vpop.f32.mrf.mxu0
        %v4565 = vadd.f32 0.0, %v4564
        %v4566 = vpop.f32.mrf.mxu0
        %v4567 = vadd.f32 0.0, %v4566
        %4568 = vmatprep.mubr.bf16.mxu0 0
        %4569 = vmatmul.mubr.bf16.gmra.mxu0 %v4364
        %v4570 = vpop.f32.mrf.mxu0
        %v4571 = vadd.f32 0.0, %v4570
        %v4572 = vpop.f32.mrf.mxu0
        %v4573 = vadd.f32 0.0, %v4572
        %v4574 = vpop.f32.mrf.mxu0
        %v4575 = vadd.f32 0.0, %v4574
        %v4576 = vpop.f32.mrf.mxu0
        %v4577 = vadd.f32 0.0, %v4576
        %4578 = vmatprep.mubr.bf16.mxu0 0
        %4579 = vmatmul.mubr.bf16.gmra.mxu0 %v4367
        %v4580 = vpop.f32.mrf.mxu0
        %v4581 = vadd.f32 0.0, %v4580
        %v4582 = vpop.f32.mrf.mxu0
        %v4583 = vadd.f32 0.0, %v4582
        %v4584 = vpop.f32.mrf.mxu0
        %v4585 = vadd.f32 0.0, %v4584
        %v4586 = vpop.f32.mrf.mxu0
        %v4587 = vadd.f32 0.0, %v4586
        %4588 = vmatprep.mubr.bf16.mxu0 0
        %4589 = vmatmul.mubr.bf16.gmra.mxu0 %v4370
        %v4590 = vpop.f32.mrf.mxu0
        %v4591 = vadd.f32 0.0, %v4590
        %v4592 = vpop.f32.mrf.mxu0
        %v4593 = vadd.f32 0.0, %v4592
        %v4594 = vpop.f32.mrf.mxu0
        %v4595 = vadd.f32 0.0, %v4594
        %v4596 = vpop.f32.mrf.mxu0
        %v4597 = vadd.f32 0.0, %v4596
        %4598 = vmatprep.mubr.bf16.mxu0 0
        %4599 = vmatmul.mubr.bf16.gmra.mxu0 %v4373
        %v4600 = vpop.f32.mrf.mxu0
        %v4601 = vadd.f32 0.0, %v4600
        %v4602 = vpop.f32.mrf.mxu0
        %v4603 = vadd.f32 0.0, %v4602
        %v4604 = vpop.f32.mrf.mxu0
        %v4605 = vadd.f32 0.0, %v4604
        %v4606 = vpop.f32.mrf.mxu0
        %v4607 = vadd.f32 0.0, %v4606
        %4608 = vmatprep.mubr.bf16.mxu0 0
        %4609 = vmatmul.mubr.bf16.gmra.mxu0 %v4376
        %v4610 = vpop.f32.mrf.mxu0
        %v4611 = vadd.f32 0.0, %v4610
        %v4612 = vpop.f32.mrf.mxu0
        %v4613 = vadd.f32 0.0, %v4612
        %v4614 = vpop.f32.mrf.mxu0
        %v4615 = vadd.f32 0.0, %v4614
        %v4616 = vpop.f32.mrf.mxu0
        %v4617 = vadd.f32 0.0, %v4616
        %4618 = vdwg.mxu0
        %v4619 = vmax.f32 %v4461, %v4463
        %4620 = vmax.xlane.f32.xlu0 %v4619
        %v4621 = vpop.xlane.xlu0 %4620
        %v4622 = vmax.f32 %v4465, %v4467
        %4623 = vmax.xlane.f32.xlu0 %v4622
        %v4624 = vpop.xlane.xlu0 %4623
        %v4625 = vmax.f32 %v4471, %v4473
        %4626 = vmax.xlane.f32.xlu0 %v4625
        %v4627 = vpop.xlane.xlu0 %4626
        %v4628 = vmax.f32 %v4475, %v4477
        %4629 = vmax.xlane.f32.xlu0 %v4628
        %v4630 = vpop.xlane.xlu0 %4629
        %v4631 = vmax.f32 %v4481, %v4483
        %4632 = vmax.xlane.f32.xlu0 %v4631
        %v4633 = vpop.xlane.xlu0 %4632
        %v4634 = vmax.f32 %v4485, %v4487
        %4635 = vmax.xlane.f32.xlu0 %v4634
        %v4636 = vpop.xlane.xlu0 %4635
        %v4637 = vmax.f32 %v4491, %v4493
        %4638 = vmax.xlane.f32.xlu0 %v4637
        %v4639 = vpop.xlane.xlu0 %4638
        %v4640 = vmax.f32 %v4495, %v4497
        %4641 = vmax.xlane.f32.xlu0 %v4640
        %v4642 = vpop.xlane.xlu0 %4641
        %v4643 = vmax.f32 %v4501, %v4503
        %4644 = vmax.xlane.f32.xlu0 %v4643
        %v4645 = vpop.xlane.xlu0 %4644
        %v4646 = vmax.f32 %v4505, %v4507
        %4647 = vmax.xlane.f32.xlu0 %v4646
        %v4648 = vpop.xlane.xlu0 %4647
        %v4649 = vmax.f32 %v4511, %v4513
        %4650 = vmax.xlane.f32.xlu0 %v4649
        %v4651 = vpop.xlane.xlu0 %4650
        %v4652 = vmax.f32 %v4515, %v4517
        %4653 = vmax.xlane.f32.xlu0 %v4652
        %v4654 = vpop.xlane.xlu0 %4653
        %v4655 = vmax.f32 %v4521, %v4523
        %4656 = vmax.xlane.f32.xlu0 %v4655
        %v4657 = vpop.xlane.xlu0 %4656
        %v4658 = vmax.f32 %v4525, %v4527
        %4659 = vmax.xlane.f32.xlu0 %v4658
        %v4660 = vpop.xlane.xlu0 %4659
        %v4661 = vmax.f32 %v4531, %v4533
        %4662 = vmax.xlane.f32.xlu0 %v4661
        %v4663 = vpop.xlane.xlu0 %4662
        %v4664 = vmax.f32 %v4535, %v4537
        %4665 = vmax.xlane.f32.xlu0 %v4664
        %v4666 = vpop.xlane.xlu0 %4665
        %v4667 = vmax.f32 %v4541, %v4543
        %4668 = vmax.xlane.f32.xlu0 %v4667
        %v4669 = vpop.xlane.xlu0 %4668
        %v4670 = vmax.f32 %v4545, %v4547
        %4671 = vmax.xlane.f32.xlu0 %v4670
        %v4672 = vpop.xlane.xlu0 %4671
        %v4673 = vmax.f32 %v4551, %v4553
        %4674 = vmax.xlane.f32.xlu0 %v4673
        %v4675 = vpop.xlane.xlu0 %4674
        %v4676 = vmax.f32 %v4555, %v4557
        %4677 = vmax.xlane.f32.xlu0 %v4676
        %v4678 = vpop.xlane.xlu0 %4677
        %v4679 = vmax.f32 %v4561, %v4563
        %4680 = vmax.xlane.f32.xlu0 %v4679
        %v4681 = vpop.xlane.xlu0 %4680
        %v4682 = vmax.f32 %v4565, %v4567
        %4683 = vmax.xlane.f32.xlu0 %v4682
        %v4684 = vpop.xlane.xlu0 %4683
        %v4685 = vmax.f32 %v4571, %v4573
        %4686 = vmax.xlane.f32.xlu0 %v4685
        %v4687 = vpop.xlane.xlu0 %4686
        %v4688 = vmax.f32 %v4575, %v4577
        %4689 = vmax.xlane.f32.xlu0 %v4688
        %v4690 = vpop.xlane.xlu0 %4689
        %v4691 = vmax.f32 %v4581, %v4583
        %4692 = vmax.xlane.f32.xlu0 %v4691
        %v4693 = vpop.xlane.xlu0 %4692
        %v4694 = vmax.f32 %v4585, %v4587
        %4695 = vmax.xlane.f32.xlu0 %v4694
        %v4696 = vpop.xlane.xlu0 %4695
        %v4697 = vmax.f32 %v4591, %v4593
        %4698 = vmax.xlane.f32.xlu0 %v4697
        %v4699 = vpop.xlane.xlu0 %4698
        %v4700 = vmax.f32 %v4595, %v4597
        %4701 = vmax.xlane.f32.xlu0 %v4700
        %v4702 = vpop.xlane.xlu0 %4701
        %v4703 = vmax.f32 %v4601, %v4603
        %4704 = vmax.xlane.f32.xlu0 %v4703
        %v4705 = vpop.xlane.xlu0 %4704
        %v4706 = vmax.f32 %v4605, %v4607
        %4707 = vmax.xlane.f32.xlu0 %v4706
        %v4708 = vpop.xlane.xlu0 %4707
        %v4709 = vmax.f32 %v4611, %v4613
        %4710 = vmax.xlane.f32.xlu0 %v4709
        %v4711 = vpop.xlane.xlu0 %4710
        %v4712 = vmax.f32 %v4615, %v4617
        %4713 = vmax.xlane.f32.xlu0 %v4712
        %v4714 = vpop.xlane.xlu0 %4713
        %v4715 = vsub.f32 %v4461, %v4621
        %v4716 = vsub.f32 %v4463, %v4621
        %v4717 = vsub.f32 %v4465, %v4624
        %v4718 = vsub.f32 %v4467, %v4624
        %v4719 = vsub.f32 %v4471, %v4627
        %v4720 = vsub.f32 %v4473, %v4627
        %v4721 = vsub.f32 %v4475, %v4630
        %v4722 = vsub.f32 %v4477, %v4630
        %v4723 = vsub.f32 %v4481, %v4633
        %v4724 = vsub.f32 %v4483, %v4633
        %v4725 = vsub.f32 %v4485, %v4636
        %v4726 = vsub.f32 %v4487, %v4636
        %v4727 = vsub.f32 %v4491, %v4639
        %v4728 = vsub.f32 %v4493, %v4639
        %v4729 = vsub.f32 %v4495, %v4642
        %v4730 = vsub.f32 %v4497, %v4642
        %v4731 = vsub.f32 %v4501, %v4645
        %v4732 = vsub.f32 %v4503, %v4645
        %v4733 = vsub.f32 %v4505, %v4648
        %v4734 = vsub.f32 %v4507, %v4648
        %v4735 = vsub.f32 %v4511, %v4651
        %v4736 = vsub.f32 %v4513, %v4651
        %v4737 = vsub.f32 %v4515, %v4654
        %v4738 = vsub.f32 %v4517, %v4654
        %v4739 = vsub.f32 %v4521, %v4657
        %v4740 = vsub.f32 %v4523, %v4657
        %v4741 = vsub.f32 %v4525, %v4660
        %v4742 = vsub.f32 %v4527, %v4660
        %v4743 = vsub.f32 %v4531, %v4663
        %v4744 = vsub.f32 %v4533, %v4663
        %v4745 = vsub.f32 %v4535, %v4666
        %v4746 = vsub.f32 %v4537, %v4666
        %v4747 = vsub.f32 %v4541, %v4669
        %v4748 = vsub.f32 %v4543, %v4669
        %v4749 = vsub.f32 %v4545, %v4672
        %v4750 = vsub.f32 %v4547, %v4672
        %v4751 = vsub.f32 %v4551, %v4675
        %v4752 = vsub.f32 %v4553, %v4675
        %v4753 = vsub.f32 %v4555, %v4678
        %v4754 = vsub.f32 %v4557, %v4678
        %v4755 = vsub.f32 %v4561, %v4681
        %v4756 = vsub.f32 %v4563, %v4681
        %v4757 = vsub.f32 %v4565, %v4684
        %v4758 = vsub.f32 %v4567, %v4684
        %v4759 = vsub.f32 %v4571, %v4687
        %v4760 = vsub.f32 %v4573, %v4687
        %v4761 = vsub.f32 %v4575, %v4690
        %v4762 = vsub.f32 %v4577, %v4690
        %v4763 = vsub.f32 %v4581, %v4693
        %v4764 = vsub.f32 %v4583, %v4693
        %v4765 = vsub.f32 %v4585, %v4696
        %v4766 = vsub.f32 %v4587, %v4696
        %v4767 = vsub.f32 %v4591, %v4699
        %v4768 = vsub.f32 %v4593, %v4699
        %v4769 = vsub.f32 %v4595, %v4702
        %v4770 = vsub.f32 %v4597, %v4702
        %v4771 = vsub.f32 %v4601, %v4705
        %v4772 = vsub.f32 %v4603, %v4705
        %v4773 = vsub.f32 %v4605, %v4708
        %v4774 = vsub.f32 %v4607, %v4708
        %v4775 = vsub.f32 %v4611, %v4711
        %v4776 = vsub.f32 %v4613, %v4711
        %v4777 = vsub.f32 %v4615, %v4714
        %v4778 = vsub.f32 %v4617, %v4714
        %v4779 = vpack.c.bf16 %v4717, %v4715
        %v4780 = vpack.c.bf16 %v4718, %v4716
        %v4781 = vpack.c.bf16 %v4721, %v4719
        %v4782 = vpack.c.bf16 %v4722, %v4720
        %v4783 = vpack.c.bf16 %v4725, %v4723
        %v4784 = vpack.c.bf16 %v4726, %v4724
        %v4785 = vpack.c.bf16 %v4729, %v4727
        %v4786 = vpack.c.bf16 %v4730, %v4728
        %v4787 = vpack.c.bf16 %v4733, %v4731
        %v4788 = vpack.c.bf16 %v4734, %v4732
        %v4789 = vpack.c.bf16 %v4737, %v4735
        %v4790 = vpack.c.bf16 %v4738, %v4736
        %v4791 = vpack.c.bf16 %v4741, %v4739
        %v4792 = vpack.c.bf16 %v4742, %v4740
        %v4793 = vpack.c.bf16 %v4745, %v4743
        %v4794 = vpack.c.bf16 %v4746, %v4744
        %v4795 = vpack.c.bf16 %v4749, %v4747
        %v4796 = vpack.c.bf16 %v4750, %v4748
        %v4797 = vpack.c.bf16 %v4753, %v4751
        %v4798 = vpack.c.bf16 %v4754, %v4752
        %v4799 = vpack.c.bf16 %v4757, %v4755
        %v4800 = vpack.c.bf16 %v4758, %v4756
        %v4801 = vpack.c.bf16 %v4761, %v4759
        %v4802 = vpack.c.bf16 %v4762, %v4760
        %v4803 = vpack.c.bf16 %v4765, %v4763
        %v4804 = vpack.c.bf16 %v4766, %v4764
        %v4805 = vpack.c.bf16 %v4769, %v4767
        %v4806 = vpack.c.bf16 %v4770, %v4768
        %v4807 = vpack.c.bf16 %v4773, %v4771
        %v4808 = vpack.c.bf16 %v4774, %v4772
        %v4809 = vpack.c.bf16 %v4777, %v4775
        %v4810 = vpack.c.bf16 %v4778, %v4776
        %v4812 = vmul.bf16 %v4779, 1069105081
        %v4813 = vpow.bf16.pop %v4812
        %v4815 = vmul.bf16 %v4780, 1069105081
        %v4816 = vpow.bf16.pop %v4815
        %v4818 = vmul.bf16 %v4781, 1069105081
        %v4819 = vpow.bf16.pop %v4818
        %v4821 = vmul.bf16 %v4782, 1069105081
        %v4822 = vpow.bf16.pop %v4821
        %v4824 = vmul.bf16 %v4783, 1069105081
        %v4825 = vpow.bf16.pop %v4824
        %v4827 = vmul.bf16 %v4784, 1069105081
        %v4828 = vpow.bf16.pop %v4827
        %v4830 = vmul.bf16 %v4785, 1069105081
        %v4831 = vpow.bf16.pop %v4830
        %v4833 = vmul.bf16 %v4786, 1069105081
        %v4834 = vpow.bf16.pop %v4833
        %v4836 = vmul.bf16 %v4787, 1069105081
        %v4837 = vpow.bf16.pop %v4836
        %v4839 = vmul.bf16 %v4788, 1069105081
        %v4840 = vpow.bf16.pop %v4839
        %v4842 = vmul.bf16 %v4789, 1069105081
        %v4843 = vpow.bf16.pop %v4842
        %v4845 = vmul.bf16 %v4790, 1069105081
        %v4846 = vpow.bf16.pop %v4845
        %v4848 = vmul.bf16 %v4791, 1069105081
        %v4849 = vpow.bf16.pop %v4848
        %v4851 = vmul.bf16 %v4792, 1069105081
        %v4852 = vpow.bf16.pop %v4851
        %v4854 = vmul.bf16 %v4793, 1069105081
        %v4855 = vpow.bf16.pop %v4854
        %v4857 = vmul.bf16 %v4794, 1069105081
        %v4858 = vpow.bf16.pop %v4857
        %v4860 = vmul.bf16 %v4795, 1069105081
        %v4861 = vpow.bf16.pop %v4860
        %v4863 = vmul.bf16 %v4796, 1069105081
        %v4864 = vpow.bf16.pop %v4863
        %v4866 = vmul.bf16 %v4797, 1069105081
        %v4867 = vpow.bf16.pop %v4866
        %v4869 = vmul.bf16 %v4798, 1069105081
        %v4870 = vpow.bf16.pop %v4869
        %v4872 = vmul.bf16 %v4799, 1069105081
        %v4873 = vpow.bf16.pop %v4872
        %v4875 = vmul.bf16 %v4800, 1069105081
        %v4876 = vpow.bf16.pop %v4875
        %v4878 = vmul.bf16 %v4801, 1069105081
        %v4879 = vpow.bf16.pop %v4878
        %v4881 = vmul.bf16 %v4802, 1069105081
        %v4882 = vpow.bf16.pop %v4881
        %v4884 = vmul.bf16 %v4803, 1069105081
        %v4885 = vpow.bf16.pop %v4884
        %v4887 = vmul.bf16 %v4804, 1069105081
        %v4888 = vpow.bf16.pop %v4887
        %v4890 = vmul.bf16 %v4805, 1069105081
        %v4891 = vpow.bf16.pop %v4890
        %v4893 = vmul.bf16 %v4806, 1069105081
        %v4894 = vpow.bf16.pop %v4893
        %v4896 = vmul.bf16 %v4807, 1069105081
        %v4897 = vpow.bf16.pop %v4896
        %v4899 = vmul.bf16 %v4808, 1069105081
        %v4900 = vpow.bf16.pop %v4899
        %v4902 = vmul.bf16 %v4809, 1069105081
        %v4903 = vpow.bf16.pop %v4902
        %v4905 = vmul.bf16 %v4810, 1069105081
        %v4906 = vpow.bf16.pop %v4905
        %v4907 = vunpack.c.l.bf16 %v4813
        %v4908 = vunpack.c.l.bf16 %v4816
        %v4909 = vunpack.c.h.bf16 %v4813
        %v4910 = vunpack.c.h.bf16 %v4816
        %v4911 = vunpack.c.l.bf16 %v4819
        %v4912 = vunpack.c.l.bf16 %v4822
        %v4913 = vunpack.c.h.bf16 %v4819
        %v4914 = vunpack.c.h.bf16 %v4822
        %v4915 = vunpack.c.l.bf16 %v4825
        %v4916 = vunpack.c.l.bf16 %v4828
        %v4917 = vunpack.c.h.bf16 %v4825
        %v4918 = vunpack.c.h.bf16 %v4828
        %v4919 = vunpack.c.l.bf16 %v4831
        %v4920 = vunpack.c.l.bf16 %v4834
        %v4921 = vunpack.c.h.bf16 %v4831
        %v4922 = vunpack.c.h.bf16 %v4834
        %v4923 = vunpack.c.l.bf16 %v4837
        %v4924 = vunpack.c.l.bf16 %v4840
        %v4925 = vunpack.c.h.bf16 %v4837
        %v4926 = vunpack.c.h.bf16 %v4840
        %v4927 = vunpack.c.l.bf16 %v4843
        %v4928 = vunpack.c.l.bf16 %v4846
        %v4929 = vunpack.c.h.bf16 %v4843
        %v4930 = vunpack.c.h.bf16 %v4846
        %v4931 = vunpack.c.l.bf16 %v4849
        %v4932 = vunpack.c.l.bf16 %v4852
        %v4933 = vunpack.c.h.bf16 %v4849
        %v4934 = vunpack.c.h.bf16 %v4852
        %v4935 = vunpack.c.l.bf16 %v4855
        %v4936 = vunpack.c.l.bf16 %v4858
        %v4937 = vunpack.c.h.bf16 %v4855
        %v4938 = vunpack.c.h.bf16 %v4858
        %v4939 = vunpack.c.l.bf16 %v4861
        %v4940 = vunpack.c.l.bf16 %v4864
        %v4941 = vunpack.c.h.bf16 %v4861
        %v4942 = vunpack.c.h.bf16 %v4864
        %v4943 = vunpack.c.l.bf16 %v4867
        %v4944 = vunpack.c.l.bf16 %v4870
        %v4945 = vunpack.c.h.bf16 %v4867
        %v4946 = vunpack.c.h.bf16 %v4870
        %v4947 = vunpack.c.l.bf16 %v4873
        %v4948 = vunpack.c.l.bf16 %v4876
        %v4949 = vunpack.c.h.bf16 %v4873
        %v4950 = vunpack.c.h.bf16 %v4876
        %v4951 = vunpack.c.l.bf16 %v4879
        %v4952 = vunpack.c.l.bf16 %v4882
        %v4953 = vunpack.c.h.bf16 %v4879
        %v4954 = vunpack.c.h.bf16 %v4882
        %v4955 = vunpack.c.l.bf16 %v4885
        %v4956 = vunpack.c.l.bf16 %v4888
        %v4957 = vunpack.c.h.bf16 %v4885
        %v4958 = vunpack.c.h.bf16 %v4888
        %v4959 = vunpack.c.l.bf16 %v4891
        %v4960 = vunpack.c.l.bf16 %v4894
        %v4961 = vunpack.c.h.bf16 %v4891
        %v4962 = vunpack.c.h.bf16 %v4894
        %v4963 = vunpack.c.l.bf16 %v4897
        %v4964 = vunpack.c.l.bf16 %v4900
        %v4965 = vunpack.c.h.bf16 %v4897
        %v4966 = vunpack.c.h.bf16 %v4900
        %v4967 = vunpack.c.l.bf16 %v4903
        %v4968 = vunpack.c.l.bf16 %v4906
        %v4969 = vunpack.c.h.bf16 %v4903
        %v4970 = vunpack.c.h.bf16 %v4906
        %v4971 = vadd.f32 %v4907, %v4908
        %4972 = vadd.xlane.f32.xlu0 %v4971
        %v4973 = vpop.xlane.xlu0 %4972
        %v4974 = vadd.f32 %v4909, %v4910
        %4975 = vadd.xlane.f32.xlu0 %v4974
        %v4976 = vpop.xlane.xlu0 %4975
        %v4977 = vadd.f32 %v4911, %v4912
        %4978 = vadd.xlane.f32.xlu0 %v4977
        %v4979 = vpop.xlane.xlu0 %4978
        %v4980 = vadd.f32 %v4913, %v4914
        %4981 = vadd.xlane.f32.xlu0 %v4980
        %v4982 = vpop.xlane.xlu0 %4981
        %v4983 = vadd.f32 %v4915, %v4916
        %4984 = vadd.xlane.f32.xlu0 %v4983
        %v4985 = vpop.xlane.xlu0 %4984
        %v4986 = vadd.f32 %v4917, %v4918
        %4987 = vadd.xlane.f32.xlu0 %v4986
        %v4988 = vpop.xlane.xlu0 %4987
        %v4989 = vadd.f32 %v4919, %v4920
        %4990 = vadd.xlane.f32.xlu0 %v4989
        %v4991 = vpop.xlane.xlu0 %4990
        %v4992 = vadd.f32 %v4921, %v4922
        %4993 = vadd.xlane.f32.xlu0 %v4992
        %v4994 = vpop.xlane.xlu0 %4993
        %v4995 = vadd.f32 %v4923, %v4924
        %4996 = vadd.xlane.f32.xlu0 %v4995
        %v4997 = vpop.xlane.xlu0 %4996
        %v4998 = vadd.f32 %v4925, %v4926
        %4999 = vadd.xlane.f32.xlu0 %v4998
        %v5000 = vpop.xlane.xlu0 %4999
        %v5001 = vadd.f32 %v4927, %v4928
        %5002 = vadd.xlane.f32.xlu0 %v5001
        %v5003 = vpop.xlane.xlu0 %5002
        %v5004 = vadd.f32 %v4929, %v4930
        %5005 = vadd.xlane.f32.xlu0 %v5004
        %v5006 = vpop.xlane.xlu0 %5005
        %v5007 = vadd.f32 %v4931, %v4932
        %5008 = vadd.xlane.f32.xlu0 %v5007
        %v5009 = vpop.xlane.xlu0 %5008
        %v5010 = vadd.f32 %v4933, %v4934
        %5011 = vadd.xlane.f32.xlu0 %v5010
        %v5012 = vpop.xlane.xlu0 %5011
        %v5013 = vadd.f32 %v4935, %v4936
        %5014 = vadd.xlane.f32.xlu0 %v5013
        %v5015 = vpop.xlane.xlu0 %5014
        %v5016 = vadd.f32 %v4937, %v4938
        %5017 = vadd.xlane.f32.xlu0 %v5016
        %v5018 = vpop.xlane.xlu0 %5017
        %v5019 = vadd.f32 %v4939, %v4940
        %5020 = vadd.xlane.f32.xlu0 %v5019
        %v5021 = vpop.xlane.xlu0 %5020
        %v5022 = vadd.f32 %v4941, %v4942
        %5023 = vadd.xlane.f32.xlu0 %v5022
        %v5024 = vpop.xlane.xlu0 %5023
        %v5025 = vadd.f32 %v4943, %v4944
        %5026 = vadd.xlane.f32.xlu0 %v5025
        %v5027 = vpop.xlane.xlu0 %5026
        %v5028 = vadd.f32 %v4945, %v4946
        %5029 = vadd.xlane.f32.xlu0 %v5028
        %v5030 = vpop.xlane.xlu0 %5029
        %v5031 = vadd.f32 %v4947, %v4948
        %5032 = vadd.xlane.f32.xlu0 %v5031
        %v5033 = vpop.xlane.xlu0 %5032
        %v5034 = vadd.f32 %v4949, %v4950
        %5035 = vadd.xlane.f32.xlu0 %v5034
        %v5036 = vpop.xlane.xlu0 %5035
        %v5037 = vadd.f32 %v4951, %v4952
        %5038 = vadd.xlane.f32.xlu0 %v5037
        %v5039 = vpop.xlane.xlu0 %5038
        %v5040 = vadd.f32 %v4953, %v4954
        %5041 = vadd.xlane.f32.xlu0 %v5040
        %v5042 = vpop.xlane.xlu0 %5041
        %v5043 = vadd.f32 %v4955, %v4956
        %5044 = vadd.xlane.f32.xlu0 %v5043
        %v5045 = vpop.xlane.xlu0 %5044
        %v5046 = vadd.f32 %v4957, %v4958
        %5047 = vadd.xlane.f32.xlu0 %v5046
        %v5048 = vpop.xlane.xlu0 %5047
        %v5049 = vadd.f32 %v4959, %v4960
        %5050 = vadd.xlane.f32.xlu0 %v5049
        %v5051 = vpop.xlane.xlu0 %5050
        %v5052 = vadd.f32 %v4961, %v4962
        %5053 = vadd.xlane.f32.xlu0 %v5052
        %v5054 = vpop.xlane.xlu0 %5053
        %v5055 = vadd.f32 %v4963, %v4964
        %5056 = vadd.xlane.f32.xlu0 %v5055
        %v5057 = vpop.xlane.xlu0 %5056
        %v5058 = vadd.f32 %v4965, %v4966
        %5059 = vadd.xlane.f32.xlu0 %v5058
        %v5060 = vpop.xlane.xlu0 %5059
        %v5061 = vadd.f32 %v4967, %v4968
        %5062 = vadd.xlane.f32.xlu0 %v5061
        %v5063 = vpop.xlane.xlu0 %5062
        %v5064 = vadd.f32 %v4969, %v4970
        %5065 = vadd.xlane.f32.xlu0 %v5064
        %v5066 = vpop.xlane.xlu0 %5065
        %v5067 = vrcp.pop %v4973
        %v5068 = vrcp.pop %v4976
        %v5069 = vrcp.pop %v4979
        %v5070 = vrcp.pop %v4982
        %v5071 = vrcp.pop %v4985
        %v5072 = vrcp.pop %v4988
        %v5073 = vrcp.pop %v4991
        %v5074 = vrcp.pop %v4994
        %v5075 = vrcp.pop %v4997
        %v5076 = vrcp.pop %v5000
        %v5077 = vrcp.pop %v5003
        %v5078 = vrcp.pop %v5006
        %v5079 = vrcp.pop %v5009
        %v5080 = vrcp.pop %v5012
        %v5081 = vrcp.pop %v5015
        %v5082 = vrcp.pop %v5018
        %v5083 = vrcp.pop %v5021
        %v5084 = vrcp.pop %v5024
        %v5085 = vrcp.pop %v5027
        %v5086 = vrcp.pop %v5030
        %v5087 = vrcp.pop %v5033
        %v5088 = vrcp.pop %v5036
        %v5089 = vrcp.pop %v5039
        %v5090 = vrcp.pop %v5042
        %v5091 = vrcp.pop %v5045
        %v5092 = vrcp.pop %v5048
        %v5093 = vrcp.pop %v5051
        %v5094 = vrcp.pop %v5054
        %v5095 = vrcp.pop %v5057
        %v5096 = vrcp.pop %v5060
        %v5097 = vrcp.pop %v5063
        %v5098 = vrcp.pop %v5066
        %v5099 = vmul.f32 %v4907, %v5067
        %v5100 = vmul.f32 %v4908, %v5067
        %v5101 = vmul.f32 %v4909, %v5068
        %v5102 = vmul.f32 %v4910, %v5068
        %v5103 = vmul.f32 %v4911, %v5069
        %v5104 = vmul.f32 %v4912, %v5069
        %v5105 = vmul.f32 %v4913, %v5070
        %v5106 = vmul.f32 %v4914, %v5070
        %v5107 = vmul.f32 %v4915, %v5071
        %v5108 = vmul.f32 %v4916, %v5071
        %v5109 = vmul.f32 %v4917, %v5072
        %v5110 = vmul.f32 %v4918, %v5072
        %v5111 = vmul.f32 %v4919, %v5073
        %v5112 = vmul.f32 %v4920, %v5073
        %v5113 = vmul.f32 %v4921, %v5074
        %v5114 = vmul.f32 %v4922, %v5074
        %v5115 = vmul.f32 %v4923, %v5075
        %v5116 = vmul.f32 %v4924, %v5075
        %v5117 = vmul.f32 %v4925, %v5076
        %v5118 = vmul.f32 %v4926, %v5076
        %v5119 = vmul.f32 %v4927, %v5077
        %v5120 = vmul.f32 %v4928, %v5077
        %v5121 = vmul.f32 %v4929, %v5078
        %v5122 = vmul.f32 %v4930, %v5078
        %v5123 = vmul.f32 %v4931, %v5079
        %v5124 = vmul.f32 %v4932, %v5079
        %v5125 = vmul.f32 %v4933, %v5080
        %v5126 = vmul.f32 %v4934, %v5080
        %v5127 = vmul.f32 %v4935, %v5081
        %v5128 = vmul.f32 %v4936, %v5081
        %v5129 = vmul.f32 %v4937, %v5082
        %v5130 = vmul.f32 %v4938, %v5082
        %v5131 = vmul.f32 %v4939, %v5083
        %v5132 = vmul.f32 %v4940, %v5083
        %v5133 = vmul.f32 %v4941, %v5084
        %v5134 = vmul.f32 %v4942, %v5084
        %v5135 = vmul.f32 %v4943, %v5085
        %v5136 = vmul.f32 %v4944, %v5085
        %v5137 = vmul.f32 %v4945, %v5086
        %v5138 = vmul.f32 %v4946, %v5086
        %v5139 = vmul.f32 %v4947, %v5087
        %v5140 = vmul.f32 %v4948, %v5087
        %v5141 = vmul.f32 %v4949, %v5088
        %v5142 = vmul.f32 %v4950, %v5088
        %v5143 = vmul.f32 %v4951, %v5089
        %v5144 = vmul.f32 %v4952, %v5089
        %v5145 = vmul.f32 %v4953, %v5090
        %v5146 = vmul.f32 %v4954, %v5090
        %v5147 = vmul.f32 %v4955, %v5091
        %v5148 = vmul.f32 %v4956, %v5091
        %v5149 = vmul.f32 %v4957, %v5092
        %v5150 = vmul.f32 %v4958, %v5092
        %v5151 = vmul.f32 %v4959, %v5093
        %v5152 = vmul.f32 %v4960, %v5093
        %v5153 = vmul.f32 %v4961, %v5094
        %v5154 = vmul.f32 %v4962, %v5094
        %v5155 = vmul.f32 %v4963, %v5095
        %v5156 = vmul.f32 %v4964, %v5095
        %v5157 = vmul.f32 %v4965, %v5096
        %v5158 = vmul.f32 %v4966, %v5096
        %v5159 = vmul.f32 %v4967, %v5097
        %v5160 = vmul.f32 %v4968, %v5097
        %v5161 = vmul.f32 %v4969, %v5098
        %v5162 = vmul.f32 %v4970, %v5098
        %v5163 = vadd.f32 %v5099, %v5101
        %v5164 = vadd.f32 %v5163, %v5103
        %v5165 = vadd.f32 %v5164, %v5105
        %v5166 = vadd.f32 %v5165, %v5107
        %v5167 = vadd.f32 %v5166, %v5109
        %v5168 = vadd.f32 %v5167, %v5111
        %v5169 = vadd.f32 %v5168, %v5113
        %v5170 = vadd.f32 %v5169, %v5115
        %v5171 = vadd.f32 %v5170, %v5117
        %v5172 = vadd.f32 %v5171, %v5119
        %v5173 = vadd.f32 %v5172, %v5121
        %v5174 = vadd.f32 %v5173, %v5123
        %v5175 = vadd.f32 %v5174, %v5125
        %v5176 = vadd.f32 %v5175, %v5127
        %v5177 = vadd.f32 %v5176, %v5129
        %v5178 = vadd.f32 %v5177, %v5131
        %v5179 = vadd.f32 %v5178, %v5133
        %v5180 = vadd.f32 %v5179, %v5135
        %v5181 = vadd.f32 %v5180, %v5137
        %v5182 = vadd.f32 %v5181, %v5139
        %v5183 = vadd.f32 %v5182, %v5141
        %v5184 = vadd.f32 %v5183, %v5143
        %v5185 = vadd.f32 %v5184, %v5145
        %v5186 = vadd.f32 %v5185, %v5147
        %v5187 = vadd.f32 %v5186, %v5149
        %v5188 = vadd.f32 %v5187, %v5151
        %v5189 = vadd.f32 %v5188, %v5153
        %v5190 = vadd.f32 %v5189, %v5155
        %v5191 = vadd.f32 %v5190, %v5157
        %v5192 = vadd.f32 %v5191, %v5159
        %v5193 = vadd.f32 %v5192, %v5161
        %v5194 = vrot.slane %v5193, 4
        %v5195 = vadd.f32 %v5193, %v5194
        %v5196 = vrot.slane %v5195, 2
        %v5197 = vadd.f32 %v5195, %v5196
        %v5198 = vrot.slane %v5197, 1
        %v5199 = vadd.f32 %v5197, %v5198
        %v5200 = vadd.f32 %v5100, %v5102
        %v5201 = vadd.f32 %v5200, %v5104
        %v5202 = vadd.f32 %v5201, %v5106
        %v5203 = vadd.f32 %v5202, %v5108
        %v5204 = vadd.f32 %v5203, %v5110
        %v5205 = vadd.f32 %v5204, %v5112
        %v5206 = vadd.f32 %v5205, %v5114
        %v5207 = vadd.f32 %v5206, %v5116
        %v5208 = vadd.f32 %v5207, %v5118
        %v5209 = vadd.f32 %v5208, %v5120
        %v5210 = vadd.f32 %v5209, %v5122
        %v5211 = vadd.f32 %v5210, %v5124
        %v5212 = vadd.f32 %v5211, %v5126
        %v5213 = vadd.f32 %v5212, %v5128
        %v5214 = vadd.f32 %v5213, %v5130
        %v5215 = vadd.f32 %v5214, %v5132
        %v5216 = vadd.f32 %v5215, %v5134
        %v5217 = vadd.f32 %v5216, %v5136
        %v5218 = vadd.f32 %v5217, %v5138
        %v5219 = vadd.f32 %v5218, %v5140
        %v5220 = vadd.f32 %v5219, %v5142
        %v5221 = vadd.f32 %v5220, %v5144
        %v5222 = vadd.f32 %v5221, %v5146
        %v5223 = vadd.f32 %v5222, %v5148
        %v5224 = vadd.f32 %v5223, %v5150
        %v5225 = vadd.f32 %v5224, %v5152
        %v5226 = vadd.f32 %v5225, %v5154
        %v5227 = vadd.f32 %v5226, %v5156
        %v5228 = vadd.f32 %v5227, %v5158
        %v5229 = vadd.f32 %v5228, %v5160
        %v5230 = vadd.f32 %v5229, %v5162
        %v5231 = vrot.slane %v5230, 4
        %v5232 = vadd.f32 %v5230, %v5231
        %v5233 = vrot.slane %v5232, 2
        %v5234 = vadd.f32 %v5232, %v5233
        %v5235 = vrot.slane %v5234, 1
        %v5236 = vadd.f32 %v5234, %v5235
        %v5237 = vmul.f32 %v5199, %v1562
        %v5238 = vmul.f32 %v5236, %v1562
        %5239 = vrot.lane.b32.xlu0 %v431, 40
        %v5240 = vpop.permute.xlu0 %5239
        %5241 = vrot.lane.b32.xlu0 %v436, 40
        %v5242 = vpop.permute.xlu0 %5241
        %5243 = vrot.lane.b32.xlu0 %v441, 40
        %v5244 = vpop.permute.xlu0 %5243
        %5245 = vrot.lane.b32.xlu0 %v446, 40
        %v5246 = vpop.permute.xlu0 %5245
        %5247 = vrot.lane.b32.xlu0 %v451, 40
        %v5248 = vpop.permute.xlu0 %5247
        %5249 = vrot.lane.b32.xlu0 %v456, 40
        %v5250 = vpop.permute.xlu0 %5249
        %5251 = vrot.lane.b32.xlu0 %v461, 40
        %v5252 = vpop.permute.xlu0 %5251
        %5253 = vrot.lane.b32.xlu0 %v466, 40
        %v5254 = vpop.permute.xlu0 %5253
        %5255 = vrot.lane.b32.xlu0 %v471, 40
        %v5256 = vpop.permute.xlu0 %5255
        %5257 = vrot.lane.b32.xlu0 %v476, 40
        %v5258 = vpop.permute.xlu0 %5257
        %5259 = vrot.lane.b32.xlu0 %v481, 40
        %v5260 = vpop.permute.xlu0 %5259
        %5261 = vrot.lane.b32.xlu0 %v486, 40
        %v5262 = vpop.permute.xlu0 %5261
        %5263 = vrot.lane.b32.xlu0 %v491, 40
        %v5264 = vpop.permute.xlu0 %5263
        %5265 = vrot.lane.b32.xlu0 %v496, 40
        %v5266 = vpop.permute.xlu0 %5265
        %5267 = vrot.lane.b32.xlu0 %v501, 40
        %v5268 = vpop.permute.xlu0 %5267
        %5269 = vrot.lane.b32.xlu0 %v506, 40
        %v5270 = vpop.permute.xlu0 %5269
        %5271 = vrot.lane.b32.xlu0 %v511, 40
        %v5272 = vpop.permute.xlu0 %5271
        %5273 = vrot.lane.b32.xlu0 %v516, 40
        %v5274 = vpop.permute.xlu0 %5273
        %5275 = vrot.lane.b32.xlu0 %v521, 40
        %v5276 = vpop.permute.xlu0 %5275
        %5277 = vrot.lane.b32.xlu0 %v526, 40
        %v5278 = vpop.permute.xlu0 %5277
        %5279 = vrot.lane.b32.xlu0 %v531, 40
        %v5280 = vpop.permute.xlu0 %5279
        %5281 = vrot.lane.b32.xlu0 %v536, 40
        %v5282 = vpop.permute.xlu0 %5281
        %5283 = vrot.lane.b32.xlu0 %v541, 40
        %v5284 = vpop.permute.xlu0 %5283
        %5285 = vrot.lane.b32.xlu0 %v546, 40
        %v5286 = vpop.permute.xlu0 %5285
        %5287 = vrot.lane.b32.xlu0 %v551, 40
        %v5288 = vpop.permute.xlu0 %5287
        %5289 = vrot.lane.b32.xlu0 %v556, 40
        %v5290 = vpop.permute.xlu0 %5289
        %5291 = vrot.lane.b32.xlu0 %v561, 40
        %v5292 = vpop.permute.xlu0 %5291
        %5293 = vrot.lane.b32.xlu0 %v566, 40
        %v5294 = vpop.permute.xlu0 %5293
        %5295 = vrot.lane.b32.xlu0 %v571, 40
        %v5296 = vpop.permute.xlu0 %5295
        %5297 = vrot.lane.b32.xlu0 %v576, 40
        %v5298 = vpop.permute.xlu0 %5297
        %5299 = vrot.lane.b32.xlu0 %v581, 40
        %v5300 = vpop.permute.xlu0 %5299
        %5301 = vrot.lane.b32.xlu0 %v586, 40
        %v5302 = vpop.permute.xlu0 %5301
        %5335 = vmatprep.subr.mxu0 0.0
        %5336 = vmatpush1.msra.mxu0 %v5270
        %5337 = vmatprep.subr.mxu0 0.0
        %5338 = vmatpush1.msra.mxu0 %v5268
        %5339 = vmatprep.subr.mxu0 0.0
        %5340 = vmatpush1.msra.mxu0 %v5266
        %5341 = vmatprep.subr.mxu0 0.0
        %5342 = vmatpush1.msra.mxu0 %v5264
        %5343 = vmatprep.subr.mxu0 0.0
        %5344 = vmatpush1.msra.mxu0 %v5262
        %5345 = vmatprep.subr.mxu0 0.0
        %5346 = vmatpush1.msra.mxu0 %v5260
        %5347 = vmatprep.subr.mxu0 0.0
        %5348 = vmatpush1.msra.mxu0 %v5258
        %5349 = vmatprep.subr.mxu0 0.0
        %5350 = vmatpush1.msra.mxu0 %v5256
        %5351 = vmatprep.subr.mxu0 0.0
        %5352 = vmatpush1.msra.mxu0 %v5254
        %5353 = vmatprep.subr.mxu0 0.0
        %5354 = vmatpush1.msra.mxu0 %v5252
        %5355 = vmatprep.subr.mxu0 0.0
        %5356 = vmatpush1.msra.mxu0 %v5250
        %5357 = vmatprep.subr.mxu0 0.0
        %5358 = vmatpush1.msra.mxu0 %v5248
        %5359 = vmatprep.subr.mxu0 0.0
        %5360 = vmatpush1.msra.mxu0 %v5246
        %5361 = vmatprep.subr.mxu0 0.0
        %5362 = vmatpush1.msra.mxu0 %v5244
        %5363 = vmatprep.subr.mxu0 0.0
        %5364 = vmatpush1.msra.mxu0 %v5242
        %5365 = vmatprep.subr.mxu0 0.0
        %5366 = vmatpush1.msra.mxu0 %v5240
        %5367 = vmatprep.subr.mxu0 0.0
        %5368 = vmatpush2.msra.mxu0 %v5302
        %5369 = vmatprep.subr.mxu0 0.0
        %5370 = vmatpush2.msra.mxu0 %v5300
        %5371 = vmatprep.subr.mxu0 0.0
        %5372 = vmatpush2.msra.mxu0 %v5298
        %5373 = vmatprep.subr.mxu0 0.0
        %5374 = vmatpush2.msra.mxu0 %v5296
        %5375 = vmatprep.subr.mxu0 0.0
        %5376 = vmatpush2.msra.mxu0 %v5294
        %5377 = vmatprep.subr.mxu0 0.0
        %5378 = vmatpush2.msra.mxu0 %v5292
        %5379 = vmatprep.subr.mxu0 0.0
        %5380 = vmatpush2.msra.mxu0 %v5290
        %5381 = vmatprep.subr.mxu0 0.0
        %5382 = vmatpush2.msra.mxu0 %v5288
        %5383 = vmatprep.subr.mxu0 0.0
        %5384 = vmatpush2.msra.mxu0 %v5286
        %5385 = vmatprep.subr.mxu0 0.0
        %5386 = vmatpush2.msra.mxu0 %v5284
        %5387 = vmatprep.subr.mxu0 0.0
        %5388 = vmatpush2.msra.mxu0 %v5282
        %5389 = vmatprep.subr.mxu0 0.0
        %5390 = vmatpush2.msra.mxu0 %v5280
        %5391 = vmatprep.subr.mxu0 0.0
        %5392 = vmatpush2.msra.mxu0 %v5278
        %5393 = vmatprep.subr.mxu0 0.0
        %5394 = vmatpush2.msra.mxu0 %v5276
        %5395 = vmatprep.subr.mxu0 0.0
        %5396 = vmatpush2.msra.mxu0 %v5274
        %5397 = vmatprep.subr.mxu0 0.0
        %5398 = vmatpush2.msra.mxu0 %v5272
        %5399 = vmatprep.mubr.f32.mxu0 %v5238
        %5400 = vmatmul.mubr.f32.gmra.mxu0 %v5237
        %v5401 = vpop.f32.mrf.mxu0
        %v5402 = vadd.f32 0.0, %v5401
        %v5403 = vpop.f32.mrf.mxu0
        %5404 = vdwg.mxu0
        %v5405 = vld [vmem:[%s3 + $0x18] sm:$0xff]
        %v5407 = vsel %vm654, %v5402, 0
        %5409 = vmatprep.subr.mxu0 0.0
        %5410 = vmatpush1.msra.mxu0 0.0
        %5411 = vmatprep.subr.mxu0 0.0
        %5412 = vmatpush1.msra.mxu0 0.0
        %5413 = vmatprep.subr.mxu0 0.0
        %5414 = vmatpush1.msra.mxu0 0.0
        %5415 = vmatprep.subr.mxu0 0.0
        %5416 = vmatpush1.msra.mxu0 0.0
        %5417 = vmatprep.subr.mxu0 0.0
        %5418 = vmatpush1.msra.mxu0 0.0
        %5419 = vmatprep.subr.mxu0 0.0
        %5420 = vmatpush1.msra.mxu0 0.0
        %5421 = vmatprep.subr.mxu0 0.0
        %5422 = vmatpush1.msra.mxu0 0.0
        %5423 = vmatprep.subr.mxu0 0.0
        %5424 = vmatpush1.msra.mxu0 0.0
        %5425 = vmatprep.subr.mxu0 0.0
        %5426 = vmatpush1.msra.mxu0 0.0
        %5427 = vmatprep.subr.mxu0 0.0
        %5428 = vmatpush1.msra.mxu0 0.0
        %5429 = vmatprep.subr.mxu0 0.0
        %5430 = vmatpush1.msra.mxu0 0.0
        %5431 = vmatprep.subr.mxu0 0.0
        %5432 = vmatpush1.msra.mxu0 0.0
        %5433 = vmatprep.subr.mxu0 0.0
        %5434 = vmatpush1.msra.mxu0 0.0
        %5435 = vmatprep.subr.mxu0 0.0
        %5436 = vmatpush1.msra.mxu0 0.0
        %5437 = vmatprep.subr.mxu0 0.0
        %5438 = vmatpush1.msra.mxu0 0.0
        %5439 = vmatprep.subr.mxu0 0.0
        %5440 = vmatpush1.msra.mxu0 %v5405
        %5441 = vmatprep.subr.mxu0 0.0
        %5442 = vmatpush2.msra.mxu0 0.0
        %5443 = vmatprep.subr.mxu0 0.0
        %5444 = vmatpush2.msra.mxu0 0.0
        %5445 = vmatprep.subr.mxu0 0.0
        %5446 = vmatpush2.msra.mxu0 0.0
        %5447 = vmatprep.subr.mxu0 0.0
        %5448 = vmatpush2.msra.mxu0 0.0
        %5449 = vmatprep.subr.mxu0 0.0
        %5450 = vmatpush2.msra.mxu0 0.0
        %5451 = vmatprep.subr.mxu0 0.0
        %5452 = vmatpush2.msra.mxu0 0.0
        %5453 = vmatprep.subr.mxu0 0.0
        %5454 = vmatpush2.msra.mxu0 0.0
        %5455 = vmatprep.subr.mxu0 0.0
        %5456 = vmatpush2.msra.mxu0 0.0
        %5457 = vmatprep.subr.mxu0 0.0
        %5458 = vmatpush2.msra.mxu0 0.0
        %5459 = vmatprep.subr.mxu0 0.0
        %5460 = vmatpush2.msra.mxu0 0.0
        %5461 = vmatprep.subr.mxu0 0.0
        %5462 = vmatpush2.msra.mxu0 0.0
        %5463 = vmatprep.subr.mxu0 0.0
        %5464 = vmatpush2.msra.mxu0 0.0
        %5465 = vmatprep.subr.mxu0 0.0
        %5466 = vmatpush2.msra.mxu0 0.0
        %5467 = vmatprep.subr.mxu0 0.0
        %5468 = vmatpush2.msra.mxu0 0.0
        %5469 = vmatprep.subr.mxu0 0.0
        %5470 = vmatpush2.msra.mxu0 0.0
        %5471 = vmatprep.subr.mxu0 0.0
        %5472 = vmatpush2.msra.mxu0 0.0
        %5473 = vmatprep.mubr.f32.mxu0 0.0
        %5474 = vmatmul.mubr.f32.gmra.mxu0 %v5407
        %v5475 = vpop.f32.mrf.mxu0
        %v5476 = vadd.f32 0.0, %v5475
        %v5477 = vpop.f32.mrf.mxu0
        %5478 = vdwg.mxu0
        %v5479 = vadd.f32 %v4265, %v5476
        %vm5480 = vcmask 73728
        %5481 = vst.msk [vmem:[%s216] sm:$0x1] %vm5480, %v5479
        %s5482 = sand.u32 %s137, 1
        %s5483 = scalar_lea.sflag [#allocation3], %s5482
        %s5484 = sand.u32 %s137, 1
        %s5485 = scalar_lea.vmem [#allocation2], %s5484
        // Predicated region
        $region41: #{tpu_custom_call.1} parent=39 // pred_check
          %p5486 = pneg %p147
        $region42: #{tpu_custom_call.1} parent=39 // pred_check_branch
          %5488 = sbr.rel (%p5486) target = $region44
        $region43: #{tpu_custom_call.1} parent=39 // pred_region
          %s5490 = ssub.s32 16, 16
          %5491 = vsyncadd %s5483, %s5490
          %s5492 = smul.addr %s19, 16
          %s5493 = scalar_lea.hbm %s5, %s5492
          %s5495 = sshll.u32 %s5485, 4
          %s5496 = int_to_ptr.vmem [resolvable:$true] %s5495
          %5498 = dma.vmem_to_hbm [thread:$0]  %s5496, 16, %s5493, %s5483
        $region44: #{tpu_custom_call.1} parent=39 // pred_fallthru
          _
      $region40: #{tpu_custom_call.1} parent=5 // pred_fallthru
        _
      %p5499 = scmp.le.s32.totalorder 2, %s14
      // Predicated region
      $region45: #{tpu_custom_call.1} parent=5 // pred_check
        %p5500 = pneg %p5499
      $region46: #{tpu_custom_call.1} parent=5 // pred_check_branch
        %5502 = sbr.rel (%p5500) target = $region48
      $region47: #{tpu_custom_call.1} parent=5 // pred_region
        %s5503 = ssub.s32 %s14, 2
        // Predicated region
        $region49: #{tpu_custom_call.1} parent=47 // pred_check
          %p5504 = pneg %p153
        $region50: #{tpu_custom_call.1} parent=47 // pred_check_branch
          %5506 = sbr.rel (%p5504) target = $region52
        $region51: #{tpu_custom_call.1} parent=47 // pred_region
          %s5507 = sand.u32 %s138, 1
          %s5508 = scalar_lea.sflag [#allocation3], %s5507
          %s5509 = sand.u32 %s138, 1
          %s5510 = scalar_lea.vmem [#allocation2], %s5509
          %5511 = dma.done %s5508, 16
        $region52: #{tpu_custom_call.1} parent=47 // pred_fallthru
          _
      $region48: #{tpu_custom_call.1} parent=5 // pred_fallthru
        _
    $region6: #{tpu_custom_call.1} parent=1 // loop_footer
      %s18 = sadd.s32 1, %s14
    $region7: #{tpu_custom_call.1} parent=1 // loop_footer_branch
      %13 = sbr.rel target = $region3
    $region8: #{tpu_custom_call.1} parent=1 // loop_exit
      _
    %5512 = vsyncpa [#allocation3], 1
    %s5513 = scalar_lea.sflag [#allocation3], 1
    %5514 = vsyncpa %s5513, 1

</llo_original>
